<compile_context>
chip_gen: v5e
topology: v5e:2x2
jax: 0.10.0
libtpu: 0.0.40
codegen_flags: <defaults>
</compile_context>

<pallas_src>
import jax
import jax.numpy as jnp
from jax.experimental import pallas as pl
from jax.experimental.pallas import tpu as pltpu


# ----------------------------- Pallas kernel --------------------------------
def _gru_half_kernel(h_ref, x_ref, wzrh_ref, wzrx_ref, wqh_ref, wqx_ref,
                     bzr_ref, bq_ref, o_ref, padh_ref, padx_ref):
    """One GRU half (one separable-conv direction) for a tile of rows.

    h_ref   : (Rt, L, Ch)       f32 hidden-state rows (unpadded)
    x_ref   : (Rt, L, Cx)       bf16 input rows (unpadded)
    wzrh_ref: (5*Ch, 2*Ch)      bf16 im2col weights (h part), z|r fused on N
    wzrx_ref: (5*Cx, 2*Ch)      bf16 im2col weights (x part), z|r fused on N
    wqh_ref : (5*Ch, Ch)        bf16 q-gate weights, h part (applied to r*h)
    wqx_ref : (5*Cx, Ch)        bf16 q-gate weights, x part
    bzr_ref : (1, 2*Ch)         f32 bias [bz | br]
    bq_ref  : (1, Ch)           f32 bias
    o_ref   : (Rt, L, Ch)       f32 updated hidden-state rows
    padh_ref: (Rt, L+4, Ch)     bf16 VMEM scratch (zero-padded h, then r*h)
    padx_ref: (Rt, L+4, Cx)     bf16 VMEM scratch (zero-padded x)
    """
    Rt, L, Ch = h_ref.shape
    Cx = x_ref.shape[2]
    M = Rt * L

    h = h_ref[...]                                              # (Rt, L, Ch) f32

    # Stage zero-padded bf16 rows (conv halo = 2) in VMEM.
    padh_ref[:, 0:2, :] = jnp.zeros((Rt, 2, Ch), jnp.bfloat16)
    padh_ref[:, L + 2:L + 4, :] = jnp.zeros((Rt, 2, Ch), jnp.bfloat16)
    padh_ref[:, 2:L + 2, :] = h.astype(jnp.bfloat16)
    padx_ref[:, 0:2, :] = jnp.zeros((Rt, 2, Cx), jnp.bfloat16)
    padx_ref[:, L + 2:L + 4, :] = jnp.zeros((Rt, 2, Cx), jnp.bfloat16)
    padx_ref[:, 2:L + 2, :] = x_ref[...]

    def im2col(ref):                                            # (Rt,L+4,C)->(M,5C)
        a = ref[...]
        return jnp.concatenate([a[:, k:k + L, :] for k in range(5)],
                               axis=-1).reshape(M, 5 * a.shape[-1])

    cols_x = im2col(padx_ref)          # built once; reused by the q gate below
    cols_h = im2col(padh_ref)

    # z and r gates: fused MXU matmuls (h part + x part), f32 accumulation.
    zr = (jnp.dot(cols_h, wzrh_ref[...], preferred_element_type=jnp.float32)
          + jnp.dot(cols_x, wzrx_ref[...], preferred_element_type=jnp.float32)
          + bzr_ref[...])
    z = jax.nn.sigmoid(zr[:, :Ch])
    r = jax.nn.sigmoid(zr[:, Ch:])

    hm = h.reshape(M, Ch)                                       # f32 hidden state
    # q gate: conv over [r*h | x]; only the h half of the im2col changes.
    padh_ref[:, 2:L + 2, :] = (r * hm).astype(jnp.bfloat16).reshape(Rt, L, Ch)
    cols_rh = im2col(padh_ref)

    q = jnp.tanh(jnp.dot(cols_rh, wqh_ref[...], preferred_element_type=jnp.float32)
                 + jnp.dot(cols_x, wqx_ref[...], preferred_element_type=jnp.float32)
                 + bq_ref[...])

    o_ref[...] = ((1.0 - z) * hm + z * q).reshape(Rt, L, Ch)


# ------------------------------ wrappers -------------------------------------
def _pick_row_tile(rows, length):
    """Pick R_TILE | rows so M = R_TILE*length is MXU-friendly (~512) while
    keeping >= 2 grid steps when possible (megacore sharding)."""
    target = max(1, 512 // max(length, 1))
    divisors = [t for t in range(1, rows + 1) if rows % t == 0]
    fitting = [t for t in divisors if t <= target]
    tile = max(fitting) if fitting else 1
    if tile == rows and rows > 1:
        tile = max(t for t in divisors if t < rows)
    return tile


def _prep_gate_weights(wz, wr, wq, bz, br, bq, ch):
    """w*: (Ch_out, Cin, 5) PyTorch (out, in, tap) weights (unit spatial dim
    removed).  Returns im2col-layout bf16 weights split into h / x input
    parts (row index = tap*C + in_channel, matching the kernel's im2col)."""
    def split_im2col(w):
        wh = jnp.transpose(w[:, :ch, :], (2, 1, 0)).reshape(-1, w.shape[0])
        wx = jnp.transpose(w[:, ch:, :], (2, 1, 0)).reshape(-1, w.shape[0])
        return wh, wx

    wz_h, wz_x = split_im2col(wz)
    wr_h, wr_x = split_im2col(wr)
    wq_h, wq_x = split_im2col(wq)
    wzr_h = jnp.concatenate([wz_h, wr_h], axis=1).astype(jnp.bfloat16)
    wzr_x = jnp.concatenate([wz_x, wr_x], axis=1).astype(jnp.bfloat16)
    bzr = jnp.concatenate([bz, br]).reshape(1, -1).astype(jnp.float32)
    bq2 = bq.reshape(1, -1).astype(jnp.float32)
    return (wzr_h, wzr_x, wq_h.astype(jnp.bfloat16), wq_x.astype(jnp.bfloat16),
            bzr, bq2)


def _gru_half(h_rows, x_rows, gate_w, ch):
    """Run one GRU half.  h_rows: (R, L, Ch) f32, x_rows: (R, L, Cx) bf16,
    conv (kernel 5, pad 2) along axis 1.  Returns (R, L, Ch) f32."""
    R, L, _ = h_rows.shape
    Cx = x_rows.shape[2]
    wzr_h, wzr_x, wq_h, wq_x, bzr, bq = gate_w
    rt = _pick_row_tile(R, L)
    grid = (R // rt,)
    cin = ch + Cx

    cost = pl.CostEstimate(
        flops=int(2 * R * L * (5 * cin) * (3 * ch)),
        transcendentals=int(3 * R * L * ch),
        bytes_accessed=int(R * L * (ch * 4 + Cx * 2 + ch * 4)
                           + 2 * (wzr_h.size + wzr_x.size + wq_h.size + wq_x.size)
                           + 4 * (bzr.size + bq.size)))

    return pl.pallas_call(
        _gru_half_kernel,
        out_shape=jax.ShapeDtypeStruct((R, L, ch), jnp.float32),
        grid=grid,
        in_specs=[
            pl.BlockSpec((rt, L, ch), lambda i: (i, 0, 0)),
            pl.BlockSpec((rt, L, Cx), lambda i: (i, 0, 0)),
            pl.BlockSpec((5 * ch, 2 * ch), lambda i: (0, 0)),
            pl.BlockSpec((5 * Cx, 2 * ch), lambda i: (0, 0)),
            pl.BlockSpec((5 * ch, ch), lambda i: (0, 0)),
            pl.BlockSpec((5 * Cx, ch), lambda i: (0, 0)),
            pl.BlockSpec((1, 2 * ch), lambda i: (0, 0)),
            pl.BlockSpec((1, ch), lambda i: (0, 0)),
        ],
        out_specs=pl.BlockSpec((rt, L, ch), lambda i: (i, 0, 0)),
        scratch_shapes=[pltpu.VMEM((rt, L + 4, ch), jnp.bfloat16),
                        pltpu.VMEM((rt, L + 4, Cx), jnp.bfloat16)],
        compiler_params=pltpu.CompilerParams(
            dimension_semantics=("parallel",)),
        cost_estimate=cost,
    )(h_rows, x_rows, wzr_h, wzr_x, wq_h, wq_x, bzr, bq)


def sep_conv_gru(h, x, params):
    """Pallas SepConvGRU forward.  h: (N, Ch, H, W), x: (N, Cx, H, W) NCHW."""
    N, Ch, H, W = h.shape
    Cx = x.shape[1]

    w1 = _prep_gate_weights(params['convz1_w'][:, :, 0, :],
                            params['convr1_w'][:, :, 0, :],
                            params['convq1_w'][:, :, 0, :],
                            params['convz1_b'], params['convr1_b'],
                            params['convq1_b'], Ch)
    w2 = _prep_gate_weights(params['convz2_w'][:, :, :, 0],
                            params['convr2_w'][:, :, :, 0],
                            params['convq2_w'][:, :, :, 0],
                            params['convz2_b'], params['convr2_b'],
                            params['convq2_b'], Ch)

    # x is a matmul-only operand -> ship it as bf16 (halves its HBM traffic);
    # h / h1 stay f32 (needed exactly in the GRU state update).
    x_nhwc = jnp.transpose(x, (0, 2, 3, 1)).astype(jnp.bfloat16)   # (N,H,W,Cx)

    # ---- pass 1: (1, 5) conv along W; rows are (n, h) ----
    h_rows1 = jnp.transpose(h, (0, 2, 3, 1)).reshape(N * H, W, Ch)
    h1 = _gru_half(h_rows1, x_nhwc.reshape(N * H, W, Cx), w1, Ch)
    h1 = h1.reshape(N, H, W, Ch)

    # ---- pass 2: (5, 1) conv along H; rows are (n, w) ----
    h_rows2 = jnp.transpose(h1, (0, 2, 1, 3)).reshape(N * W, H, Ch)
    x_rows2 = jnp.transpose(x_nhwc, (0, 2, 1, 3)).reshape(N * W, H, Cx)
    h2 = _gru_half(h_rows2, x_rows2, w2, Ch).reshape(N, W, H, Ch)
    return jnp.transpose(h2, (0, 3, 2, 1))                         # back to NCHW


# ------------------------- pure-JAX reference -------------------------------
def _conv2d_ref(x, w, b, padding):
    out = jax.lax.conv_general_dilated(
        x, w, window_strides=(1, 1), padding=padding,
        dimension_numbers=('NCHW', 'OIHW', 'NCHW'),
        precision=jax.lax.Precision.HIGHEST)
    return out + b[None, :, None, None]


def sep_conv_gru_ref(h, x, p):
    hx = jnp.concatenate([h, x], axis=1)
    z = jax.nn.sigmoid(_conv2d_ref(hx, p['convz1_w'], p['convz1_b'], [(0, 0), (2, 2)]))
    r = jax.nn.sigmoid(_conv2d_ref(hx, p['convr1_w'], p['convr1_b'], [(0, 0), (2, 2)]))
    q = jnp.tanh(_conv2d_ref(jnp.concatenate([r * h, x], axis=1),
                             p['convq1_w'], p['convq1_b'], [(0, 0), (2, 2)]))
    h = (1 - z) * h + z * q
    hx = jnp.concatenate([h, x], axis=1)
    z = jax.nn.sigmoid(_conv2d_ref(hx, p['convz2_w'], p['convz2_b'], [(2, 2), (0, 0)]))
    r = jax.nn.sigmoid(_conv2d_ref(hx, p['convr2_w'], p['convr2_b'], [(2, 2), (0, 0)]))
    q = jnp.tanh(_conv2d_ref(jnp.concatenate([r * h, x], axis=1),
                             p['convq2_w'], p['convq2_b'], [(2, 2), (0, 0)]))
    h = (1 - z) * h + z * q
    return h


# ------------------------------- main ----------------------------------------
if __name__ == "__main__":
    key = jax.random.PRNGKey(0)
    # Small-but-representative shapes: hidden_dim=128 (module default), input_dim=128.
    N, Ch, Cx, H, W = 2, 128, 128, 8, 8
    Cin = Ch + Cx

    names = ['convz1', 'convr1', 'convq1', 'convz2', 'convr2', 'convq2']
    kshapes = [(1, 5)] * 3 + [(5, 1)] * 3
    keys = jax.random.split(key, 2 * len(names) + 2)

    params = {}
    scale = (Cin * 5) ** -0.5          # PyTorch-style fan-in init
    for idx, (name, ks) in enumerate(zip(names, kshapes)):
        w = scale * jax.random.normal(keys[2 * idx], (Ch, Cin) + ks, jnp.float32)
        b = scale * jax.random.normal(keys[2 * idx + 1], (Ch,), jnp.float32)
        # Round weights to bf16-representable values so the bf16-MXU kernel and
        # the f32 reference see identical effective weights.
        params[name + '_w'] = w.astype(jnp.bfloat16).astype(jnp.float32)
        params[name + '_b'] = b

    h0 = jax.random.normal(keys[-2], (N, Ch, H, W), jnp.float32)
    x0 = jax.random.normal(keys[-1], (N, Cx, H, W), jnp.float32)
    h0 = h0.astype(jnp.bfloat16).astype(jnp.float32)
    x0 = x0.astype(jnp.bfloat16).astype(jnp.float32)

    out = jax.jit(sep_conv_gru)(h0, x0, params)
    out = jax.block_until_ready(out)

    ref = sep_conv_gru_ref(h0, x0, params)
    assert out.shape == (N, Ch, H, W)
    max_err = float(jnp.max(jnp.abs(out - ref)))
    assert jnp.allclose(out, ref, atol=1e-2, rtol=1e-2), max_err

    print("KERNEL_OK")
</pallas_src>

<mosaic_0001>
module attributes {stable_mosaic.version = 11 : i64} {
  func.func @_gru_half_kernel(%arg0: i32, %arg1: memref<8x8x128xf32, #tpu.memory_space<vmem>>, %arg2: memref<8x8x128xbf16, #tpu.memory_space<vmem>>, %arg3: memref<640x256xbf16, #tpu.memory_space<vmem>>, %arg4: memref<640x256xbf16, #tpu.memory_space<vmem>>, %arg5: memref<640x128xbf16, #tpu.memory_space<vmem>>, %arg6: memref<640x128xbf16, #tpu.memory_space<vmem>>, %arg7: memref<1x256xf32, #tpu.memory_space<vmem>>, %arg8: memref<1x128xf32, #tpu.memory_space<vmem>>, %arg9: memref<8x8x128xf32, #tpu.memory_space<vmem>>, %arg10: memref<8x12x128xbf16, #tpu.memory_space<vmem>>, %arg11: memref<8x12x128xbf16, #tpu.memory_space<vmem>>) attributes {dimension_semantics = [#tpu.dimension_semantics<parallel>], iteration_bounds = array<i64: 2>, scalar_prefetch = 0 : i64, scratch_operands = 2 : i64, tpu.core_type = #tpu.core_type<tc>, window_params = [{transform_indices = @transform_0, window_bounds = array<i64: 8, 8, 128>}, {transform_indices = @transform_1, window_bounds = array<i64: 8, 8, 128>}, {pipeline_mode = #tpu.pipeline_mode<synchronous>, transform_indices = @transform_2, window_bounds = array<i64: 640, 256>}, {pipeline_mode = #tpu.pipeline_mode<synchronous>, transform_indices = @transform_3, window_bounds = array<i64: 640, 256>}, {pipeline_mode = #tpu.pipeline_mode<synchronous>, transform_indices = @transform_4, window_bounds = array<i64: 640, 128>}, {pipeline_mode = #tpu.pipeline_mode<synchronous>, transform_indices = @transform_5, window_bounds = array<i64: 640, 128>}, {pipeline_mode = #tpu.pipeline_mode<synchronous>, transform_indices = @transform_6, window_bounds = array<i64: 1, 256>}, {pipeline_mode = #tpu.pipeline_mode<synchronous>, transform_indices = @transform_7, window_bounds = array<i64: 1, 128>}, {transform_indices = @transform_8, window_bounds = array<i64: 8, 8, 128>}]} {
    %c0 = arith.constant 0 : index
    %c0_0 = arith.constant 0 : index
    %c0_1 = arith.constant 0 : index
    %0 = vector.load %arg1[%c0, %c0_0, %c0_1] : memref<8x8x128xf32, #tpu.memory_space<vmem>>, vector<8x8x128xf32>
    %cst = arith.constant 0.000000e+00 : bf16
    %1 = vector.broadcast %cst : bf16 to vector<8x2x128xbf16>
    %c0_2 = arith.constant 0 : index
    %c0_3 = arith.constant 0 : index
    %c0_4 = arith.constant 0 : index
    %2 = vector.load %arg10[%c0_2, %c0_3, %c0_4] : memref<8x12x128xbf16, #tpu.memory_space<vmem>>, vector<8x2x128xbf16>
    tpu.vector_store %arg10[%c0_2, %c0_3, %c0_4], %1 {strides = array<i32>} : memref<8x12x128xbf16, #tpu.memory_space<vmem>>, vector<8x2x128xbf16>,
    %cst_5 = arith.constant 0.000000e+00 : bf16
    %3 = vector.broadcast %cst_5 : bf16 to vector<8x2x128xbf16>
    %c0_6 = arith.constant 0 : index
    %c10 = arith.constant 10 : index
    %c0_7 = arith.constant 0 : index
    %4 = vector.load %arg10[%c0_6, %c10, %c0_7] : memref<8x12x128xbf16, #tpu.memory_space<vmem>>, vector<8x2x128xbf16>
    tpu.vector_store %arg10[%c0_6, %c10, %c0_7], %3 {strides = array<i32>} : memref<8x12x128xbf16, #tpu.memory_space<vmem>>, vector<8x2x128xbf16>,
    %5 = arith.truncf %0 : vector<8x8x128xf32> to vector<8x8x128xbf16>
    %c0_8 = arith.constant 0 : index
    %c2 = arith.constant 2 : index
    %c0_9 = arith.constant 0 : index
    %6 = vector.load %arg10[%c0_8, %c2, %c0_9] : memref<8x12x128xbf16, #tpu.memory_space<vmem>>, vector<8x8x128xbf16>
    tpu.vector_store %arg10[%c0_8, %c2, %c0_9], %5 {strides = array<i32>} : memref<8x12x128xbf16, #tpu.memory_space<vmem>>, vector<8x8x128xbf16>,
    %cst_10 = arith.constant 0.000000e+00 : bf16
    %7 = vector.broadcast %cst_10 : bf16 to vector<8x2x128xbf16>
    %c0_11 = arith.constant 0 : index
    %c0_12 = arith.constant 0 : index
    %c0_13 = arith.constant 0 : index
    %8 = vector.load %arg11[%c0_11, %c0_12, %c0_13] : memref<8x12x128xbf16, #tpu.memory_space<vmem>>, vector<8x2x128xbf16>
    tpu.vector_store %arg11[%c0_11, %c0_12, %c0_13], %7 {strides = array<i32>} : memref<8x12x128xbf16, #tpu.memory_space<vmem>>, vector<8x2x128xbf16>,
    %cst_14 = arith.constant 0.000000e+00 : bf16
    %9 = vector.broadcast %cst_14 : bf16 to vector<8x2x128xbf16>
    %c0_15 = arith.constant 0 : index
    %c10_16 = arith.constant 10 : index
    %c0_17 = arith.constant 0 : index
    %10 = vector.load %arg11[%c0_15, %c10_16, %c0_17] : memref<8x12x128xbf16, #tpu.memory_space<vmem>>, vector<8x2x128xbf16>
    tpu.vector_store %arg11[%c0_15, %c10_16, %c0_17], %9 {strides = array<i32>} : memref<8x12x128xbf16, #tpu.memory_space<vmem>>, vector<8x2x128xbf16>,
    %c0_18 = arith.constant 0 : index
    %c0_19 = arith.constant 0 : index
    %c0_20 = arith.constant 0 : index
    %11 = vector.load %arg2[%c0_18, %c0_19, %c0_20] : memref<8x8x128xbf16, #tpu.memory_space<vmem>>, vector<8x8x128xbf16>
    %c0_21 = arith.constant 0 : index
    %c2_22 = arith.constant 2 : index
    %c0_23 = arith.constant 0 : index
    %12 = vector.load %arg11[%c0_21, %c2_22, %c0_23] : memref<8x12x128xbf16, #tpu.memory_space<vmem>>, vector<8x8x128xbf16>
    tpu.vector_store %arg11[%c0_21, %c2_22, %c0_23], %11 {strides = array<i32>} : memref<8x12x128xbf16, #tpu.memory_space<vmem>>, vector<8x8x128xbf16>,
    %c0_24 = arith.constant 0 : index
    %c0_25 = arith.constant 0 : index
    %c0_26 = arith.constant 0 : index
    %13 = vector.load %arg11[%c0_24, %c0_25, %c0_26] : memref<8x12x128xbf16, #tpu.memory_space<vmem>>, vector<8x12x128xbf16>
    %14 = vector.extract_strided_slice %13 {offsets = [0, 0, 0], sizes = [8, 8, 128], strides = [1, 1, 1]} : vector<8x12x128xbf16> to vector<8x8x128xbf16>
    %15 = vector.extract_strided_slice %13 {offsets = [0, 1, 0], sizes = [8, 8, 128], strides = [1, 1, 1]} : vector<8x12x128xbf16> to vector<8x8x128xbf16>
    %16 = vector.extract_strided_slice %13 {offsets = [0, 2, 0], sizes = [8, 8, 128], strides = [1, 1, 1]} : vector<8x12x128xbf16> to vector<8x8x128xbf16>
    %17 = vector.extract_strided_slice %13 {offsets = [0, 3, 0], sizes = [8, 8, 128], strides = [1, 1, 1]} : vector<8x12x128xbf16> to vector<8x8x128xbf16>
    %18 = vector.extract_strided_slice %13 {offsets = [0, 4, 0], sizes = [8, 8, 128], strides = [1, 1, 1]} : vector<8x12x128xbf16> to vector<8x8x128xbf16>
    %19 = tpu.concatenate %14, %15, %16, %17, %18 in 2 : vector<8x8x128xbf16>, vector<8x8x128xbf16>, vector<8x8x128xbf16>, vector<8x8x128xbf16>, vector<8x8x128xbf16> -> vector<8x8x640xbf16>
    %20 = vector.shape_cast %19 : vector<8x8x640xbf16> to vector<64x640xbf16>
    %c0_27 = arith.constant 0 : index
    %c0_28 = arith.constant 0 : index
    %c0_29 = arith.constant 0 : index
    %21 = vector.load %arg10[%c0_27, %c0_28, %c0_29] : memref<8x12x128xbf16, #tpu.memory_space<vmem>>, vector<8x12x128xbf16>
    %22 = vector.extract_strided_slice %21 {offsets = [0, 0, 0], sizes = [8, 8, 128], strides = [1, 1, 1]} : vector<8x12x128xbf16> to vector<8x8x128xbf16>
    %23 = vector.extract_strided_slice %21 {offsets = [0, 1, 0], sizes = [8, 8, 128], strides = [1, 1, 1]} : vector<8x12x128xbf16> to vector<8x8x128xbf16>
    %24 = vector.extract_strided_slice %21 {offsets = [0, 2, 0], sizes = [8, 8, 128], strides = [1, 1, 1]} : vector<8x12x128xbf16> to vector<8x8x128xbf16>
    %25 = vector.extract_strided_slice %21 {offsets = [0, 3, 0], sizes = [8, 8, 128], strides = [1, 1, 1]} : vector<8x12x128xbf16> to vector<8x8x128xbf16>
    %26 = vector.extract_strided_slice %21 {offsets = [0, 4, 0], sizes = [8, 8, 128], strides = [1, 1, 1]} : vector<8x12x128xbf16> to vector<8x8x128xbf16>
    %27 = tpu.concatenate %22, %23, %24, %25, %26 in 2 : vector<8x8x128xbf16>, vector<8x8x128xbf16>, vector<8x8x128xbf16>, vector<8x8x128xbf16>, vector<8x8x128xbf16> -> vector<8x8x640xbf16>
    %28 = vector.shape_cast %27 : vector<8x8x640xbf16> to vector<64x640xbf16>
    %c0_30 = arith.constant 0 : index
    %c0_31 = arith.constant 0 : index
    %29 = vector.load %arg3[%c0_30, %c0_31] : memref<640x256xbf16, #tpu.memory_space<vmem>>, vector<640x256xbf16>
    %cst_32 = arith.constant dense<0.000000e+00> : vector<64x256xf32>
    %30 = tpu.matmul %28, %29, %cst_32 {dimension_numbers = #tpu.dot_dimension_numbers<[1], [0], [0], [1], [0, 0, 1, 1], [], []>} : vector<64x640xbf16>, vector<640x256xbf16>, vector<64x256xf32> -> vector<64x256xf32>
    %c0_33 = arith.constant 0 : index
    %c0_34 = arith.constant 0 : index
    %31 = vector.load %arg4[%c0_33, %c0_34] : memref<640x256xbf16, #tpu.memory_space<vmem>>, vector<640x256xbf16>
    %cst_35 = arith.constant dense<0.000000e+00> : vector<64x256xf32>
    %32 = tpu.matmul %20, %31, %cst_35 {dimension_numbers = #tpu.dot_dimension_numbers<[1], [0], [0], [1], [0, 0, 1, 1], [], []>} : vector<64x640xbf16>, vector<640x256xbf16>, vector<64x256xf32> -> vector<64x256xf32>
    %33 = arith.addf %30, %32 : vector<64x256xf32>
    %c0_36 = arith.constant 0 : index
    %c0_37 = arith.constant 0 : index
    %34 = vector.load %arg7[%c0_36, %c0_37] : memref<1x256xf32, #tpu.memory_space<vmem>>, vector<1x256xf32>
    %35 = vector.broadcast %34 : vector<1x256xf32> to vector<64x256xf32>
    %36 = arith.addf %33, %35 : vector<64x256xf32>
    %37 = vector.extract_strided_slice %36 {offsets = [0, 0], sizes = [64, 128], strides = [1, 1]} : vector<64x256xf32> to vector<64x128xf32>
    %38 = arith.negf %37 : vector<64x128xf32>
    %39 = math.exp %38 : vector<64x128xf32>
    %cst_38 = arith.constant 1.000000e+00 : f32
    %40 = vector.broadcast %cst_38 : f32 to vector<64x128xf32>
    %41 = arith.addf %40, %39 : vector<64x128xf32>
    %42 = arith.divf %40, %41 : vector<64x128xf32>
    %43 = vector.extract_strided_slice %36 {offsets = [0, 128], sizes = [64, 128], strides = [1, 1]} : vector<64x256xf32> to vector<64x128xf32>
    %44 = arith.negf %43 : vector<64x128xf32>
    %45 = math.exp %44 : vector<64x128xf32>
    %cst_39 = arith.constant 1.000000e+00 : f32
    %46 = vector.broadcast %cst_39 : f32 to vector<64x128xf32>
    %47 = arith.addf %46, %45 : vector<64x128xf32>
    %48 = arith.divf %46, %47 : vector<64x128xf32>
    %49 = vector.shape_cast %0 : vector<8x8x128xf32> to vector<64x128xf32>
    %50 = arith.mulf %48, %49 : vector<64x128xf32>
    %51 = arith.truncf %50 : vector<64x128xf32> to vector<64x128xbf16>
    %52 = vector.shape_cast %51 : vector<64x128xbf16> to vector<8x8x128xbf16>
    %c0_40 = arith.constant 0 : index
    %c2_41 = arith.constant 2 : index
    %c0_42 = arith.constant 0 : index
    %53 = vector.load %arg10[%c0_40, %c2_41, %c0_42] : memref<8x12x128xbf16, #tpu.memory_space<vmem>>, vector<8x8x128xbf16>
    tpu.vector_store %arg10[%c0_40, %c2_41, %c0_42], %52 {strides = array<i32>} : memref<8x12x128xbf16, #tpu.memory_space<vmem>>, vector<8x8x128xbf16>,
    %c0_43 = arith.constant 0 : index
    %c0_44 = arith.constant 0 : index
    %c0_45 = arith.constant 0 : index
    %54 = vector.load %arg10[%c0_43, %c0_44, %c0_45] : memref<8x12x128xbf16, #tpu.memory_space<vmem>>, vector<8x12x128xbf16>
    %55 = vector.extract_strided_slice %54 {offsets = [0, 0, 0], sizes = [8, 8, 128], strides = [1, 1, 1]} : vector<8x12x128xbf16> to vector<8x8x128xbf16>
    %56 = vector.extract_strided_slice %54 {offsets = [0, 1, 0], sizes = [8, 8, 128], strides = [1, 1, 1]} : vector<8x12x128xbf16> to vector<8x8x128xbf16>
    %57 = vector.extract_strided_slice %54 {offsets = [0, 2, 0], sizes = [8, 8, 128], strides = [1, 1, 1]} : vector<8x12x128xbf16> to vector<8x8x128xbf16>
    %58 = vector.extract_strided_slice %54 {offsets = [0, 3, 0], sizes = [8, 8, 128], strides = [1, 1, 1]} : vector<8x12x128xbf16> to vector<8x8x128xbf16>
    %59 = vector.extract_strided_slice %54 {offsets = [0, 4, 0], sizes = [8, 8, 128], strides = [1, 1, 1]} : vector<8x12x128xbf16> to vector<8x8x128xbf16>
    %60 = tpu.concatenate %55, %56, %57, %58, %59 in 2 : vector<8x8x128xbf16>, vector<8x8x128xbf16>, vector<8x8x128xbf16>, vector<8x8x128xbf16>, vector<8x8x128xbf16> -> vector<8x8x640xbf16>
    %61 = vector.shape_cast %60 : vector<8x8x640xbf16> to vector<64x640xbf16>
    %c0_46 = arith.constant 0 : index
    %c0_47 = arith.constant 0 : index
    %62 = vector.load %arg5[%c0_46, %c0_47] : memref<640x128xbf16, #tpu.memory_space<vmem>>, vector<640x128xbf16>
    %cst_48 = arith.constant dense<0.000000e+00> : vector<64x128xf32>
    %63 = tpu.matmul %61, %62, %cst_48 {dimension_numbers = #tpu.dot_dimension_numbers<[1], [0], [0], [1], [0, 0, 1, 1], [], []>} : vector<64x640xbf16>, vector<640x128xbf16>, vector<64x128xf32> -> vector<64x128xf32>
    %c0_49 = arith.constant 0 : index
    %c0_50 = arith.constant 0 : index
    %64 = vector.load %arg6[%c0_49, %c0_50] : memref<640x128xbf16, #tpu.memory_space<vmem>>, vector<640x128xbf16>
    %cst_51 = arith.constant dense<0.000000e+00> : vector<64x128xf32>
    %65 = tpu.matmul %20, %64, %cst_51 {dimension_numbers = #tpu.dot_dimension_numbers<[1], [0], [0], [1], [0, 0, 1, 1], [], []>} : vector<64x640xbf16>, vector<640x128xbf16>, vector<64x128xf32> -> vector<64x128xf32>
    %66 = arith.addf %63, %65 : vector<64x128xf32>
    %c0_52 = arith.constant 0 : index
    %c0_53 = arith.constant 0 : index
    %67 = vector.load %arg8[%c0_52, %c0_53] : memref<1x128xf32, #tpu.memory_space<vmem>>, vector<1x128xf32>
    %68 = vector.broadcast %67 : vector<1x128xf32> to vector<64x128xf32>
    %69 = arith.addf %66, %68 : vector<64x128xf32>
    %70 = math.tanh %69 : vector<64x128xf32>
    %cst_54 = arith.constant 1.000000e+00 : f32
    %71 = vector.broadcast %cst_54 : f32 to vector<64x128xf32>
    %72 = arith.subf %71, %42 : vector<64x128xf32>
    %73 = arith.mulf %72, %49 : vector<64x128xf32>
    %74 = arith.mulf %42, %70 : vector<64x128xf32>
    %75 = arith.addf %73, %74 : vector<64x128xf32>
    %76 = vector.shape_cast %75 : vector<64x128xf32> to vector<8x8x128xf32>
    %c0_55 = arith.constant 0 : index
    %c0_56 = arith.constant 0 : index
    %c0_57 = arith.constant 0 : index
    %77 = vector.load %arg9[%c0_55, %c0_56, %c0_57] : memref<8x8x128xf32, #tpu.memory_space<vmem>>, vector<8x8x128xf32>
    tpu.vector_store %arg9[%c0_55, %c0_56, %c0_57], %76 {strides = array<i32>} : memref<8x8x128xf32, #tpu.memory_space<vmem>>, vector<8x8x128xf32>,
    return
  }
  func.func @transform_0(%arg0: i32) -> (i32, i32, i32) {
    %c0_i32 = arith.constant 0 : i32
    %c0_i32_0 = arith.constant 0 : i32
    %c0_i32_1 = arith.constant 0 : i32
    return %arg0, %c0_i32, %c0_i32_0 : i32, i32, i32
  }
  func.func @transform_1(%arg0: i32) -> (i32, i32, i32) {
    %c0_i32 = arith.constant 0 : i32
    %c0_i32_0 = arith.constant 0 : i32
    %c0_i32_1 = arith.constant 0 : i32
    return %arg0, %c0_i32, %c0_i32_0 : i32, i32, i32
  }
  func.func @transform_2(%arg0: i32) -> (i32, i32) {
    %c0_i32 = arith.constant 0 : i32
    %c0_i32_0 = arith.constant 0 : i32
    %c0_i32_1 = arith.constant 0 : i32
    return %c0_i32, %c0_i32_0 : i32, i32
  }
  func.func @transform_3(%arg0: i32) -> (i32, i32) {
    %c0_i32 = arith.constant 0 : i32
    %c0_i32_0 = arith.constant 0 : i32
    %c0_i32_1 = arith.constant 0 : i32
    return %c0_i32, %c0_i32_0 : i32, i32
  }
  func.func @transform_4(%arg0: i32) -> (i32, i32) {
    %c0_i32 = arith.constant 0 : i32
    %c0_i32_0 = arith.constant 0 : i32
    %c0_i32_1 = arith.constant 0 : i32
    return %c0_i32, %c0_i32_0 : i32, i32
  }
  func.func @transform_5(%arg0: i32) -> (i32, i32) {
    %c0_i32 = arith.constant 0 : i32
    %c0_i32_0 = arith.constant 0 : i32
    %c0_i32_1 = arith.constant 0 : i32
    return %c0_i32, %c0_i32_0 : i32, i32
  }
  func.func @transform_6(%arg0: i32) -> (i32, i32) {
    %c0_i32 = arith.constant 0 : i32
    %c0_i32_0 = arith.constant 0 : i32
    %c0_i32_1 = arith.constant 0 : i32
    return %c0_i32, %c0_i32_0 : i32, i32
  }
  func.func @transform_7(%arg0: i32) -> (i32, i32) {
    %c0_i32 = arith.constant 0 : i32
    %c0_i32_0 = arith.constant 0 : i32
    %c0_i32_1 = arith.constant 0 : i32
    return %c0_i32, %c0_i32_0 : i32, i32
  }
  func.func @transform_8(%arg0: i32) -> (i32, i32, i32) {
    %c0_i32 = arith.constant 0 : i32
    %c0_i32_0 = arith.constant 0 : i32
    %c0_i32_1 = arith.constant 0 : i32
    return %arg0, %c0_i32, %c0_i32_0 : i32, i32, i32
  }
}

</mosaic_0001>

<llo_original>
// kernel: sep_conv_gru.2
$region0: #{sep_conv_gru.2}
  #allocation0 [shape = 'u32[]', space=smem, size = 0x4, offset = 0x4, fixed_abs, tag = 'smem constant byte address 0x4 - core index']
  #allocation1 [shape = 'u32[72,128]{1,0:T(1,128)}', space=vmem, size = 0x9000, scoped, tag = 'internal scratch']
  #allocation2 [shape = 'bf16[8,12,128]{2,1,0:T(8,128)(2,1)}', space=vmem, size = 0x8000, scoped, tag = 'scratch operand']
  #allocation3 [shape = 'bf16[8,12,128]{2,1,0:T(8,128)(2,1)}', space=vmem, size = 0x8000, scoped, tag = 'scratch operand']
  %s0 = inlined_call_operand.vmem [shape: f32[16,8,128], index: 0, kind: input, shape index: {}]
  %s1 = inlined_call_operand.vmem [shape: bf16[16,8,128], index: 1, kind: input, shape index: {}]
  %s2 = inlined_call_operand.vmem [shape: bf16[640,256], index: 2, kind: input, shape index: {}]
  %s3 = inlined_call_operand.vmem [shape: bf16[640,256], index: 3, kind: input, shape index: {}]
  %s4 = inlined_call_operand.vmem [shape: bf16[640,128], index: 4, kind: input, shape index: {}]
  %s5 = inlined_call_operand.vmem [shape: bf16[640,128], index: 5, kind: input, shape index: {}]
  %s6 = inlined_call_operand.vmem [shape: f32[1,256], index: 6, kind: input, shape index: {}]
  %s7 = inlined_call_operand.vmem [shape: f32[1,128], index: 7, kind: input, shape index: {}]
  %s8 = inlined_call_operand.vmem [shape: f32[16,8,128], index: 8, kind: output, shape index: {}]
  %s9 = sld [smem:[#allocation0]]
  $region65: #{sep_conv_gru.2} parent=0
    _
  %s11 = ssub.s32 1, %s9
  %s12 = scalar_select 0, %s11, %s9
  loop: start=0, step=1, limit=4
  $region2: #{sep_conv_gru.2} parent=0 // loop_pre_header
    _
  $region3: #{sep_conv_gru.2} parent=0 // loop_header
    %s14 = sphi 0, %s18
    %p15 = scmp.ge.s32.totalorder %s14, 4
    %s24 = sphi 0, %s26
    %s27 = sphi 0, %s24
    %s28 = sphi 0, %s27
    %s44 = sphi 0, %s28
    %s50 = sphi 0, %s52
    %s53 = sphi 0, %s50
    %s54 = sphi 0, %s53
    %s70 = sphi 0, %s54
    %s74 = sphi 0, %s74
    %s76 = sphi 0, %s74
    %s77 = sphi 0, %s76
    %s91 = sphi 0, %s77
    %s95 = sphi 0, %s95
    %s97 = sphi 0, %s95
    %s98 = sphi 0, %s97
    %s112 = sphi 0, %s98
    %s116 = sphi 0, %s116
    %s118 = sphi 0, %s116
    %s119 = sphi 0, %s118
    %s133 = sphi 0, %s119
    %s137 = sphi 0, %s137
    %s139 = sphi 0, %s137
    %s140 = sphi 0, %s139
    %s154 = sphi 0, %s140
    %s158 = sphi 0, %s158
    %s160 = sphi 0, %s158
    %s161 = sphi 0, %s160
    %s175 = sphi 0, %s161
    %s179 = sphi 0, %s179
    %s181 = sphi 0, %s179
    %s182 = sphi 0, %s181
    %s196 = sphi 0, %s182
    %s202 = sphi 0, %s204
    %s205 = sphi 0, %s202
    %s206 = sphi 0, %s205
    %s222 = sphi 0, %s206
  $region4: #{sep_conv_gru.2} parent=0 // loop_header_branch
    %17 = sbr.rel (%p15) target = $region8
  $region5: #{sep_conv_gru.2} parent=0 // loop_body
    %s19 = ssub.s32 %s14, 1
    %s20 = ssub.s32 %s14, 2
    %s21 = sadd.s32 %s14, 1
    %s22 = ssub.s32 %s14, %s21
    %p23 = scmp.eq.s32.totalorder %s22, 0
    %s25 = sadd.s32 %s24, 1
    %s26 = scalar_select %p23, %s24, %s25
    %p29 = pneg %p23
    %p30 = scmp.eq.s32.totalorder %s14, 1
    %p31 = por %p29, %p30
    %p32 = scmp.ne.s32.totalorder %s24, %s27
    %p33 = scmp.eq.s32.totalorder %s14, 0
    %p34 = por %p32, %p33
    %p35 = scmp.ne.s32.totalorder %s24, %s27
    %p36 = scmp.eq.s32.totalorder %s19, 1
    %p37 = por %p35, %p36
    %p38 = scmp.ne.s32.totalorder %s27, %s28
    %p39 = scmp.eq.s32.totalorder %s19, 0
    %p40 = por %p38, %p39
    %p41 = scmp.ne.s32.totalorder %s27, %s28
    %p42 = scmp.eq.s32.totalorder %s20, 1
    %p43 = por %p41, %p42
    %p45 = scmp.ne.s32.totalorder %s28, %s44
    %p46 = scmp.eq.s32.totalorder %s20, 0
    %p47 = por %p45, %p46
    %s48 = ssub.s32 %s14, %s21
    %p49 = scmp.eq.s32.totalorder %s48, 0
    %s51 = sadd.s32 %s50, 1
    %s52 = scalar_select %p49, %s50, %s51
    %p55 = pneg %p49
    %p56 = scmp.eq.s32.totalorder %s14, 1
    %p57 = por %p55, %p56
    %p58 = scmp.ne.s32.totalorder %s50, %s53
    %p59 = scmp.eq.s32.totalorder %s14, 0
    %p60 = por %p58, %p59
    %p61 = scmp.ne.s32.totalorder %s50, %s53
    %p62 = scmp.eq.s32.totalorder %s19, 1
    %p63 = por %p61, %p62
    %p64 = scmp.ne.s32.totalorder %s53, %s54
    %p65 = scmp.eq.s32.totalorder %s19, 0
    %p66 = por %p64, %p65
    %p67 = scmp.ne.s32.totalorder %s53, %s54
    %p68 = scmp.eq.s32.totalorder %s20, 1
    %p69 = por %p67, %p68
    %p71 = scmp.ne.s32.totalorder %s54, %s70
    %p72 = scmp.eq.s32.totalorder %s20, 0
    %p73 = por %p71, %p72
    %s75 = sadd.s32 %s74, 1
    %p78 = scmp.eq.s32.totalorder %s14, 1
    %p79 = scmp.ne.s32.totalorder %s74, %s76
    %p80 = scmp.eq.s32.totalorder %s14, 0
    %p81 = por %p79, %p80
    %p82 = scmp.ne.s32.totalorder %s74, %s76
    %p83 = scmp.eq.s32.totalorder %s19, 1
    %p84 = por %p82, %p83
    %p85 = scmp.ne.s32.totalorder %s76, %s77
    %p86 = scmp.eq.s32.totalorder %s19, 0
    %p87 = por %p85, %p86
    %p88 = scmp.ne.s32.totalorder %s76, %s77
    %p89 = scmp.eq.s32.totalorder %s20, 1
    %p90 = por %p88, %p89
    %p92 = scmp.ne.s32.totalorder %s77, %s91
    %p93 = scmp.eq.s32.totalorder %s20, 0
    %p94 = por %p92, %p93
    %s96 = sadd.s32 %s95, 1
    %p99 = scmp.eq.s32.totalorder %s14, 1
    %p100 = scmp.ne.s32.totalorder %s95, %s97
    %p101 = scmp.eq.s32.totalorder %s14, 0
    %p102 = por %p100, %p101
    %p103 = scmp.ne.s32.totalorder %s95, %s97
    %p104 = scmp.eq.s32.totalorder %s19, 1
    %p105 = por %p103, %p104
    %p106 = scmp.ne.s32.totalorder %s97, %s98
    %p107 = scmp.eq.s32.totalorder %s19, 0
    %p108 = por %p106, %p107
    %p109 = scmp.ne.s32.totalorder %s97, %s98
    %p110 = scmp.eq.s32.totalorder %s20, 1
    %p111 = por %p109, %p110
    %p113 = scmp.ne.s32.totalorder %s98, %s112
    %p114 = scmp.eq.s32.totalorder %s20, 0
    %p115 = por %p113, %p114
    %s117 = sadd.s32 %s116, 1
    %p120 = scmp.eq.s32.totalorder %s14, 1
    %p121 = scmp.ne.s32.totalorder %s116, %s118
    %p122 = scmp.eq.s32.totalorder %s14, 0
    %p123 = por %p121, %p122
    %p124 = scmp.ne.s32.totalorder %s116, %s118
    %p125 = scmp.eq.s32.totalorder %s19, 1
    %p126 = por %p124, %p125
    %p127 = scmp.ne.s32.totalorder %s118, %s119
    %p128 = scmp.eq.s32.totalorder %s19, 0
    %p129 = por %p127, %p128
    %p130 = scmp.ne.s32.totalorder %s118, %s119
    %p131 = scmp.eq.s32.totalorder %s20, 1
    %p132 = por %p130, %p131
    %p134 = scmp.ne.s32.totalorder %s119, %s133
    %p135 = scmp.eq.s32.totalorder %s20, 0
    %p136 = por %p134, %p135
    %s138 = sadd.s32 %s137, 1
    %p141 = scmp.eq.s32.totalorder %s14, 1
    %p142 = scmp.ne.s32.totalorder %s137, %s139
    %p143 = scmp.eq.s32.totalorder %s14, 0
    %p144 = por %p142, %p143
    %p145 = scmp.ne.s32.totalorder %s137, %s139
    %p146 = scmp.eq.s32.totalorder %s19, 1
    %p147 = por %p145, %p146
    %p148 = scmp.ne.s32.totalorder %s139, %s140
    %p149 = scmp.eq.s32.totalorder %s19, 0
    %p150 = por %p148, %p149
    %p151 = scmp.ne.s32.totalorder %s139, %s140
    %p152 = scmp.eq.s32.totalorder %s20, 1
    %p153 = por %p151, %p152
    %p155 = scmp.ne.s32.totalorder %s140, %s154
    %p156 = scmp.eq.s32.totalorder %s20, 0
    %p157 = por %p155, %p156
    %s159 = sadd.s32 %s158, 1
    %p162 = scmp.eq.s32.totalorder %s14, 1
    %p163 = scmp.ne.s32.totalorder %s158, %s160
    %p164 = scmp.eq.s32.totalorder %s14, 0
    %p165 = por %p163, %p164
    %p166 = scmp.ne.s32.totalorder %s158, %s160
    %p167 = scmp.eq.s32.totalorder %s19, 1
    %p168 = por %p166, %p167
    %p169 = scmp.ne.s32.totalorder %s160, %s161
    %p170 = scmp.eq.s32.totalorder %s19, 0
    %p171 = por %p169, %p170
    %p172 = scmp.ne.s32.totalorder %s160, %s161
    %p173 = scmp.eq.s32.totalorder %s20, 1
    %p174 = por %p172, %p173
    %p176 = scmp.ne.s32.totalorder %s161, %s175
    %p177 = scmp.eq.s32.totalorder %s20, 0
    %p178 = por %p176, %p177
    %s180 = sadd.s32 %s179, 1
    %p183 = scmp.eq.s32.totalorder %s14, 1
    %p184 = scmp.ne.s32.totalorder %s179, %s181
    %p185 = scmp.eq.s32.totalorder %s14, 0
    %p186 = por %p184, %p185
    %p187 = scmp.ne.s32.totalorder %s179, %s181
    %p188 = scmp.eq.s32.totalorder %s19, 1
    %p189 = por %p187, %p188
    %p190 = scmp.ne.s32.totalorder %s181, %s182
    %p191 = scmp.eq.s32.totalorder %s19, 0
    %p192 = por %p190, %p191
    %p193 = scmp.ne.s32.totalorder %s181, %s182
    %p194 = scmp.eq.s32.totalorder %s20, 1
    %p195 = por %p193, %p194
    %p197 = scmp.ne.s32.totalorder %s182, %s196
    %p198 = scmp.eq.s32.totalorder %s20, 0
    %p199 = por %p197, %p198
    %s200 = ssub.s32 %s14, %s21
    %p201 = scmp.eq.s32.totalorder %s200, 0
    %s203 = sadd.s32 %s202, 1
    %s204 = scalar_select %p201, %s202, %s203
    %p207 = pneg %p201
    %p208 = scmp.eq.s32.totalorder %s14, 1
    %p209 = por %p207, %p208
    %p210 = scmp.ne.s32.totalorder %s202, %s205
    %p211 = scmp.eq.s32.totalorder %s14, 0
    %p212 = por %p210, %p211
    %p213 = scmp.ne.s32.totalorder %s202, %s205
    %p214 = scmp.eq.s32.totalorder %s19, 1
    %p215 = por %p213, %p214
    %p216 = scmp.ne.s32.totalorder %s205, %s206
    %p217 = scmp.eq.s32.totalorder %s19, 0
    %p218 = por %p216, %p217
    %p219 = scmp.ne.s32.totalorder %s205, %s206
    %p220 = scmp.eq.s32.totalorder %s20, 1
    %p221 = por %p219, %p220
    %p223 = scmp.ne.s32.totalorder %s206, %s222
    %p224 = scmp.eq.s32.totalorder %s20, 0
    %p225 = por %p223, %p224
    %p226 = scmp.le.s32.totalorder 1, %s14
    %p227 = scmp.lt.s32.totalorder %s14, 3
    %p228 = pnand %p226, %p227
    %p229 = pneg %p228
    // Predicated region
    $region9: #{sep_conv_gru.2} parent=5 // pred_check
      _
    $region10: #{sep_conv_gru.2} parent=5 // pred_check_branch
      %231 = sbr.rel (%p228) target = $region12
    $region11: #{sep_conv_gru.2} parent=5 // pred_region
      %s232 = ssub.s32 %s14, 1
      // Predicated region
      $region13: #{sep_conv_gru.2} parent=11 // pred_check
        %p233 = pneg %p87
      $region14: #{sep_conv_gru.2} parent=11 // pred_check_branch
        %235 = sbr.rel (%p233) target = $region16
      $region15: #{sep_conv_gru.2} parent=11 // pred_region
        _
      $region16: #{sep_conv_gru.2} parent=11 // pred_fallthru
        _
      // Predicated region
      $region17: #{sep_conv_gru.2} parent=11 // pred_check
        %p236 = pneg %p108
      $region18: #{sep_conv_gru.2} parent=11 // pred_check_branch
        %238 = sbr.rel (%p236) target = $region20
      $region19: #{sep_conv_gru.2} parent=11 // pred_region
        _
      $region20: #{sep_conv_gru.2} parent=11 // pred_fallthru
        _
      // Predicated region
      $region21: #{sep_conv_gru.2} parent=11 // pred_check
        %p239 = pneg %p129
      $region22: #{sep_conv_gru.2} parent=11 // pred_check_branch
        %241 = sbr.rel (%p239) target = $region24
      $region23: #{sep_conv_gru.2} parent=11 // pred_region
        _
      $region24: #{sep_conv_gru.2} parent=11 // pred_fallthru
        _
      // Predicated region
      $region25: #{sep_conv_gru.2} parent=11 // pred_check
        %p242 = pneg %p150
      $region26: #{sep_conv_gru.2} parent=11 // pred_check_branch
        %244 = sbr.rel (%p242) target = $region28
      $region27: #{sep_conv_gru.2} parent=11 // pred_region
        _
      $region28: #{sep_conv_gru.2} parent=11 // pred_fallthru
        _
      // Predicated region
      $region29: #{sep_conv_gru.2} parent=11 // pred_check
        %p245 = pneg %p171
      $region30: #{sep_conv_gru.2} parent=11 // pred_check_branch
        %247 = sbr.rel (%p245) target = $region32
      $region31: #{sep_conv_gru.2} parent=11 // pred_region
        _
      $region32: #{sep_conv_gru.2} parent=11 // pred_fallthru
        _
      // Predicated region
      $region33: #{sep_conv_gru.2} parent=11 // pred_check
        %p248 = pneg %p192
      $region34: #{sep_conv_gru.2} parent=11 // pred_check_branch
        %250 = sbr.rel (%p248) target = $region36
      $region35: #{sep_conv_gru.2} parent=11 // pred_region
        _
      $region36: #{sep_conv_gru.2} parent=11 // pred_fallthru
        _
    $region12: #{sep_conv_gru.2} parent=5 // pred_fallthru
      _
    %p251 = scmp.lt.s32.totalorder %s14, 2
    // Predicated region
    $region37: #{sep_conv_gru.2} parent=5 // pred_check
      %p252 = pneg %p251
    $region38: #{sep_conv_gru.2} parent=5 // pred_check_branch
      %254 = sbr.rel (%p252) target = $region40
    $region39: #{sep_conv_gru.2} parent=5 // pred_region
      // Predicated region
      $region41: #{sep_conv_gru.2} parent=39 // pred_check
        %p255 = pneg %p34
      $region42: #{sep_conv_gru.2} parent=39 // pred_check_branch
        %257 = sbr.rel (%p255) target = $region44
      $region43: #{sep_conv_gru.2} parent=39 // pred_region
        %s258 = smul.u32 8, %s14
        %p259 = scmp.lt.s32.totalorder %s258, 15
        %s260 = scalar_select %p259, %s258, 15
        %s261 = smul.addr %s260, 8
        %s262 = scalar_lea.vmem %s0, %s261
        %s263 = smul.u32 8, %s14
      $region44: #{sep_conv_gru.2} parent=39 // pred_fallthru
        _
      // Predicated region
      $region45: #{sep_conv_gru.2} parent=39 // pred_check
        %p264 = pneg %p60
      $region46: #{sep_conv_gru.2} parent=39 // pred_check_branch
        %266 = sbr.rel (%p264) target = $region48
      $region47: #{sep_conv_gru.2} parent=39 // pred_region
        %s267 = smul.u32 8, %s14
        %p268 = scmp.lt.s32.totalorder %s267, 15
        %s269 = scalar_select %p268, %s267, 15
        %s270 = smul.addr %s269, 4
        %s271 = scalar_lea.vmem %s1, %s270
        %s272 = smul.u32 8, %s14
      $region48: #{sep_conv_gru.2} parent=39 // pred_fallthru
        _
    $region40: #{sep_conv_gru.2} parent=5 // pred_fallthru
      _
    %p273 = scmp.le.s32.totalorder 1, %s14
    %p274 = scmp.lt.s32.totalorder %s14, 3
    %p275 = pnand %p273, %p274
    %p276 = pneg %p275
    // Predicated region
    $region49: #{sep_conv_gru.2} parent=5 // pred_check
      _
    $region50: #{sep_conv_gru.2} parent=5 // pred_check_branch
      %278 = sbr.rel (%p275) target = $region52
    $region51: #{sep_conv_gru.2} parent=5 // pred_region
      %s279 = ssub.s32 %s14, 1
      %s280 = smul.u32 8, %s19
      %p281 = scmp.lt.s32.totalorder %s280, 15
      %s282 = scalar_select %p281, %s280, 15
      %s283 = smul.addr %s282, 8
      %s284 = scalar_lea.vmem %s0, %s283
      %p285 = pneg %p40
      %p286 = pneg %p37
      %s287 = smul.u32 8, %s19
      %p288 = scmp.lt.s32.totalorder %s287, 15
      %s289 = scalar_select %p288, %s287, 15
      %s290 = smul.addr %s289, 4
      %s291 = scalar_lea.vmem %s1, %s290
      %p292 = pneg %p66
      %p293 = pneg %p63
      %p294 = pneg %p87
      %p295 = pneg %p84
      %p296 = pneg %p108
      %p297 = pneg %p105
      %p298 = pneg %p129
      %p299 = pneg %p126
      %p300 = pneg %p150
      %p301 = pneg %p147
      %p302 = pneg %p171
      %p303 = pneg %p168
      %p304 = pneg %p192
      %p305 = pneg %p189
      %p306 = pneg %p218
      %p307 = pneg %p215
      %s308 = smul.u32 8, %s19
      %p309 = scmp.lt.s32.totalorder %s308, 15
      %s310 = scalar_select %p309, %s308, 15
      %s311 = smul.addr %s310, 8
      %s312 = scalar_lea.vmem %s8, %s311
      %s313 = smul.u32 8, %s19
      %p314 = scmp.lt.s32.totalorder %s313, 15
      %s315 = scalar_select %p314, %s313, 15
      %s316 = smul.addr %s315, 8
      %s317 = scalar_lea.vmem %s0, %s316
      %s318 = smul.u32 8, %s19
      %s319 = smul.u32 8, %s19
      %p320 = scmp.lt.s32.totalorder %s319, 15
      %s321 = scalar_select %p320, %s319, 15
      %s322 = smul.addr %s321, 4
      %s323 = scalar_lea.vmem %s1, %s322
      %s324 = smul.u32 8, %s19
      %s325 = smul.u32 8, %s19
      %p326 = scmp.lt.s32.totalorder %s325, 15
      %s327 = scalar_select %p326, %s325, 15
      %s328 = smul.addr %s327, 8
      %s329 = scalar_lea.vmem %s8, %s328
      %s330 = smul.u32 8, %s19
      %v332 = vld [vmem:[%s317] sm:$0xff]
      %v333 = vld [vmem:[%s317 + $0x8] sm:$0xff]
      %v334 = vld [vmem:[%s317 + $0x10] sm:$0xff]
      %v335 = vld [vmem:[%s317 + $0x18] sm:$0xff]
      %v336 = vld [vmem:[%s317 + $0x20] sm:$0xff]
      %v337 = vld [vmem:[%s317 + $0x28] sm:$0xff]
      %v338 = vld [vmem:[%s317 + $0x30] sm:$0xff]
      %v339 = vld [vmem:[%s317 + $0x38] sm:$0xff]
      %340 = vst [vmem:[#allocation2] sm:$0x1] 0
      %341 = vst [vmem:[#allocation2 + $0x8] sm:$0x1] 0
      %342 = vst [vmem:[#allocation2 + $0x10] sm:$0x1] 0
      %343 = vst [vmem:[#allocation2 + $0x18] sm:$0x1] 0
      %344 = vst [vmem:[#allocation2 + $0x20] sm:$0x1] 0
      %345 = vst [vmem:[#allocation2 + $0x28] sm:$0x1] 0
      %346 = vst [vmem:[#allocation2 + $0x30] sm:$0x1] 0
      %347 = vst [vmem:[#allocation2 + $0x38] sm:$0x1] 0
      %348 = vst [vmem:[#allocation2 + $0x4] sm:$0x2] 0
      %349 = vst [vmem:[#allocation2 + $0xc] sm:$0x2] 0
      %350 = vst [vmem:[#allocation2 + $0x14] sm:$0x2] 0
      %351 = vst [vmem:[#allocation2 + $0x1c] sm:$0x2] 0
      %352 = vst [vmem:[#allocation2 + $0x24] sm:$0x2] 0
      %353 = vst [vmem:[#allocation2 + $0x2c] sm:$0x2] 0
      %354 = vst [vmem:[#allocation2 + $0x34] sm:$0x2] 0
      %355 = vst [vmem:[#allocation2 + $0x3c] sm:$0x2] 0
      %v356 = vpack.c.bf16 %v332, %v332
      %v357 = vpack.c.bf16 %v333, %v333
      %v358 = vpack.c.bf16 %v334, %v334
      %v359 = vpack.c.bf16 %v335, %v335
      %v360 = vpack.c.bf16 %v336, %v336
      %v361 = vpack.c.bf16 %v337, %v337
      %v362 = vpack.c.bf16 %v338, %v338
      %v363 = vpack.c.bf16 %v339, %v339
      %v372 = vrot.slane %v356, 7
      %v373 = vrot.slane %v372, 4
      %v374 = vrot.slane %v357, 7
      %v375 = vrot.slane %v374, 4
      %v376 = vrot.slane %v358, 7
      %v377 = vrot.slane %v376, 4
      %v378 = vrot.slane %v359, 7
      %v379 = vrot.slane %v378, 4
      %v380 = vrot.slane %v360, 7
      %v381 = vrot.slane %v380, 4
      %v382 = vrot.slane %v361, 7
      %v383 = vrot.slane %v382, 4
      %v384 = vrot.slane %v362, 7
      %v385 = vrot.slane %v384, 4
      %v386 = vrot.slane %v363, 7
      %v387 = vrot.slane %v386, 4
      %404 = vst [vmem:[#allocation2] sm:$0xe] %v372
      %405 = vst [vmem:[#allocation2 + $0x4] sm:$0x1] %v373
      %406 = vst [vmem:[#allocation2 + $0x8] sm:$0xe] %v374
      %407 = vst [vmem:[#allocation2 + $0xc] sm:$0x1] %v375
      %408 = vst [vmem:[#allocation2 + $0x10] sm:$0xe] %v376
      %409 = vst [vmem:[#allocation2 + $0x14] sm:$0x1] %v377
      %410 = vst [vmem:[#allocation2 + $0x18] sm:$0xe] %v378
      %411 = vst [vmem:[#allocation2 + $0x1c] sm:$0x1] %v379
      %412 = vst [vmem:[#allocation2 + $0x20] sm:$0xe] %v380
      %413 = vst [vmem:[#allocation2 + $0x24] sm:$0x1] %v381
      %414 = vst [vmem:[#allocation2 + $0x28] sm:$0xe] %v382
      %415 = vst [vmem:[#allocation2 + $0x2c] sm:$0x1] %v383
      %416 = vst [vmem:[#allocation2 + $0x30] sm:$0xe] %v384
      %417 = vst [vmem:[#allocation2 + $0x34] sm:$0x1] %v385
      %418 = vst [vmem:[#allocation2 + $0x38] sm:$0xe] %v386
      %419 = vst [vmem:[#allocation2 + $0x3c] sm:$0x1] %v387
      %420 = vst [vmem:[#allocation3] sm:$0x1] 0
      %421 = vst [vmem:[#allocation3 + $0x8] sm:$0x1] 0
      %422 = vst [vmem:[#allocation3 + $0x10] sm:$0x1] 0
      %423 = vst [vmem:[#allocation3 + $0x18] sm:$0x1] 0
      %424 = vst [vmem:[#allocation3 + $0x20] sm:$0x1] 0
      %425 = vst [vmem:[#allocation3 + $0x28] sm:$0x1] 0
      %426 = vst [vmem:[#allocation3 + $0x30] sm:$0x1] 0
      %427 = vst [vmem:[#allocation3 + $0x38] sm:$0x1] 0
      %428 = vst [vmem:[#allocation3 + $0x4] sm:$0x2] 0
      %429 = vst [vmem:[#allocation3 + $0xc] sm:$0x2] 0
      %430 = vst [vmem:[#allocation3 + $0x14] sm:$0x2] 0
      %431 = vst [vmem:[#allocation3 + $0x1c] sm:$0x2] 0
      %432 = vst [vmem:[#allocation3 + $0x24] sm:$0x2] 0
      %433 = vst [vmem:[#allocation3 + $0x2c] sm:$0x2] 0
      %434 = vst [vmem:[#allocation3 + $0x34] sm:$0x2] 0
      %435 = vst [vmem:[#allocation3 + $0x3c] sm:$0x2] 0
      %v436 = vld [vmem:[%s323] sm:$0xf]
      %v437 = vld [vmem:[%s323 + $0x4] sm:$0xf]
      %v438 = vld [vmem:[%s323 + $0x8] sm:$0xf]
      %v439 = vld [vmem:[%s323 + $0xc] sm:$0xf]
      %v440 = vld [vmem:[%s323 + $0x10] sm:$0xf]
      %v441 = vld [vmem:[%s323 + $0x14] sm:$0xf]
      %v442 = vld [vmem:[%s323 + $0x18] sm:$0xf]
      %v443 = vld [vmem:[%s323 + $0x1c] sm:$0xf]
      %v452 = vrot.slane %v436, 7
      %v453 = vrot.slane %v452, 4
      %v454 = vrot.slane %v437, 7
      %v455 = vrot.slane %v454, 4
      %v456 = vrot.slane %v438, 7
      %v457 = vrot.slane %v456, 4
      %v458 = vrot.slane %v439, 7
      %v459 = vrot.slane %v458, 4
      %v460 = vrot.slane %v440, 7
      %v461 = vrot.slane %v460, 4
      %v462 = vrot.slane %v441, 7
      %v463 = vrot.slane %v462, 4
      %v464 = vrot.slane %v442, 7
      %v465 = vrot.slane %v464, 4
      %v466 = vrot.slane %v443, 7
      %v467 = vrot.slane %v466, 4
      %484 = vst [vmem:[#allocation3] sm:$0xe] %v452
      %485 = vst [vmem:[#allocation3 + $0x4] sm:$0x1] %v453
      %486 = vst [vmem:[#allocation3 + $0x8] sm:$0xe] %v454
      %487 = vst [vmem:[#allocation3 + $0xc] sm:$0x1] %v455
      %488 = vst [vmem:[#allocation3 + $0x10] sm:$0xe] %v456
      %489 = vst [vmem:[#allocation3 + $0x14] sm:$0x1] %v457
      %490 = vst [vmem:[#allocation3 + $0x18] sm:$0xe] %v458
      %491 = vst [vmem:[#allocation3 + $0x1c] sm:$0x1] %v459
      %492 = vst [vmem:[#allocation3 + $0x20] sm:$0xe] %v460
      %493 = vst [vmem:[#allocation3 + $0x24] sm:$0x1] %v461
      %494 = vst [vmem:[#allocation3 + $0x28] sm:$0xe] %v462
      %495 = vst [vmem:[#allocation3 + $0x2c] sm:$0x1] %v463
      %496 = vst [vmem:[#allocation3 + $0x30] sm:$0xe] %v464
      %497 = vst [vmem:[#allocation3 + $0x34] sm:$0x1] %v465
      %498 = vst [vmem:[#allocation3 + $0x38] sm:$0xe] %v466
      %499 = vst [vmem:[#allocation3 + $0x3c] sm:$0x1] %v467
      %v500 = vld [vmem:[#allocation3] sm:$0xf]
      %v501 = vld [vmem:[#allocation3 + $0x4] sm:$0x3]
      %v502 = vld [vmem:[#allocation3 + $0x8] sm:$0xf]
      %v503 = vld [vmem:[#allocation3 + $0xc] sm:$0x3]
      %v504 = vld [vmem:[#allocation3 + $0x10] sm:$0xf]
      %v505 = vld [vmem:[#allocation3 + $0x14] sm:$0x3]
      %v506 = vld [vmem:[#allocation3 + $0x18] sm:$0xf]
      %v507 = vld [vmem:[#allocation3 + $0x1c] sm:$0x3]
      %v508 = vld [vmem:[#allocation3 + $0x20] sm:$0xf]
      %v509 = vld [vmem:[#allocation3 + $0x24] sm:$0x3]
      %v510 = vld [vmem:[#allocation3 + $0x28] sm:$0xf]
      %v511 = vld [vmem:[#allocation3 + $0x2c] sm:$0x3]
      %v512 = vld [vmem:[#allocation3 + $0x30] sm:$0xf]
      %v513 = vld [vmem:[#allocation3 + $0x34] sm:$0x3]
      %v514 = vld [vmem:[#allocation3 + $0x38] sm:$0xf]
      %v515 = vld [vmem:[#allocation3 + $0x3c] sm:$0x3]
      %v532 = vunpack.c.l.b16 %v500
      %v533 = vunpack.c.l.b16 %v501
      %v534 = vunpack.c.l.b16 %v502
      %v535 = vunpack.c.l.b16 %v503
      %v536 = vunpack.c.l.b16 %v504
      %v537 = vunpack.c.l.b16 %v505
      %v538 = vunpack.c.l.b16 %v506
      %v539 = vunpack.c.l.b16 %v507
      %v540 = vunpack.c.l.b16 %v508
      %v541 = vunpack.c.l.b16 %v509
      %v542 = vunpack.c.l.b16 %v510
      %v543 = vunpack.c.l.b16 %v511
      %v544 = vunpack.c.l.b16 %v512
      %v545 = vunpack.c.l.b16 %v513
      %v546 = vunpack.c.l.b16 %v514
      %v547 = vunpack.c.l.b16 %v515
      %v548 = vpack.c.b16 %v533, %v532
      %v549 = vpack.c.b16 %v535, %v534
      %v550 = vpack.c.b16 %v537, %v536
      %v551 = vpack.c.b16 %v539, %v538
      %v552 = vpack.c.b16 %v541, %v540
      %v553 = vpack.c.b16 %v543, %v542
      %v554 = vpack.c.b16 %v545, %v544
      %v555 = vpack.c.b16 %v547, %v546
      %v557 = vshrl.u32 %v548, 16
      %v559 = vshll.u32 %v548, 16
      %v561 = vrot.slane %v559, 1
      %v562 = vor.u32 %v557, %v561
      %v564 = vshrl.u32 %v549, 16
      %v566 = vshll.u32 %v549, 16
      %v568 = vrot.slane %v566, 1
      %v569 = vor.u32 %v564, %v568
      %v571 = vshrl.u32 %v550, 16
      %v573 = vshll.u32 %v550, 16
      %v575 = vrot.slane %v573, 1
      %v576 = vor.u32 %v571, %v575
      %v578 = vshrl.u32 %v551, 16
      %v580 = vshll.u32 %v551, 16
      %v582 = vrot.slane %v580, 1
      %v583 = vor.u32 %v578, %v582
      %v585 = vshrl.u32 %v552, 16
      %v587 = vshll.u32 %v552, 16
      %v589 = vrot.slane %v587, 1
      %v590 = vor.u32 %v585, %v589
      %v592 = vshrl.u32 %v553, 16
      %v594 = vshll.u32 %v553, 16
      %v596 = vrot.slane %v594, 1
      %v597 = vor.u32 %v592, %v596
      %v599 = vshrl.u32 %v554, 16
      %v601 = vshll.u32 %v554, 16
      %v603 = vrot.slane %v601, 1
      %v604 = vor.u32 %v599, %v603
      %v606 = vshrl.u32 %v555, 16
      %v608 = vshll.u32 %v555, 16
      %v610 = vrot.slane %v608, 1
      %v611 = vor.u32 %v606, %v610
      %v612 = vrot.slane %v548, 1
      %v613 = vrot.slane %v549, 1
      %v614 = vrot.slane %v550, 1
      %v615 = vrot.slane %v551, 1
      %v616 = vrot.slane %v552, 1
      %v617 = vrot.slane %v553, 1
      %v618 = vrot.slane %v554, 1
      %v619 = vrot.slane %v555, 1
      %v620 = vrot.slane %v557, 1
      %v621 = vrot.slane %v559, 2
      %v622 = vor.u32 %v620, %v621
      %v623 = vrot.slane %v564, 1
      %v624 = vrot.slane %v566, 2
      %v625 = vor.u32 %v623, %v624
      %v626 = vrot.slane %v571, 1
      %v627 = vrot.slane %v573, 2
      %v628 = vor.u32 %v626, %v627
      %v629 = vrot.slane %v578, 1
      %v630 = vrot.slane %v580, 2
      %v631 = vor.u32 %v629, %v630
      %v632 = vrot.slane %v585, 1
      %v633 = vrot.slane %v587, 2
      %v634 = vor.u32 %v632, %v633
      %v635 = vrot.slane %v592, 1
      %v636 = vrot.slane %v594, 2
      %v637 = vor.u32 %v635, %v636
      %v638 = vrot.slane %v599, 1
      %v639 = vrot.slane %v601, 2
      %v640 = vor.u32 %v638, %v639
      %v641 = vrot.slane %v606, 1
      %v642 = vrot.slane %v608, 2
      %v643 = vor.u32 %v641, %v642
      %v644 = vrot.slane %v548, 2
      %v645 = vrot.slane %v549, 2
      %v646 = vrot.slane %v550, 2
      %v647 = vrot.slane %v551, 2
      %v648 = vrot.slane %v552, 2
      %v649 = vrot.slane %v553, 2
      %v650 = vrot.slane %v554, 2
      %v651 = vrot.slane %v555, 2
      %v652 = vunpack.c.l.b16 %v562
      %v653 = vunpack.c.l.b16 %v612
      %v654 = vunpack.c.l.b16 %v622
      %v655 = vunpack.c.l.b16 %v644
      %v656 = vunpack.c.l.b16 %v569
      %v657 = vunpack.c.l.b16 %v613
      %v658 = vunpack.c.l.b16 %v625
      %v659 = vunpack.c.l.b16 %v645
      %v660 = vunpack.c.l.b16 %v576
      %v661 = vunpack.c.l.b16 %v614
      %v662 = vunpack.c.l.b16 %v628
      %v663 = vunpack.c.l.b16 %v646
      %v664 = vunpack.c.l.b16 %v583
      %v665 = vunpack.c.l.b16 %v615
      %v666 = vunpack.c.l.b16 %v631
      %v667 = vunpack.c.l.b16 %v647
      %v668 = vunpack.c.l.b16 %v590
      %v669 = vunpack.c.l.b16 %v616
      %v670 = vunpack.c.l.b16 %v634
      %v671 = vunpack.c.l.b16 %v648
      %v672 = vunpack.c.l.b16 %v597
      %v673 = vunpack.c.l.b16 %v617
      %v674 = vunpack.c.l.b16 %v637
      %v675 = vunpack.c.l.b16 %v649
      %v676 = vunpack.c.l.b16 %v604
      %v677 = vunpack.c.l.b16 %v618
      %v678 = vunpack.c.l.b16 %v640
      %v679 = vunpack.c.l.b16 %v650
      %v680 = vunpack.c.l.b16 %v611
      %v681 = vunpack.c.l.b16 %v619
      %v682 = vunpack.c.l.b16 %v643
      %v683 = vunpack.c.l.b16 %v651
      %v684 = vld [vmem:[#allocation2] sm:$0xf]
      %v685 = vld [vmem:[#allocation2 + $0x4] sm:$0x3]
      %v686 = vld [vmem:[#allocation2 + $0x8] sm:$0xf]
      %v687 = vld [vmem:[#allocation2 + $0xc] sm:$0x3]
      %v688 = vld [vmem:[#allocation2 + $0x10] sm:$0xf]
      %v689 = vld [vmem:[#allocation2 + $0x14] sm:$0x3]
      %v690 = vld [vmem:[#allocation2 + $0x18] sm:$0xf]
      %v691 = vld [vmem:[#allocation2 + $0x1c] sm:$0x3]
      %v692 = vld [vmem:[#allocation2 + $0x20] sm:$0xf]
      %v693 = vld [vmem:[#allocation2 + $0x24] sm:$0x3]
      %v694 = vld [vmem:[#allocation2 + $0x28] sm:$0xf]
      %v695 = vld [vmem:[#allocation2 + $0x2c] sm:$0x3]
      %v696 = vld [vmem:[#allocation2 + $0x30] sm:$0xf]
      %v697 = vld [vmem:[#allocation2 + $0x34] sm:$0x3]
      %v698 = vld [vmem:[#allocation2 + $0x38] sm:$0xf]
      %v699 = vld [vmem:[#allocation2 + $0x3c] sm:$0x3]
      %v716 = vunpack.c.l.b16 %v684
      %v717 = vunpack.c.l.b16 %v685
      %v718 = vunpack.c.l.b16 %v686
      %v719 = vunpack.c.l.b16 %v687
      %v720 = vunpack.c.l.b16 %v688
      %v721 = vunpack.c.l.b16 %v689
      %v722 = vunpack.c.l.b16 %v690
      %v723 = vunpack.c.l.b16 %v691
      %v724 = vunpack.c.l.b16 %v692
      %v725 = vunpack.c.l.b16 %v693
      %v726 = vunpack.c.l.b16 %v694
      %v727 = vunpack.c.l.b16 %v695
      %v728 = vunpack.c.l.b16 %v696
      %v729 = vunpack.c.l.b16 %v697
      %v730 = vunpack.c.l.b16 %v698
      %v731 = vunpack.c.l.b16 %v699
      %v732 = vpack.c.b16 %v717, %v716
      %v733 = vpack.c.b16 %v719, %v718
      %v734 = vpack.c.b16 %v721, %v720
      %v735 = vpack.c.b16 %v723, %v722
      %v736 = vpack.c.b16 %v725, %v724
      %v737 = vpack.c.b16 %v727, %v726
      %v738 = vpack.c.b16 %v729, %v728
      %v739 = vpack.c.b16 %v731, %v730
      %v741 = vshrl.u32 %v732, 16
      %v743 = vshll.u32 %v732, 16
      %v745 = vrot.slane %v743, 1
      %v746 = vor.u32 %v741, %v745
      %v748 = vshrl.u32 %v733, 16
      %v750 = vshll.u32 %v733, 16
      %v752 = vrot.slane %v750, 1
      %v753 = vor.u32 %v748, %v752
      %v755 = vshrl.u32 %v734, 16
      %v757 = vshll.u32 %v734, 16
      %v759 = vrot.slane %v757, 1
      %v760 = vor.u32 %v755, %v759
      %v762 = vshrl.u32 %v735, 16
      %v764 = vshll.u32 %v735, 16
      %v766 = vrot.slane %v764, 1
      %v767 = vor.u32 %v762, %v766
      %v769 = vshrl.u32 %v736, 16
      %v771 = vshll.u32 %v736, 16
      %v773 = vrot.slane %v771, 1
      %v774 = vor.u32 %v769, %v773
      %v776 = vshrl.u32 %v737, 16
      %v778 = vshll.u32 %v737, 16
      %v780 = vrot.slane %v778, 1
      %v781 = vor.u32 %v776, %v780
      %v783 = vshrl.u32 %v738, 16
      %v785 = vshll.u32 %v738, 16
      %v787 = vrot.slane %v785, 1
      %v788 = vor.u32 %v783, %v787
      %v790 = vshrl.u32 %v739, 16
      %v792 = vshll.u32 %v739, 16
      %v794 = vrot.slane %v792, 1
      %v795 = vor.u32 %v790, %v794
      %v796 = vrot.slane %v732, 1
      %v797 = vrot.slane %v733, 1
      %v798 = vrot.slane %v734, 1
      %v799 = vrot.slane %v735, 1
      %v800 = vrot.slane %v736, 1
      %v801 = vrot.slane %v737, 1
      %v802 = vrot.slane %v738, 1
      %v803 = vrot.slane %v739, 1
      %v804 = vrot.slane %v741, 1
      %v805 = vrot.slane %v743, 2
      %v806 = vor.u32 %v804, %v805
      %v807 = vrot.slane %v748, 1
      %v808 = vrot.slane %v750, 2
      %v809 = vor.u32 %v807, %v808
      %v810 = vrot.slane %v755, 1
      %v811 = vrot.slane %v757, 2
      %v812 = vor.u32 %v810, %v811
      %v813 = vrot.slane %v762, 1
      %v814 = vrot.slane %v764, 2
      %v815 = vor.u32 %v813, %v814
      %v816 = vrot.slane %v769, 1
      %v817 = vrot.slane %v771, 2
      %v818 = vor.u32 %v816, %v817
      %v819 = vrot.slane %v776, 1
      %v820 = vrot.slane %v778, 2
      %v821 = vor.u32 %v819, %v820
      %v822 = vrot.slane %v783, 1
      %v823 = vrot.slane %v785, 2
      %v824 = vor.u32 %v822, %v823
      %v825 = vrot.slane %v790, 1
      %v826 = vrot.slane %v792, 2
      %v827 = vor.u32 %v825, %v826
      %v828 = vrot.slane %v732, 2
      %v829 = vrot.slane %v733, 2
      %v830 = vrot.slane %v734, 2
      %v831 = vrot.slane %v735, 2
      %v832 = vrot.slane %v736, 2
      %v833 = vrot.slane %v737, 2
      %v834 = vrot.slane %v738, 2
      %v835 = vrot.slane %v739, 2
      %v836 = vunpack.c.l.b16 %v746
      %v837 = vunpack.c.l.b16 %v796
      %v838 = vunpack.c.l.b16 %v806
      %v839 = vunpack.c.l.b16 %v828
      %v840 = vunpack.c.l.b16 %v753
      %v841 = vunpack.c.l.b16 %v797
      %v842 = vunpack.c.l.b16 %v809
      %v843 = vunpack.c.l.b16 %v829
      %v844 = vunpack.c.l.b16 %v760
      %v845 = vunpack.c.l.b16 %v798
      %v846 = vunpack.c.l.b16 %v812
      %v847 = vunpack.c.l.b16 %v830
      %v848 = vunpack.c.l.b16 %v767
      %v849 = vunpack.c.l.b16 %v799
      %v850 = vunpack.c.l.b16 %v815
      %v851 = vunpack.c.l.b16 %v831
      %v852 = vunpack.c.l.b16 %v774
      %v853 = vunpack.c.l.b16 %v800
      %v854 = vunpack.c.l.b16 %v818
      %v855 = vunpack.c.l.b16 %v832
      %v856 = vunpack.c.l.b16 %v781
      %v857 = vunpack.c.l.b16 %v801
      %v858 = vunpack.c.l.b16 %v821
      %v859 = vunpack.c.l.b16 %v833
      %v860 = vunpack.c.l.b16 %v788
      %v861 = vunpack.c.l.b16 %v802
      %v862 = vunpack.c.l.b16 %v824
      %v863 = vunpack.c.l.b16 %v834
      %v864 = vunpack.c.l.b16 %v795
      %v865 = vunpack.c.l.b16 %v803
      %v866 = vunpack.c.l.b16 %v827
      %v867 = vunpack.c.l.b16 %v835
      %v868 = vld [vmem:[%s2] sm:$0xff]
      %v869 = vld [vmem:[%s2 + $0x8] sm:$0xff]
      %v870 = vld [vmem:[%s2 + $0x10] sm:$0xff]
      %v871 = vld [vmem:[%s2 + $0x18] sm:$0xff]
      %v872 = vld [vmem:[%s2 + $0x20] sm:$0xff]
      %v873 = vld [vmem:[%s2 + $0x28] sm:$0xff]
      %v874 = vld [vmem:[%s2 + $0x30] sm:$0xff]
      %v875 = vld [vmem:[%s2 + $0x38] sm:$0xff]
      %v876 = vld [vmem:[%s2 + $0x40] sm:$0xff]
      %v877 = vld [vmem:[%s2 + $0x48] sm:$0xff]
      %v878 = vld [vmem:[%s2 + $0x50] sm:$0xff]
      %v879 = vld [vmem:[%s2 + $0x58] sm:$0xff]
      %v880 = vld [vmem:[%s2 + $0x60] sm:$0xff]
      %v881 = vld [vmem:[%s2 + $0x68] sm:$0xff]
      %v882 = vld [vmem:[%s2 + $0x70] sm:$0xff]
      %v883 = vld [vmem:[%s2 + $0x78] sm:$0xff]
      %v884 = vld [vmem:[%s2 + $0x80] sm:$0xff]
      %v885 = vld [vmem:[%s2 + $0x88] sm:$0xff]
      %v886 = vld [vmem:[%s2 + $0x90] sm:$0xff]
      %v887 = vld [vmem:[%s2 + $0x98] sm:$0xff]
      %v888 = vld [vmem:[%s2 + $0xa0] sm:$0xff]
      %v889 = vld [vmem:[%s2 + $0xa8] sm:$0xff]
      %v890 = vld [vmem:[%s2 + $0xb0] sm:$0xff]
      %v891 = vld [vmem:[%s2 + $0xb8] sm:$0xff]
      %v892 = vld [vmem:[%s2 + $0xc0] sm:$0xff]
      %v893 = vld [vmem:[%s2 + $0xc8] sm:$0xff]
      %v894 = vld [vmem:[%s2 + $0xd0] sm:$0xff]
      %v895 = vld [vmem:[%s2 + $0xd8] sm:$0xff]
      %v896 = vld [vmem:[%s2 + $0xe0] sm:$0xff]
      %v897 = vld [vmem:[%s2 + $0xe8] sm:$0xff]
      %v898 = vld [vmem:[%s2 + $0xf0] sm:$0xff]
      %v899 = vld [vmem:[%s2 + $0xf8] sm:$0xff]
      %v900 = vld [vmem:[%s2 + $0x100] sm:$0xff]
      %v901 = vld [vmem:[%s2 + $0x108] sm:$0xff]
      %v902 = vld [vmem:[%s2 + $0x110] sm:$0xff]
      %v903 = vld [vmem:[%s2 + $0x118] sm:$0xff]
      %v904 = vld [vmem:[%s2 + $0x120] sm:$0xff]
      %v905 = vld [vmem:[%s2 + $0x128] sm:$0xff]
      %v906 = vld [vmem:[%s2 + $0x130] sm:$0xff]
      %v907 = vld [vmem:[%s2 + $0x138] sm:$0xff]
      %v908 = vld [vmem:[%s2 + $0x140] sm:$0xff]
      %v909 = vld [vmem:[%s2 + $0x148] sm:$0xff]
      %v910 = vld [vmem:[%s2 + $0x150] sm:$0xff]
      %v911 = vld [vmem:[%s2 + $0x158] sm:$0xff]
      %v912 = vld [vmem:[%s2 + $0x160] sm:$0xff]
      %v913 = vld [vmem:[%s2 + $0x168] sm:$0xff]
      %v914 = vld [vmem:[%s2 + $0x170] sm:$0xff]
      %v915 = vld [vmem:[%s2 + $0x178] sm:$0xff]
      %v916 = vld [vmem:[%s2 + $0x180] sm:$0xff]
      %v917 = vld [vmem:[%s2 + $0x188] sm:$0xff]
      %v918 = vld [vmem:[%s2 + $0x190] sm:$0xff]
      %v919 = vld [vmem:[%s2 + $0x198] sm:$0xff]
      %v920 = vld [vmem:[%s2 + $0x1a0] sm:$0xff]
      %v921 = vld [vmem:[%s2 + $0x1a8] sm:$0xff]
      %v922 = vld [vmem:[%s2 + $0x1b0] sm:$0xff]
      %v923 = vld [vmem:[%s2 + $0x1b8] sm:$0xff]
      %v924 = vld [vmem:[%s2 + $0x1c0] sm:$0xff]
      %v925 = vld [vmem:[%s2 + $0x1c8] sm:$0xff]
      %v926 = vld [vmem:[%s2 + $0x1d0] sm:$0xff]
      %v927 = vld [vmem:[%s2 + $0x1d8] sm:$0xff]
      %v928 = vld [vmem:[%s2 + $0x1e0] sm:$0xff]
      %v929 = vld [vmem:[%s2 + $0x1e8] sm:$0xff]
      %v930 = vld [vmem:[%s2 + $0x1f0] sm:$0xff]
      %v931 = vld [vmem:[%s2 + $0x1f8] sm:$0xff]
      %v932 = vld [vmem:[%s2 + $0x200] sm:$0xff]
      %v933 = vld [vmem:[%s2 + $0x208] sm:$0xff]
      %v934 = vld [vmem:[%s2 + $0x210] sm:$0xff]
      %v935 = vld [vmem:[%s2 + $0x218] sm:$0xff]
      %v936 = vld [vmem:[%s2 + $0x220] sm:$0xff]
      %v937 = vld [vmem:[%s2 + $0x228] sm:$0xff]
      %v938 = vld [vmem:[%s2 + $0x230] sm:$0xff]
      %v939 = vld [vmem:[%s2 + $0x238] sm:$0xff]
      %v940 = vld [vmem:[%s2 + $0x240] sm:$0xff]
      %v941 = vld [vmem:[%s2 + $0x248] sm:$0xff]
      %v942 = vld [vmem:[%s2 + $0x250] sm:$0xff]
      %v943 = vld [vmem:[%s2 + $0x258] sm:$0xff]
      %v944 = vld [vmem:[%s2 + $0x260] sm:$0xff]
      %v945 = vld [vmem:[%s2 + $0x268] sm:$0xff]
      %v946 = vld [vmem:[%s2 + $0x270] sm:$0xff]
      %v947 = vld [vmem:[%s2 + $0x278] sm:$0xff]
      %v948 = vld [vmem:[%s3] sm:$0xff]
      %v949 = vld [vmem:[%s3 + $0x8] sm:$0xff]
      %v950 = vld [vmem:[%s3 + $0x10] sm:$0xff]
      %v951 = vld [vmem:[%s3 + $0x18] sm:$0xff]
      %v952 = vld [vmem:[%s3 + $0x20] sm:$0xff]
      %v953 = vld [vmem:[%s3 + $0x28] sm:$0xff]
      %v954 = vld [vmem:[%s3 + $0x30] sm:$0xff]
      %v955 = vld [vmem:[%s3 + $0x38] sm:$0xff]
      %v956 = vld [vmem:[%s3 + $0x40] sm:$0xff]
      %v957 = vld [vmem:[%s3 + $0x48] sm:$0xff]
      %v958 = vld [vmem:[%s3 + $0x50] sm:$0xff]
      %v959 = vld [vmem:[%s3 + $0x58] sm:$0xff]
      %v960 = vld [vmem:[%s3 + $0x60] sm:$0xff]
      %v961 = vld [vmem:[%s3 + $0x68] sm:$0xff]
      %v962 = vld [vmem:[%s3 + $0x70] sm:$0xff]
      %v963 = vld [vmem:[%s3 + $0x78] sm:$0xff]
      %v964 = vld [vmem:[%s3 + $0x80] sm:$0xff]
      %v965 = vld [vmem:[%s3 + $0x88] sm:$0xff]
      %v966 = vld [vmem:[%s3 + $0x90] sm:$0xff]
      %v967 = vld [vmem:[%s3 + $0x98] sm:$0xff]
      %v968 = vld [vmem:[%s3 + $0xa0] sm:$0xff]
      %v969 = vld [vmem:[%s3 + $0xa8] sm:$0xff]
      %v970 = vld [vmem:[%s3 + $0xb0] sm:$0xff]
      %v971 = vld [vmem:[%s3 + $0xb8] sm:$0xff]
      %v972 = vld [vmem:[%s3 + $0xc0] sm:$0xff]
      %v973 = vld [vmem:[%s3 + $0xc8] sm:$0xff]
      %v974 = vld [vmem:[%s3 + $0xd0] sm:$0xff]
      %v975 = vld [vmem:[%s3 + $0xd8] sm:$0xff]
      %v976 = vld [vmem:[%s3 + $0xe0] sm:$0xff]
      %v977 = vld [vmem:[%s3 + $0xe8] sm:$0xff]
      %v978 = vld [vmem:[%s3 + $0xf0] sm:$0xff]
      %v979 = vld [vmem:[%s3 + $0xf8] sm:$0xff]
      %v980 = vld [vmem:[%s3 + $0x100] sm:$0xff]
      %v981 = vld [vmem:[%s3 + $0x108] sm:$0xff]
      %v982 = vld [vmem:[%s3 + $0x110] sm:$0xff]
      %v983 = vld [vmem:[%s3 + $0x118] sm:$0xff]
      %v984 = vld [vmem:[%s3 + $0x120] sm:$0xff]
      %v985 = vld [vmem:[%s3 + $0x128] sm:$0xff]
      %v986 = vld [vmem:[%s3 + $0x130] sm:$0xff]
      %v987 = vld [vmem:[%s3 + $0x138] sm:$0xff]
      %v988 = vld [vmem:[%s3 + $0x140] sm:$0xff]
      %v989 = vld [vmem:[%s3 + $0x148] sm:$0xff]
      %v990 = vld [vmem:[%s3 + $0x150] sm:$0xff]
      %v991 = vld [vmem:[%s3 + $0x158] sm:$0xff]
      %v992 = vld [vmem:[%s3 + $0x160] sm:$0xff]
      %v993 = vld [vmem:[%s3 + $0x168] sm:$0xff]
      %v994 = vld [vmem:[%s3 + $0x170] sm:$0xff]
      %v995 = vld [vmem:[%s3 + $0x178] sm:$0xff]
      %v996 = vld [vmem:[%s3 + $0x180] sm:$0xff]
      %v997 = vld [vmem:[%s3 + $0x188] sm:$0xff]
      %v998 = vld [vmem:[%s3 + $0x190] sm:$0xff]
      %v999 = vld [vmem:[%s3 + $0x198] sm:$0xff]
      %v1000 = vld [vmem:[%s3 + $0x1a0] sm:$0xff]
      %v1001 = vld [vmem:[%s3 + $0x1a8] sm:$0xff]
      %v1002 = vld [vmem:[%s3 + $0x1b0] sm:$0xff]
      %v1003 = vld [vmem:[%s3 + $0x1b8] sm:$0xff]
      %v1004 = vld [vmem:[%s3 + $0x1c0] sm:$0xff]
      %v1005 = vld [vmem:[%s3 + $0x1c8] sm:$0xff]
      %v1006 = vld [vmem:[%s3 + $0x1d0] sm:$0xff]
      %v1007 = vld [vmem:[%s3 + $0x1d8] sm:$0xff]
      %v1008 = vld [vmem:[%s3 + $0x1e0] sm:$0xff]
      %v1009 = vld [vmem:[%s3 + $0x1e8] sm:$0xff]
      %v1010 = vld [vmem:[%s3 + $0x1f0] sm:$0xff]
      %v1011 = vld [vmem:[%s3 + $0x1f8] sm:$0xff]
      %v1012 = vld [vmem:[%s3 + $0x200] sm:$0xff]
      %v1013 = vld [vmem:[%s3 + $0x208] sm:$0xff]
      %v1014 = vld [vmem:[%s3 + $0x210] sm:$0xff]
      %v1015 = vld [vmem:[%s3 + $0x218] sm:$0xff]
      %v1016 = vld [vmem:[%s3 + $0x220] sm:$0xff]
      %v1017 = vld [vmem:[%s3 + $0x228] sm:$0xff]
      %v1018 = vld [vmem:[%s3 + $0x230] sm:$0xff]
      %v1019 = vld [vmem:[%s3 + $0x238] sm:$0xff]
      %v1020 = vld [vmem:[%s3 + $0x240] sm:$0xff]
      %v1021 = vld [vmem:[%s3 + $0x248] sm:$0xff]
      %v1022 = vld [vmem:[%s3 + $0x250] sm:$0xff]
      %v1023 = vld [vmem:[%s3 + $0x258] sm:$0xff]
      %v1024 = vld [vmem:[%s3 + $0x260] sm:$0xff]
      %v1025 = vld [vmem:[%s3 + $0x268] sm:$0xff]
      %v1026 = vld [vmem:[%s3 + $0x270] sm:$0xff]
      %v1027 = vld [vmem:[%s3 + $0x278] sm:$0xff]
      %v1028 = vpack.c.b16 %v534, %v532
      %v1029 = vpack.c.b16 %v656, %v652
      %v1030 = vpack.c.b16 %v657, %v653
      %v1031 = vpack.c.b16 %v658, %v654
      %v1032 = vpack.c.b16 %v659, %v655
      %v1033 = vpack.c.b16 %v538, %v536
      %v1034 = vpack.c.b16 %v664, %v660
      %v1035 = vpack.c.b16 %v665, %v661
      %v1036 = vpack.c.b16 %v666, %v662
      %v1037 = vpack.c.b16 %v667, %v663
      %v1038 = vpack.c.b16 %v542, %v540
      %v1039 = vpack.c.b16 %v672, %v668
      %v1040 = vpack.c.b16 %v673, %v669
      %v1041 = vpack.c.b16 %v674, %v670
      %v1042 = vpack.c.b16 %v675, %v671
      %v1043 = vpack.c.b16 %v546, %v544
      %v1044 = vpack.c.b16 %v680, %v676
      %v1045 = vpack.c.b16 %v681, %v677
      %v1046 = vpack.c.b16 %v682, %v678
      %v1047 = vpack.c.b16 %v683, %v679
      %v1148 = vunpack.c.l.b16 %v948
      %v1149 = vunpack.c.h.b16 %v948
      %v1150 = vunpack.c.l.b16 %v949
      %v1151 = vunpack.c.h.b16 %v949
      %v1152 = vunpack.c.l.b16 %v950
      %v1153 = vunpack.c.h.b16 %v950
      %v1154 = vunpack.c.l.b16 %v951
      %v1155 = vunpack.c.h.b16 %v951
      %v1156 = vunpack.c.l.b16 %v952
      %v1157 = vunpack.c.h.b16 %v952
      %v1158 = vunpack.c.l.b16 %v953
      %v1159 = vunpack.c.h.b16 %v953
      %v1160 = vunpack.c.l.b16 %v954
      %v1161 = vunpack.c.h.b16 %v954
      %v1162 = vunpack.c.l.b16 %v955
      %v1163 = vunpack.c.h.b16 %v955
      %v1164 = vunpack.c.l.b16 %v956
      %v1165 = vunpack.c.h.b16 %v956
      %v1166 = vunpack.c.l.b16 %v957
      %v1167 = vunpack.c.h.b16 %v957
      %v1168 = vunpack.c.l.b16 %v958
      %v1169 = vunpack.c.h.b16 %v958
      %v1170 = vunpack.c.l.b16 %v959
      %v1171 = vunpack.c.h.b16 %v959
      %v1172 = vunpack.c.l.b16 %v960
      %v1173 = vunpack.c.h.b16 %v960
      %v1174 = vunpack.c.l.b16 %v961
      %v1175 = vunpack.c.h.b16 %v961
      %v1176 = vunpack.c.l.b16 %v962
      %v1177 = vunpack.c.h.b16 %v962
      %v1178 = vunpack.c.l.b16 %v963
      %v1179 = vunpack.c.h.b16 %v963
      %v1180 = vunpack.c.l.b16 %v964
      %v1181 = vunpack.c.h.b16 %v964
      %v1182 = vunpack.c.l.b16 %v965
      %v1183 = vunpack.c.h.b16 %v965
      %v1184 = vunpack.c.l.b16 %v966
      %v1185 = vunpack.c.h.b16 %v966
      %v1186 = vunpack.c.l.b16 %v967
      %v1187 = vunpack.c.h.b16 %v967
      %v1188 = vunpack.c.l.b16 %v968
      %v1189 = vunpack.c.h.b16 %v968
      %v1190 = vunpack.c.l.b16 %v969
      %v1191 = vunpack.c.h.b16 %v969
      %v1192 = vunpack.c.l.b16 %v970
      %v1193 = vunpack.c.h.b16 %v970
      %v1194 = vunpack.c.l.b16 %v971
      %v1195 = vunpack.c.h.b16 %v971
      %v1196 = vunpack.c.l.b16 %v972
      %v1197 = vunpack.c.h.b16 %v972
      %v1198 = vunpack.c.l.b16 %v973
      %v1199 = vunpack.c.h.b16 %v973
      %v1200 = vunpack.c.l.b16 %v974
      %v1201 = vunpack.c.h.b16 %v974
      %v1202 = vunpack.c.l.b16 %v975
      %v1203 = vunpack.c.h.b16 %v975
      %v1204 = vunpack.c.l.b16 %v976
      %v1205 = vunpack.c.h.b16 %v976
      %v1206 = vunpack.c.l.b16 %v977
      %v1207 = vunpack.c.h.b16 %v977
      %v1208 = vunpack.c.l.b16 %v978
      %v1209 = vunpack.c.h.b16 %v978
      %v1210 = vunpack.c.l.b16 %v979
      %v1211 = vunpack.c.h.b16 %v979
      %v1212 = vunpack.c.l.b16 %v980
      %v1213 = vunpack.c.h.b16 %v980
      %v1214 = vunpack.c.l.b16 %v981
      %v1215 = vunpack.c.h.b16 %v981
      %v1216 = vunpack.c.l.b16 %v982
      %v1217 = vunpack.c.h.b16 %v982
      %v1218 = vunpack.c.l.b16 %v983
      %v1219 = vunpack.c.h.b16 %v983
      %v1220 = vunpack.c.l.b16 %v984
      %v1221 = vunpack.c.h.b16 %v984
      %v1222 = vunpack.c.l.b16 %v985
      %v1223 = vunpack.c.h.b16 %v985
      %v1224 = vunpack.c.l.b16 %v986
      %v1225 = vunpack.c.h.b16 %v986
      %v1226 = vunpack.c.l.b16 %v987
      %v1227 = vunpack.c.h.b16 %v987
      %v1228 = vunpack.c.l.b16 %v988
      %v1229 = vunpack.c.h.b16 %v988
      %v1230 = vunpack.c.l.b16 %v989
      %v1231 = vunpack.c.h.b16 %v989
      %v1232 = vunpack.c.l.b16 %v990
      %v1233 = vunpack.c.h.b16 %v990
      %v1234 = vunpack.c.l.b16 %v991
      %v1235 = vunpack.c.h.b16 %v991
      %v1236 = vunpack.c.l.b16 %v992
      %v1237 = vunpack.c.h.b16 %v992
      %v1238 = vunpack.c.l.b16 %v993
      %v1239 = vunpack.c.h.b16 %v993
      %v1240 = vunpack.c.l.b16 %v994
      %v1241 = vunpack.c.h.b16 %v994
      %v1242 = vunpack.c.l.b16 %v995
      %v1243 = vunpack.c.h.b16 %v995
      %v1244 = vunpack.c.l.b16 %v996
      %v1245 = vunpack.c.h.b16 %v996
      %v1246 = vunpack.c.l.b16 %v997
      %v1247 = vunpack.c.h.b16 %v997
      %v1248 = vunpack.c.l.b16 %v998
      %v1249 = vunpack.c.h.b16 %v998
      %v1250 = vunpack.c.l.b16 %v999
      %v1251 = vunpack.c.h.b16 %v999
      %v1252 = vunpack.c.l.b16 %v1000
      %v1253 = vunpack.c.h.b16 %v1000
      %v1254 = vunpack.c.l.b16 %v1001
      %v1255 = vunpack.c.h.b16 %v1001
      %v1256 = vunpack.c.l.b16 %v1002
      %v1257 = vunpack.c.h.b16 %v1002
      %v1258 = vunpack.c.l.b16 %v1003
      %v1259 = vunpack.c.h.b16 %v1003
      %v1260 = vunpack.c.l.b16 %v1004
      %v1261 = vunpack.c.h.b16 %v1004
      %v1262 = vunpack.c.l.b16 %v1005
      %v1263 = vunpack.c.h.b16 %v1005
      %v1264 = vunpack.c.l.b16 %v1006
      %v1265 = vunpack.c.h.b16 %v1006
      %v1266 = vunpack.c.l.b16 %v1007
      %v1267 = vunpack.c.h.b16 %v1007
      %v1268 = vunpack.c.l.b16 %v1008
      %v1269 = vunpack.c.h.b16 %v1008
      %v1270 = vunpack.c.l.b16 %v1009
      %v1271 = vunpack.c.h.b16 %v1009
      %v1272 = vunpack.c.l.b16 %v1010
      %v1273 = vunpack.c.h.b16 %v1010
      %v1274 = vunpack.c.l.b16 %v1011
      %v1275 = vunpack.c.h.b16 %v1011
      %v1276 = vunpack.c.l.b16 %v1012
      %v1277 = vunpack.c.h.b16 %v1012
      %v1278 = vunpack.c.l.b16 %v1013
      %v1279 = vunpack.c.h.b16 %v1013
      %v1280 = vunpack.c.l.b16 %v1014
      %v1281 = vunpack.c.h.b16 %v1014
      %v1282 = vunpack.c.l.b16 %v1015
      %v1283 = vunpack.c.h.b16 %v1015
      %v1284 = vunpack.c.l.b16 %v1016
      %v1285 = vunpack.c.h.b16 %v1016
      %v1286 = vunpack.c.l.b16 %v1017
      %v1287 = vunpack.c.h.b16 %v1017
      %v1288 = vunpack.c.l.b16 %v1018
      %v1289 = vunpack.c.h.b16 %v1018
      %v1290 = vunpack.c.l.b16 %v1019
      %v1291 = vunpack.c.h.b16 %v1019
      %v1292 = vunpack.c.l.b16 %v1020
      %v1293 = vunpack.c.h.b16 %v1020
      %v1294 = vunpack.c.l.b16 %v1021
      %v1295 = vunpack.c.h.b16 %v1021
      %v1296 = vunpack.c.l.b16 %v1022
      %v1297 = vunpack.c.h.b16 %v1022
      %v1298 = vunpack.c.l.b16 %v1023
      %v1299 = vunpack.c.h.b16 %v1023
      %v1300 = vunpack.c.l.b16 %v1024
      %v1301 = vunpack.c.h.b16 %v1024
      %v1302 = vunpack.c.l.b16 %v1025
      %v1303 = vunpack.c.h.b16 %v1025
      %v1304 = vunpack.c.l.b16 %v1026
      %v1305 = vunpack.c.h.b16 %v1026
      %v1306 = vunpack.c.l.b16 %v1027
      %v1307 = vunpack.c.h.b16 %v1027
      %v1308 = vpack.c.b16 %v1150, %v1148
      %v1309 = vpack.c.b16 %v1151, %v1149
      %v1310 = vpack.c.b16 %v1154, %v1152
      %v1311 = vpack.c.b16 %v1155, %v1153
      %v1312 = vpack.c.b16 %v1158, %v1156
      %v1313 = vpack.c.b16 %v1159, %v1157
      %v1314 = vpack.c.b16 %v1162, %v1160
      %v1315 = vpack.c.b16 %v1163, %v1161
      %v1316 = vpack.c.b16 %v1166, %v1164
      %v1317 = vpack.c.b16 %v1167, %v1165
      %v1318 = vpack.c.b16 %v1170, %v1168
      %v1319 = vpack.c.b16 %v1171, %v1169
      %v1320 = vpack.c.b16 %v1174, %v1172
      %v1321 = vpack.c.b16 %v1175, %v1173
      %v1322 = vpack.c.b16 %v1178, %v1176
      %v1323 = vpack.c.b16 %v1179, %v1177
      %v1324 = vpack.c.b16 %v1182, %v1180
      %v1325 = vpack.c.b16 %v1183, %v1181
      %v1326 = vpack.c.b16 %v1186, %v1184
      %v1327 = vpack.c.b16 %v1187, %v1185
      %v1328 = vpack.c.b16 %v1190, %v1188
      %v1329 = vpack.c.b16 %v1191, %v1189
      %v1330 = vpack.c.b16 %v1194, %v1192
      %v1331 = vpack.c.b16 %v1195, %v1193
      %v1332 = vpack.c.b16 %v1198, %v1196
      %v1333 = vpack.c.b16 %v1199, %v1197
      %v1334 = vpack.c.b16 %v1202, %v1200
      %v1335 = vpack.c.b16 %v1203, %v1201
      %v1336 = vpack.c.b16 %v1206, %v1204
      %v1337 = vpack.c.b16 %v1207, %v1205
      %v1338 = vpack.c.b16 %v1210, %v1208
      %v1339 = vpack.c.b16 %v1211, %v1209
      %v1340 = vpack.c.b16 %v1214, %v1212
      %v1341 = vpack.c.b16 %v1215, %v1213
      %v1342 = vpack.c.b16 %v1218, %v1216
      %v1343 = vpack.c.b16 %v1219, %v1217
      %v1344 = vpack.c.b16 %v1222, %v1220
      %v1345 = vpack.c.b16 %v1223, %v1221
      %v1346 = vpack.c.b16 %v1226, %v1224
      %v1347 = vpack.c.b16 %v1227, %v1225
      %v1348 = vpack.c.b16 %v1230, %v1228
      %v1349 = vpack.c.b16 %v1231, %v1229
      %v1350 = vpack.c.b16 %v1234, %v1232
      %v1351 = vpack.c.b16 %v1235, %v1233
      %v1352 = vpack.c.b16 %v1238, %v1236
      %v1353 = vpack.c.b16 %v1239, %v1237
      %v1354 = vpack.c.b16 %v1242, %v1240
      %v1355 = vpack.c.b16 %v1243, %v1241
      %v1356 = vpack.c.b16 %v1246, %v1244
      %v1357 = vpack.c.b16 %v1247, %v1245
      %v1358 = vpack.c.b16 %v1250, %v1248
      %v1359 = vpack.c.b16 %v1251, %v1249
      %v1360 = vpack.c.b16 %v1254, %v1252
      %v1361 = vpack.c.b16 %v1255, %v1253
      %v1362 = vpack.c.b16 %v1258, %v1256
      %v1363 = vpack.c.b16 %v1259, %v1257
      %v1364 = vpack.c.b16 %v1262, %v1260
      %v1365 = vpack.c.b16 %v1263, %v1261
      %v1366 = vpack.c.b16 %v1266, %v1264
      %v1367 = vpack.c.b16 %v1267, %v1265
      %v1368 = vpack.c.b16 %v1270, %v1268
      %v1369 = vpack.c.b16 %v1271, %v1269
      %v1370 = vpack.c.b16 %v1274, %v1272
      %v1371 = vpack.c.b16 %v1275, %v1273
      %v1372 = vpack.c.b16 %v1278, %v1276
      %v1373 = vpack.c.b16 %v1279, %v1277
      %v1374 = vpack.c.b16 %v1282, %v1280
      %v1375 = vpack.c.b16 %v1283, %v1281
      %v1376 = vpack.c.b16 %v1286, %v1284
      %v1377 = vpack.c.b16 %v1287, %v1285
      %v1378 = vpack.c.b16 %v1290, %v1288
      %v1379 = vpack.c.b16 %v1291, %v1289
      %v1380 = vpack.c.b16 %v1294, %v1292
      %v1381 = vpack.c.b16 %v1295, %v1293
      %v1382 = vpack.c.b16 %v1298, %v1296
      %v1383 = vpack.c.b16 %v1299, %v1297
      %v1384 = vpack.c.b16 %v1302, %v1300
      %v1385 = vpack.c.b16 %v1303, %v1301
      %v1386 = vpack.c.b16 %v1306, %v1304
      %v1387 = vpack.c.b16 %v1307, %v1305
      %1468 = vmatpush.bf16.msra.mxu0 %v1322
      %1469 = vmatpush.bf16.msra.mxu0 %v1320
      %1470 = vmatpush.bf16.msra.mxu0 %v1318
      %1471 = vmatpush.bf16.msra.mxu0 %v1316
      %1472 = vmatpush.bf16.msra.mxu0 %v1314
      %1473 = vmatpush.bf16.msra.mxu0 %v1312
      %1474 = vmatpush.bf16.msra.mxu0 %v1310
      %1475 = vmatpush.bf16.msra.mxu0 %v1308
      %1476 = vmatmul.bf16.gmra.mxu0 %v1028
      %v1477 = vpop.f32.mrf.mxu0
      %v1478 = vadd.f32 0.0, %v1477
      %v1479 = vpop.f32.mrf.mxu0
      %v1480 = vadd.f32 0.0, %v1479
      %1481 = vmatmul.bf16.gmra.mxu0 %v1033
      %v1482 = vpop.f32.mrf.mxu0
      %v1483 = vadd.f32 0.0, %v1482
      %v1484 = vpop.f32.mrf.mxu0
      %v1485 = vadd.f32 0.0, %v1484
      %1486 = vmatmul.bf16.gmra.mxu0 %v1038
      %v1487 = vpop.f32.mrf.mxu0
      %v1488 = vadd.f32 0.0, %v1487
      %v1489 = vpop.f32.mrf.mxu0
      %v1490 = vadd.f32 0.0, %v1489
      %1491 = vmatmul.bf16.gmra.mxu0 %v1043
      %v1492 = vpop.f32.mrf.mxu0
      %v1493 = vadd.f32 0.0, %v1492
      %v1494 = vpop.f32.mrf.mxu0
      %v1495 = vadd.f32 0.0, %v1494
      %1496 = vdwg.mxu0
      %1497 = vmatpush.bf16.msra.mxu0 %v1338
      %1498 = vmatpush.bf16.msra.mxu0 %v1336
      %1499 = vmatpush.bf16.msra.mxu0 %v1334
      %1500 = vmatpush.bf16.msra.mxu0 %v1332
      %1501 = vmatpush.bf16.msra.mxu0 %v1330
      %1502 = vmatpush.bf16.msra.mxu0 %v1328
      %1503 = vmatpush.bf16.msra.mxu0 %v1326
      %1504 = vmatpush.bf16.msra.mxu0 %v1324
      %1505 = vmatmul.bf16.gmra.mxu0 %v1029
      %v1506 = vpop.f32.mrf.mxu0
      %v1507 = vadd.f32 %v1478, %v1506
      %v1508 = vpop.f32.mrf.mxu0
      %v1509 = vadd.f32 %v1480, %v1508
      %1510 = vmatmul.bf16.gmra.mxu0 %v1034
      %v1511 = vpop.f32.mrf.mxu0
      %v1512 = vadd.f32 %v1483, %v1511
      %v1513 = vpop.f32.mrf.mxu0
      %v1514 = vadd.f32 %v1485, %v1513
      %1515 = vmatmul.bf16.gmra.mxu0 %v1039
      %v1516 = vpop.f32.mrf.mxu0
      %v1517 = vadd.f32 %v1488, %v1516
      %v1518 = vpop.f32.mrf.mxu0
      %v1519 = vadd.f32 %v1490, %v1518
      %1520 = vmatmul.bf16.gmra.mxu0 %v1044
      %v1521 = vpop.f32.mrf.mxu0
      %v1522 = vadd.f32 %v1493, %v1521
      %v1523 = vpop.f32.mrf.mxu0
      %v1524 = vadd.f32 %v1495, %v1523
      %1525 = vdwg.mxu0
      %1526 = vmatpush.bf16.msra.mxu0 %v1354
      %1527 = vmatpush.bf16.msra.mxu0 %v1352
      %1528 = vmatpush.bf16.msra.mxu0 %v1350
      %1529 = vmatpush.bf16.msra.mxu0 %v1348
      %1530 = vmatpush.bf16.msra.mxu0 %v1346
      %1531 = vmatpush.bf16.msra.mxu0 %v1344
      %1532 = vmatpush.bf16.msra.mxu0 %v1342
      %1533 = vmatpush.bf16.msra.mxu0 %v1340
      %1534 = vmatmul.bf16.gmra.mxu0 %v1030
      %v1535 = vpop.f32.mrf.mxu0
      %v1536 = vadd.f32 %v1507, %v1535
      %v1537 = vpop.f32.mrf.mxu0
      %v1538 = vadd.f32 %v1509, %v1537
      %1539 = vmatmul.bf16.gmra.mxu0 %v1035
      %v1540 = vpop.f32.mrf.mxu0
      %v1541 = vadd.f32 %v1512, %v1540
      %v1542 = vpop.f32.mrf.mxu0
      %v1543 = vadd.f32 %v1514, %v1542
      %1544 = vmatmul.bf16.gmra.mxu0 %v1040
      %v1545 = vpop.f32.mrf.mxu0
      %v1546 = vadd.f32 %v1517, %v1545
      %v1547 = vpop.f32.mrf.mxu0
      %v1548 = vadd.f32 %v1519, %v1547
      %1549 = vmatmul.bf16.gmra.mxu0 %v1045
      %v1550 = vpop.f32.mrf.mxu0
      %v1551 = vadd.f32 %v1522, %v1550
      %v1552 = vpop.f32.mrf.mxu0
      %v1553 = vadd.f32 %v1524, %v1552
      %1554 = vdwg.mxu0
      %1555 = vmatpush.bf16.msra.mxu0 %v1370
      %1556 = vmatpush.bf16.msra.mxu0 %v1368
      %1557 = vmatpush.bf16.msra.mxu0 %v1366
      %1558 = vmatpush.bf16.msra.mxu0 %v1364
      %1559 = vmatpush.bf16.msra.mxu0 %v1362
      %1560 = vmatpush.bf16.msra.mxu0 %v1360
      %1561 = vmatpush.bf16.msra.mxu0 %v1358
      %1562 = vmatpush.bf16.msra.mxu0 %v1356
      %1563 = vmatmul.bf16.gmra.mxu0 %v1031
      %v1564 = vpop.f32.mrf.mxu0
      %v1565 = vadd.f32 %v1536, %v1564
      %v1566 = vpop.f32.mrf.mxu0
      %v1567 = vadd.f32 %v1538, %v1566
      %1568 = vmatmul.bf16.gmra.mxu0 %v1036
      %v1569 = vpop.f32.mrf.mxu0
      %v1570 = vadd.f32 %v1541, %v1569
      %v1571 = vpop.f32.mrf.mxu0
      %v1572 = vadd.f32 %v1543, %v1571
      %1573 = vmatmul.bf16.gmra.mxu0 %v1041
      %v1574 = vpop.f32.mrf.mxu0
      %v1575 = vadd.f32 %v1546, %v1574
      %v1576 = vpop.f32.mrf.mxu0
      %v1577 = vadd.f32 %v1548, %v1576
      %1578 = vmatmul.bf16.gmra.mxu0 %v1046
      %v1579 = vpop.f32.mrf.mxu0
      %v1580 = vadd.f32 %v1551, %v1579
      %v1581 = vpop.f32.mrf.mxu0
      %v1582 = vadd.f32 %v1553, %v1581
      %1583 = vdwg.mxu0
      %1584 = vmatpush.bf16.msra.mxu0 %v1386
      %1585 = vmatpush.bf16.msra.mxu0 %v1384
      %1586 = vmatpush.bf16.msra.mxu0 %v1382
      %1587 = vmatpush.bf16.msra.mxu0 %v1380
      %1588 = vmatpush.bf16.msra.mxu0 %v1378
      %1589 = vmatpush.bf16.msra.mxu0 %v1376
      %1590 = vmatpush.bf16.msra.mxu0 %v1374
      %1591 = vmatpush.bf16.msra.mxu0 %v1372
      %1592 = vmatmul.bf16.gmra.mxu0 %v1032
      %v1593 = vpop.f32.mrf.mxu0
      %v1594 = vadd.f32 %v1565, %v1593
      %v1595 = vpop.f32.mrf.mxu0
      %v1596 = vadd.f32 %v1567, %v1595
      %1597 = vmatmul.bf16.gmra.mxu0 %v1037
      %v1598 = vpop.f32.mrf.mxu0
      %v1599 = vadd.f32 %v1570, %v1598
      %v1600 = vpop.f32.mrf.mxu0
      %v1601 = vadd.f32 %v1572, %v1600
      %1602 = vmatmul.bf16.gmra.mxu0 %v1042
      %v1603 = vpop.f32.mrf.mxu0
      %v1604 = vadd.f32 %v1575, %v1603
      %v1605 = vpop.f32.mrf.mxu0
      %v1606 = vadd.f32 %v1577, %v1605
      %1607 = vmatmul.bf16.gmra.mxu0 %v1047
      %v1608 = vpop.f32.mrf.mxu0
      %v1609 = vadd.f32 %v1580, %v1608
      %v1610 = vpop.f32.mrf.mxu0
      %v1611 = vadd.f32 %v1582, %v1610
      %1612 = vdwg.mxu0
      %1613 = vmatpush.bf16.msra.mxu0 %v1323
      %1614 = vmatpush.bf16.msra.mxu0 %v1321
      %1615 = vmatpush.bf16.msra.mxu0 %v1319
      %1616 = vmatpush.bf16.msra.mxu0 %v1317
      %1617 = vmatpush.bf16.msra.mxu0 %v1315
      %1618 = vmatpush.bf16.msra.mxu0 %v1313
      %1619 = vmatpush.bf16.msra.mxu0 %v1311
      %1620 = vmatpush.bf16.msra.mxu0 %v1309
      %1621 = vmatmul.bf16.gmra.mxu0 %v1028
      %v1622 = vpop.f32.mrf.mxu0
      %v1623 = vadd.f32 0.0, %v1622
      %v1624 = vpop.f32.mrf.mxu0
      %v1625 = vadd.f32 0.0, %v1624
      %1626 = vmatmul.bf16.gmra.mxu0 %v1033
      %v1627 = vpop.f32.mrf.mxu0
      %v1628 = vadd.f32 0.0, %v1627
      %v1629 = vpop.f32.mrf.mxu0
      %v1630 = vadd.f32 0.0, %v1629
      %1631 = vmatmul.bf16.gmra.mxu0 %v1038
      %v1632 = vpop.f32.mrf.mxu0
      %v1633 = vadd.f32 0.0, %v1632
      %v1634 = vpop.f32.mrf.mxu0
      %v1635 = vadd.f32 0.0, %v1634
      %1636 = vmatmul.bf16.gmra.mxu0 %v1043
      %v1637 = vpop.f32.mrf.mxu0
      %v1638 = vadd.f32 0.0, %v1637
      %v1639 = vpop.f32.mrf.mxu0
      %v1640 = vadd.f32 0.0, %v1639
      %1641 = vdwg.mxu0
      %1642 = vmatpush.bf16.msra.mxu0 %v1339
      %1643 = vmatpush.bf16.msra.mxu0 %v1337
      %1644 = vmatpush.bf16.msra.mxu0 %v1335
      %1645 = vmatpush.bf16.msra.mxu0 %v1333
      %1646 = vmatpush.bf16.msra.mxu0 %v1331
      %1647 = vmatpush.bf16.msra.mxu0 %v1329
      %1648 = vmatpush.bf16.msra.mxu0 %v1327
      %1649 = vmatpush.bf16.msra.mxu0 %v1325
      %1650 = vmatmul.bf16.gmra.mxu0 %v1029
      %v1651 = vpop.f32.mrf.mxu0
      %v1652 = vadd.f32 %v1623, %v1651
      %v1653 = vpop.f32.mrf.mxu0
      %v1654 = vadd.f32 %v1625, %v1653
      %1655 = vmatmul.bf16.gmra.mxu0 %v1034
      %v1656 = vpop.f32.mrf.mxu0
      %v1657 = vadd.f32 %v1628, %v1656
      %v1658 = vpop.f32.mrf.mxu0
      %v1659 = vadd.f32 %v1630, %v1658
      %1660 = vmatmul.bf16.gmra.mxu0 %v1039
      %v1661 = vpop.f32.mrf.mxu0
      %v1662 = vadd.f32 %v1633, %v1661
      %v1663 = vpop.f32.mrf.mxu0
      %v1664 = vadd.f32 %v1635, %v1663
      %1665 = vmatmul.bf16.gmra.mxu0 %v1044
      %v1666 = vpop.f32.mrf.mxu0
      %v1667 = vadd.f32 %v1638, %v1666
      %v1668 = vpop.f32.mrf.mxu0
      %v1669 = vadd.f32 %v1640, %v1668
      %1670 = vdwg.mxu0
      %1671 = vmatpush.bf16.msra.mxu0 %v1355
      %1672 = vmatpush.bf16.msra.mxu0 %v1353
      %1673 = vmatpush.bf16.msra.mxu0 %v1351
      %1674 = vmatpush.bf16.msra.mxu0 %v1349
      %1675 = vmatpush.bf16.msra.mxu0 %v1347
      %1676 = vmatpush.bf16.msra.mxu0 %v1345
      %1677 = vmatpush.bf16.msra.mxu0 %v1343
      %1678 = vmatpush.bf16.msra.mxu0 %v1341
      %1679 = vmatmul.bf16.gmra.mxu0 %v1030
      %v1680 = vpop.f32.mrf.mxu0
      %v1681 = vadd.f32 %v1652, %v1680
      %v1682 = vpop.f32.mrf.mxu0
      %v1683 = vadd.f32 %v1654, %v1682
      %1684 = vmatmul.bf16.gmra.mxu0 %v1035
      %v1685 = vpop.f32.mrf.mxu0
      %v1686 = vadd.f32 %v1657, %v1685
      %v1687 = vpop.f32.mrf.mxu0
      %v1688 = vadd.f32 %v1659, %v1687
      %1689 = vmatmul.bf16.gmra.mxu0 %v1040
      %v1690 = vpop.f32.mrf.mxu0
      %v1691 = vadd.f32 %v1662, %v1690
      %v1692 = vpop.f32.mrf.mxu0
      %v1693 = vadd.f32 %v1664, %v1692
      %1694 = vmatmul.bf16.gmra.mxu0 %v1045
      %v1695 = vpop.f32.mrf.mxu0
      %v1696 = vadd.f32 %v1667, %v1695
      %v1697 = vpop.f32.mrf.mxu0
      %v1698 = vadd.f32 %v1669, %v1697
      %1699 = vdwg.mxu0
      %1700 = vmatpush.bf16.msra.mxu0 %v1371
      %1701 = vmatpush.bf16.msra.mxu0 %v1369
      %1702 = vmatpush.bf16.msra.mxu0 %v1367
      %1703 = vmatpush.bf16.msra.mxu0 %v1365
      %1704 = vmatpush.bf16.msra.mxu0 %v1363
      %1705 = vmatpush.bf16.msra.mxu0 %v1361
      %1706 = vmatpush.bf16.msra.mxu0 %v1359
      %1707 = vmatpush.bf16.msra.mxu0 %v1357
      %1708 = vmatmul.bf16.gmra.mxu0 %v1031
      %v1709 = vpop.f32.mrf.mxu0
      %v1710 = vadd.f32 %v1681, %v1709
      %v1711 = vpop.f32.mrf.mxu0
      %v1712 = vadd.f32 %v1683, %v1711
      %1713 = vmatmul.bf16.gmra.mxu0 %v1036
      %v1714 = vpop.f32.mrf.mxu0
      %v1715 = vadd.f32 %v1686, %v1714
      %v1716 = vpop.f32.mrf.mxu0
      %v1717 = vadd.f32 %v1688, %v1716
      %1718 = vmatmul.bf16.gmra.mxu0 %v1041
      %v1719 = vpop.f32.mrf.mxu0
      %v1720 = vadd.f32 %v1691, %v1719
      %v1721 = vpop.f32.mrf.mxu0
      %v1722 = vadd.f32 %v1693, %v1721
      %1723 = vmatmul.bf16.gmra.mxu0 %v1046
      %v1724 = vpop.f32.mrf.mxu0
      %v1725 = vadd.f32 %v1696, %v1724
      %v1726 = vpop.f32.mrf.mxu0
      %v1727 = vadd.f32 %v1698, %v1726
      %1728 = vdwg.mxu0
      %1729 = vmatpush.bf16.msra.mxu0 %v1387
      %1730 = vmatpush.bf16.msra.mxu0 %v1385
      %1731 = vmatpush.bf16.msra.mxu0 %v1383
      %1732 = vmatpush.bf16.msra.mxu0 %v1381
      %1733 = vmatpush.bf16.msra.mxu0 %v1379
      %1734 = vmatpush.bf16.msra.mxu0 %v1377
      %1735 = vmatpush.bf16.msra.mxu0 %v1375
      %1736 = vmatpush.bf16.msra.mxu0 %v1373
      %1737 = vmatmul.bf16.gmra.mxu0 %v1032
      %v1738 = vpop.f32.mrf.mxu0
      %v1739 = vadd.f32 %v1710, %v1738
      %v1740 = vpop.f32.mrf.mxu0
      %v1741 = vadd.f32 %v1712, %v1740
      %1742 = vmatmul.bf16.gmra.mxu0 %v1037
      %v1743 = vpop.f32.mrf.mxu0
      %v1744 = vadd.f32 %v1715, %v1743
      %v1745 = vpop.f32.mrf.mxu0
      %v1746 = vadd.f32 %v1717, %v1745
      %1747 = vmatmul.bf16.gmra.mxu0 %v1042
      %v1748 = vpop.f32.mrf.mxu0
      %v1749 = vadd.f32 %v1720, %v1748
      %v1750 = vpop.f32.mrf.mxu0
      %v1751 = vadd.f32 %v1722, %v1750
      %1752 = vmatmul.bf16.gmra.mxu0 %v1047
      %v1753 = vpop.f32.mrf.mxu0
      %v1754 = vadd.f32 %v1725, %v1753
      %v1755 = vpop.f32.mrf.mxu0
      %v1756 = vadd.f32 %v1727, %v1755
      %1757 = vdwg.mxu0
      %v1758 = vpack.c.b16 %v718, %v716
      %v1759 = vpack.c.b16 %v840, %v836
      %v1760 = vpack.c.b16 %v841, %v837
      %v1761 = vpack.c.b16 %v842, %v838
      %v1762 = vpack.c.b16 %v843, %v839
      %v1763 = vpack.c.b16 %v722, %v720
      %v1764 = vpack.c.b16 %v848, %v844
      %v1765 = vpack.c.b16 %v849, %v845
      %v1766 = vpack.c.b16 %v850, %v846
      %v1767 = vpack.c.b16 %v851, %v847
      %v1768 = vpack.c.b16 %v726, %v724
      %v1769 = vpack.c.b16 %v856, %v852
      %v1770 = vpack.c.b16 %v857, %v853
      %v1771 = vpack.c.b16 %v858, %v854
      %v1772 = vpack.c.b16 %v859, %v855
      %v1773 = vpack.c.b16 %v730, %v728
      %v1774 = vpack.c.b16 %v864, %v860
      %v1775 = vpack.c.b16 %v865, %v861
      %v1776 = vpack.c.b16 %v866, %v862
      %v1777 = vpack.c.b16 %v867, %v863
      %v1878 = vunpack.c.l.b16 %v868
      %v1879 = vunpack.c.h.b16 %v868
      %v1880 = vunpack.c.l.b16 %v869
      %v1881 = vunpack.c.h.b16 %v869
      %v1882 = vunpack.c.l.b16 %v870
      %v1883 = vunpack.c.h.b16 %v870
      %v1884 = vunpack.c.l.b16 %v871
      %v1885 = vunpack.c.h.b16 %v871
      %v1886 = vunpack.c.l.b16 %v872
      %v1887 = vunpack.c.h.b16 %v872
      %v1888 = vunpack.c.l.b16 %v873
      %v1889 = vunpack.c.h.b16 %v873
      %v1890 = vunpack.c.l.b16 %v874
      %v1891 = vunpack.c.h.b16 %v874
      %v1892 = vunpack.c.l.b16 %v875
      %v1893 = vunpack.c.h.b16 %v875
      %v1894 = vunpack.c.l.b16 %v876
      %v1895 = vunpack.c.h.b16 %v876
      %v1896 = vunpack.c.l.b16 %v877
      %v1897 = vunpack.c.h.b16 %v877
      %v1898 = vunpack.c.l.b16 %v878
      %v1899 = vunpack.c.h.b16 %v878
      %v1900 = vunpack.c.l.b16 %v879
      %v1901 = vunpack.c.h.b16 %v879
      %v1902 = vunpack.c.l.b16 %v880
      %v1903 = vunpack.c.h.b16 %v880
      %v1904 = vunpack.c.l.b16 %v881
      %v1905 = vunpack.c.h.b16 %v881
      %v1906 = vunpack.c.l.b16 %v882
      %v1907 = vunpack.c.h.b16 %v882
      %v1908 = vunpack.c.l.b16 %v883
      %v1909 = vunpack.c.h.b16 %v883
      %v1910 = vunpack.c.l.b16 %v884
      %v1911 = vunpack.c.h.b16 %v884
      %v1912 = vunpack.c.l.b16 %v885
      %v1913 = vunpack.c.h.b16 %v885
      %v1914 = vunpack.c.l.b16 %v886
      %v1915 = vunpack.c.h.b16 %v886
      %v1916 = vunpack.c.l.b16 %v887
      %v1917 = vunpack.c.h.b16 %v887
      %v1918 = vunpack.c.l.b16 %v888
      %v1919 = vunpack.c.h.b16 %v888
      %v1920 = vunpack.c.l.b16 %v889
      %v1921 = vunpack.c.h.b16 %v889
      %v1922 = vunpack.c.l.b16 %v890
      %v1923 = vunpack.c.h.b16 %v890
      %v1924 = vunpack.c.l.b16 %v891
      %v1925 = vunpack.c.h.b16 %v891
      %v1926 = vunpack.c.l.b16 %v892
      %v1927 = vunpack.c.h.b16 %v892
      %v1928 = vunpack.c.l.b16 %v893
      %v1929 = vunpack.c.h.b16 %v893
      %v1930 = vunpack.c.l.b16 %v894
      %v1931 = vunpack.c.h.b16 %v894
      %v1932 = vunpack.c.l.b16 %v895
      %v1933 = vunpack.c.h.b16 %v895
      %v1934 = vunpack.c.l.b16 %v896
      %v1935 = vunpack.c.h.b16 %v896
      %v1936 = vunpack.c.l.b16 %v897
      %v1937 = vunpack.c.h.b16 %v897
      %v1938 = vunpack.c.l.b16 %v898
      %v1939 = vunpack.c.h.b16 %v898
      %v1940 = vunpack.c.l.b16 %v899
      %v1941 = vunpack.c.h.b16 %v899
      %v1942 = vunpack.c.l.b16 %v900
      %v1943 = vunpack.c.h.b16 %v900
      %v1944 = vunpack.c.l.b16 %v901
      %v1945 = vunpack.c.h.b16 %v901
      %v1946 = vunpack.c.l.b16 %v902
      %v1947 = vunpack.c.h.b16 %v902
      %v1948 = vunpack.c.l.b16 %v903
      %v1949 = vunpack.c.h.b16 %v903
      %v1950 = vunpack.c.l.b16 %v904
      %v1951 = vunpack.c.h.b16 %v904
      %v1952 = vunpack.c.l.b16 %v905
      %v1953 = vunpack.c.h.b16 %v905
      %v1954 = vunpack.c.l.b16 %v906
      %v1955 = vunpack.c.h.b16 %v906
      %v1956 = vunpack.c.l.b16 %v907
      %v1957 = vunpack.c.h.b16 %v907
      %v1958 = vunpack.c.l.b16 %v908
      %v1959 = vunpack.c.h.b16 %v908
      %v1960 = vunpack.c.l.b16 %v909
      %v1961 = vunpack.c.h.b16 %v909
      %v1962 = vunpack.c.l.b16 %v910
      %v1963 = vunpack.c.h.b16 %v910
      %v1964 = vunpack.c.l.b16 %v911
      %v1965 = vunpack.c.h.b16 %v911
      %v1966 = vunpack.c.l.b16 %v912
      %v1967 = vunpack.c.h.b16 %v912
      %v1968 = vunpack.c.l.b16 %v913
      %v1969 = vunpack.c.h.b16 %v913
      %v1970 = vunpack.c.l.b16 %v914
      %v1971 = vunpack.c.h.b16 %v914
      %v1972 = vunpack.c.l.b16 %v915
      %v1973 = vunpack.c.h.b16 %v915
      %v1974 = vunpack.c.l.b16 %v916
      %v1975 = vunpack.c.h.b16 %v916
      %v1976 = vunpack.c.l.b16 %v917
      %v1977 = vunpack.c.h.b16 %v917
      %v1978 = vunpack.c.l.b16 %v918
      %v1979 = vunpack.c.h.b16 %v918
      %v1980 = vunpack.c.l.b16 %v919
      %v1981 = vunpack.c.h.b16 %v919
      %v1982 = vunpack.c.l.b16 %v920
      %v1983 = vunpack.c.h.b16 %v920
      %v1984 = vunpack.c.l.b16 %v921
      %v1985 = vunpack.c.h.b16 %v921
      %v1986 = vunpack.c.l.b16 %v922
      %v1987 = vunpack.c.h.b16 %v922
      %v1988 = vunpack.c.l.b16 %v923
      %v1989 = vunpack.c.h.b16 %v923
      %v1990 = vunpack.c.l.b16 %v924
      %v1991 = vunpack.c.h.b16 %v924
      %v1992 = vunpack.c.l.b16 %v925
      %v1993 = vunpack.c.h.b16 %v925
      %v1994 = vunpack.c.l.b16 %v926
      %v1995 = vunpack.c.h.b16 %v926
      %v1996 = vunpack.c.l.b16 %v927
      %v1997 = vunpack.c.h.b16 %v927
      %v1998 = vunpack.c.l.b16 %v928
      %v1999 = vunpack.c.h.b16 %v928
      %v2000 = vunpack.c.l.b16 %v929
      %v2001 = vunpack.c.h.b16 %v929
      %v2002 = vunpack.c.l.b16 %v930
      %v2003 = vunpack.c.h.b16 %v930
      %v2004 = vunpack.c.l.b16 %v931
      %v2005 = vunpack.c.h.b16 %v931
      %v2006 = vunpack.c.l.b16 %v932
      %v2007 = vunpack.c.h.b16 %v932
      %v2008 = vunpack.c.l.b16 %v933
      %v2009 = vunpack.c.h.b16 %v933
      %v2010 = vunpack.c.l.b16 %v934
      %v2011 = vunpack.c.h.b16 %v934
      %v2012 = vunpack.c.l.b16 %v935
      %v2013 = vunpack.c.h.b16 %v935
      %v2014 = vunpack.c.l.b16 %v936
      %v2015 = vunpack.c.h.b16 %v936
      %v2016 = vunpack.c.l.b16 %v937
      %v2017 = vunpack.c.h.b16 %v937
      %v2018 = vunpack.c.l.b16 %v938
      %v2019 = vunpack.c.h.b16 %v938
      %v2020 = vunpack.c.l.b16 %v939
      %v2021 = vunpack.c.h.b16 %v939
      %v2022 = vunpack.c.l.b16 %v940
      %v2023 = vunpack.c.h.b16 %v940
      %v2024 = vunpack.c.l.b16 %v941
      %v2025 = vunpack.c.h.b16 %v941
      %v2026 = vunpack.c.l.b16 %v942
      %v2027 = vunpack.c.h.b16 %v942
      %v2028 = vunpack.c.l.b16 %v943
      %v2029 = vunpack.c.h.b16 %v943
      %v2030 = vunpack.c.l.b16 %v944
      %v2031 = vunpack.c.h.b16 %v944
      %v2032 = vunpack.c.l.b16 %v945
      %v2033 = vunpack.c.h.b16 %v945
      %v2034 = vunpack.c.l.b16 %v946
      %v2035 = vunpack.c.h.b16 %v946
      %v2036 = vunpack.c.l.b16 %v947
      %v2037 = vunpack.c.h.b16 %v947
      %v2038 = vpack.c.b16 %v1880, %v1878
      %v2039 = vpack.c.b16 %v1881, %v1879
      %v2040 = vpack.c.b16 %v1884, %v1882
      %v2041 = vpack.c.b16 %v1885, %v1883
      %v2042 = vpack.c.b16 %v1888, %v1886
      %v2043 = vpack.c.b16 %v1889, %v1887
      %v2044 = vpack.c.b16 %v1892, %v1890
      %v2045 = vpack.c.b16 %v1893, %v1891
      %v2046 = vpack.c.b16 %v1896, %v1894
      %v2047 = vpack.c.b16 %v1897, %v1895
      %v2048 = vpack.c.b16 %v1900, %v1898
      %v2049 = vpack.c.b16 %v1901, %v1899
      %v2050 = vpack.c.b16 %v1904, %v1902
      %v2051 = vpack.c.b16 %v1905, %v1903
      %v2052 = vpack.c.b16 %v1908, %v1906
      %v2053 = vpack.c.b16 %v1909, %v1907
      %v2054 = vpack.c.b16 %v1912, %v1910
      %v2055 = vpack.c.b16 %v1913, %v1911
      %v2056 = vpack.c.b16 %v1916, %v1914
      %v2057 = vpack.c.b16 %v1917, %v1915
      %v2058 = vpack.c.b16 %v1920, %v1918
      %v2059 = vpack.c.b16 %v1921, %v1919
      %v2060 = vpack.c.b16 %v1924, %v1922
      %v2061 = vpack.c.b16 %v1925, %v1923
      %v2062 = vpack.c.b16 %v1928, %v1926
      %v2063 = vpack.c.b16 %v1929, %v1927
      %v2064 = vpack.c.b16 %v1932, %v1930
      %v2065 = vpack.c.b16 %v1933, %v1931
      %v2066 = vpack.c.b16 %v1936, %v1934
      %v2067 = vpack.c.b16 %v1937, %v1935
      %v2068 = vpack.c.b16 %v1940, %v1938
      %v2069 = vpack.c.b16 %v1941, %v1939
      %v2070 = vpack.c.b16 %v1944, %v1942
      %v2071 = vpack.c.b16 %v1945, %v1943
      %v2072 = vpack.c.b16 %v1948, %v1946
      %v2073 = vpack.c.b16 %v1949, %v1947
      %v2074 = vpack.c.b16 %v1952, %v1950
      %v2075 = vpack.c.b16 %v1953, %v1951
      %v2076 = vpack.c.b16 %v1956, %v1954
      %v2077 = vpack.c.b16 %v1957, %v1955
      %v2078 = vpack.c.b16 %v1960, %v1958
      %v2079 = vpack.c.b16 %v1961, %v1959
      %v2080 = vpack.c.b16 %v1964, %v1962
      %v2081 = vpack.c.b16 %v1965, %v1963
      %v2082 = vpack.c.b16 %v1968, %v1966
      %v2083 = vpack.c.b16 %v1969, %v1967
      %v2084 = vpack.c.b16 %v1972, %v1970
      %v2085 = vpack.c.b16 %v1973, %v1971
      %v2086 = vpack.c.b16 %v1976, %v1974
      %v2087 = vpack.c.b16 %v1977, %v1975
      %v2088 = vpack.c.b16 %v1980, %v1978
      %v2089 = vpack.c.b16 %v1981, %v1979
      %v2090 = vpack.c.b16 %v1984, %v1982
      %v2091 = vpack.c.b16 %v1985, %v1983
      %v2092 = vpack.c.b16 %v1988, %v1986
      %v2093 = vpack.c.b16 %v1989, %v1987
      %v2094 = vpack.c.b16 %v1992, %v1990
      %v2095 = vpack.c.b16 %v1993, %v1991
      %v2096 = vpack.c.b16 %v1996, %v1994
      %v2097 = vpack.c.b16 %v1997, %v1995
      %v2098 = vpack.c.b16 %v2000, %v1998
      %v2099 = vpack.c.b16 %v2001, %v1999
      %v2100 = vpack.c.b16 %v2004, %v2002
      %v2101 = vpack.c.b16 %v2005, %v2003
      %v2102 = vpack.c.b16 %v2008, %v2006
      %v2103 = vpack.c.b16 %v2009, %v2007
      %v2104 = vpack.c.b16 %v2012, %v2010
      %v2105 = vpack.c.b16 %v2013, %v2011
      %v2106 = vpack.c.b16 %v2016, %v2014
      %v2107 = vpack.c.b16 %v2017, %v2015
      %v2108 = vpack.c.b16 %v2020, %v2018
      %v2109 = vpack.c.b16 %v2021, %v2019
      %v2110 = vpack.c.b16 %v2024, %v2022
      %v2111 = vpack.c.b16 %v2025, %v2023
      %v2112 = vpack.c.b16 %v2028, %v2026
      %v2113 = vpack.c.b16 %v2029, %v2027
      %v2114 = vpack.c.b16 %v2032, %v2030
      %v2115 = vpack.c.b16 %v2033, %v2031
      %v2116 = vpack.c.b16 %v2036, %v2034
      %v2117 = vpack.c.b16 %v2037, %v2035
      %2198 = vmatpush.bf16.msra.mxu0 %v2052
      %2199 = vmatpush.bf16.msra.mxu0 %v2050
      %2200 = vmatpush.bf16.msra.mxu0 %v2048
      %2201 = vmatpush.bf16.msra.mxu0 %v2046
      %2202 = vmatpush.bf16.msra.mxu0 %v2044
      %2203 = vmatpush.bf16.msra.mxu0 %v2042
      %2204 = vmatpush.bf16.msra.mxu0 %v2040
      %2205 = vmatpush.bf16.msra.mxu0 %v2038
      %2206 = vmatmul.bf16.gmra.mxu0 %v1758
      %v2207 = vpop.f32.mrf.mxu0
      %v2208 = vadd.f32 %v1594, %v2207
      %v2209 = vpop.f32.mrf.mxu0
      %v2210 = vadd.f32 %v1596, %v2209
      %2211 = vmatmul.bf16.gmra.mxu0 %v1763
      %v2212 = vpop.f32.mrf.mxu0
      %v2213 = vadd.f32 %v1599, %v2212
      %v2214 = vpop.f32.mrf.mxu0
      %v2215 = vadd.f32 %v1601, %v2214
      %2216 = vmatmul.bf16.gmra.mxu0 %v1768
      %v2217 = vpop.f32.mrf.mxu0
      %v2218 = vadd.f32 %v1604, %v2217
      %v2219 = vpop.f32.mrf.mxu0
      %v2220 = vadd.f32 %v1606, %v2219
      %2221 = vmatmul.bf16.gmra.mxu0 %v1773
      %v2222 = vpop.f32.mrf.mxu0
      %v2223 = vadd.f32 %v1609, %v2222
      %v2224 = vpop.f32.mrf.mxu0
      %v2225 = vadd.f32 %v1611, %v2224
      %2226 = vdwg.mxu0
      %2227 = vmatpush.bf16.msra.mxu0 %v2068
      %2228 = vmatpush.bf16.msra.mxu0 %v2066
      %2229 = vmatpush.bf16.msra.mxu0 %v2064
      %2230 = vmatpush.bf16.msra.mxu0 %v2062
      %2231 = vmatpush.bf16.msra.mxu0 %v2060
      %2232 = vmatpush.bf16.msra.mxu0 %v2058
      %2233 = vmatpush.bf16.msra.mxu0 %v2056
      %2234 = vmatpush.bf16.msra.mxu0 %v2054
      %2235 = vmatmul.bf16.gmra.mxu0 %v1759
      %v2236 = vpop.f32.mrf.mxu0
      %v2237 = vadd.f32 %v2208, %v2236
      %v2238 = vpop.f32.mrf.mxu0
      %v2239 = vadd.f32 %v2210, %v2238
      %2240 = vmatmul.bf16.gmra.mxu0 %v1764
      %v2241 = vpop.f32.mrf.mxu0
      %v2242 = vadd.f32 %v2213, %v2241
      %v2243 = vpop.f32.mrf.mxu0
      %v2244 = vadd.f32 %v2215, %v2243
      %2245 = vmatmul.bf16.gmra.mxu0 %v1769
      %v2246 = vpop.f32.mrf.mxu0
      %v2247 = vadd.f32 %v2218, %v2246
      %v2248 = vpop.f32.mrf.mxu0
      %v2249 = vadd.f32 %v2220, %v2248
      %2250 = vmatmul.bf16.gmra.mxu0 %v1774
      %v2251 = vpop.f32.mrf.mxu0
      %v2252 = vadd.f32 %v2223, %v2251
      %v2253 = vpop.f32.mrf.mxu0
      %v2254 = vadd.f32 %v2225, %v2253
      %2255 = vdwg.mxu0
      %2256 = vmatpush.bf16.msra.mxu0 %v2084
      %2257 = vmatpush.bf16.msra.mxu0 %v2082
      %2258 = vmatpush.bf16.msra.mxu0 %v2080
      %2259 = vmatpush.bf16.msra.mxu0 %v2078
      %2260 = vmatpush.bf16.msra.mxu0 %v2076
      %2261 = vmatpush.bf16.msra.mxu0 %v2074
      %2262 = vmatpush.bf16.msra.mxu0 %v2072
      %2263 = vmatpush.bf16.msra.mxu0 %v2070
      %2264 = vmatmul.bf16.gmra.mxu0 %v1760
      %v2265 = vpop.f32.mrf.mxu0
      %v2266 = vadd.f32 %v2237, %v2265
      %v2267 = vpop.f32.mrf.mxu0
      %v2268 = vadd.f32 %v2239, %v2267
      %2269 = vmatmul.bf16.gmra.mxu0 %v1765
      %v2270 = vpop.f32.mrf.mxu0
      %v2271 = vadd.f32 %v2242, %v2270
      %v2272 = vpop.f32.mrf.mxu0
      %v2273 = vadd.f32 %v2244, %v2272
      %2274 = vmatmul.bf16.gmra.mxu0 %v1770
      %v2275 = vpop.f32.mrf.mxu0
      %v2276 = vadd.f32 %v2247, %v2275
      %v2277 = vpop.f32.mrf.mxu0
      %v2278 = vadd.f32 %v2249, %v2277
      %2279 = vmatmul.bf16.gmra.mxu0 %v1775
      %v2280 = vpop.f32.mrf.mxu0
      %v2281 = vadd.f32 %v2252, %v2280
      %v2282 = vpop.f32.mrf.mxu0
      %v2283 = vadd.f32 %v2254, %v2282
      %2284 = vdwg.mxu0
      %2285 = vmatpush.bf16.msra.mxu0 %v2100
      %2286 = vmatpush.bf16.msra.mxu0 %v2098
      %2287 = vmatpush.bf16.msra.mxu0 %v2096
      %2288 = vmatpush.bf16.msra.mxu0 %v2094
      %2289 = vmatpush.bf16.msra.mxu0 %v2092
      %2290 = vmatpush.bf16.msra.mxu0 %v2090
      %2291 = vmatpush.bf16.msra.mxu0 %v2088
      %2292 = vmatpush.bf16.msra.mxu0 %v2086
      %2293 = vmatmul.bf16.gmra.mxu0 %v1761
      %v2294 = vpop.f32.mrf.mxu0
      %v2295 = vadd.f32 %v2266, %v2294
      %v2296 = vpop.f32.mrf.mxu0
      %v2297 = vadd.f32 %v2268, %v2296
      %2298 = vmatmul.bf16.gmra.mxu0 %v1766
      %v2299 = vpop.f32.mrf.mxu0
      %v2300 = vadd.f32 %v2271, %v2299
      %v2301 = vpop.f32.mrf.mxu0
      %v2302 = vadd.f32 %v2273, %v2301
      %2303 = vmatmul.bf16.gmra.mxu0 %v1771
      %v2304 = vpop.f32.mrf.mxu0
      %v2305 = vadd.f32 %v2276, %v2304
      %v2306 = vpop.f32.mrf.mxu0
      %v2307 = vadd.f32 %v2278, %v2306
      %2308 = vmatmul.bf16.gmra.mxu0 %v1776
      %v2309 = vpop.f32.mrf.mxu0
      %v2310 = vadd.f32 %v2281, %v2309
      %v2311 = vpop.f32.mrf.mxu0
      %v2312 = vadd.f32 %v2283, %v2311
      %2313 = vdwg.mxu0
      %2314 = vmatpush.bf16.msra.mxu0 %v2116
      %2315 = vmatpush.bf16.msra.mxu0 %v2114
      %2316 = vmatpush.bf16.msra.mxu0 %v2112
      %2317 = vmatpush.bf16.msra.mxu0 %v2110
      %2318 = vmatpush.bf16.msra.mxu0 %v2108
      %2319 = vmatpush.bf16.msra.mxu0 %v2106
      %2320 = vmatpush.bf16.msra.mxu0 %v2104
      %2321 = vmatpush.bf16.msra.mxu0 %v2102
      %2322 = vmatmul.bf16.gmra.mxu0 %v1762
      %v2323 = vpop.f32.mrf.mxu0
      %v2324 = vadd.f32 %v2295, %v2323
      %v2325 = vpop.f32.mrf.mxu0
      %v2326 = vadd.f32 %v2297, %v2325
      %2327 = vmatmul.bf16.gmra.mxu0 %v1767
      %v2328 = vpop.f32.mrf.mxu0
      %v2329 = vadd.f32 %v2300, %v2328
      %v2330 = vpop.f32.mrf.mxu0
      %v2331 = vadd.f32 %v2302, %v2330
      %2332 = vmatmul.bf16.gmra.mxu0 %v1772
      %v2333 = vpop.f32.mrf.mxu0
      %v2334 = vadd.f32 %v2305, %v2333
      %v2335 = vpop.f32.mrf.mxu0
      %v2336 = vadd.f32 %v2307, %v2335
      %2337 = vmatmul.bf16.gmra.mxu0 %v1777
      %v2338 = vpop.f32.mrf.mxu0
      %v2339 = vadd.f32 %v2310, %v2338
      %v2340 = vpop.f32.mrf.mxu0
      %v2341 = vadd.f32 %v2312, %v2340
      %2342 = vdwg.mxu0
      %2343 = vmatpush.bf16.msra.mxu0 %v2053
      %2344 = vmatpush.bf16.msra.mxu0 %v2051
      %2345 = vmatpush.bf16.msra.mxu0 %v2049
      %2346 = vmatpush.bf16.msra.mxu0 %v2047
      %2347 = vmatpush.bf16.msra.mxu0 %v2045
      %2348 = vmatpush.bf16.msra.mxu0 %v2043
      %2349 = vmatpush.bf16.msra.mxu0 %v2041
      %2350 = vmatpush.bf16.msra.mxu0 %v2039
      %2351 = vmatmul.bf16.gmra.mxu0 %v1758
      %v2352 = vpop.f32.mrf.mxu0
      %v2353 = vadd.f32 %v1739, %v2352
      %v2354 = vpop.f32.mrf.mxu0
      %v2355 = vadd.f32 %v1741, %v2354
      %2356 = vmatmul.bf16.gmra.mxu0 %v1763
      %v2357 = vpop.f32.mrf.mxu0
      %v2358 = vadd.f32 %v1744, %v2357
      %v2359 = vpop.f32.mrf.mxu0
      %v2360 = vadd.f32 %v1746, %v2359
      %2361 = vmatmul.bf16.gmra.mxu0 %v1768
      %v2362 = vpop.f32.mrf.mxu0
      %v2363 = vadd.f32 %v1749, %v2362
      %v2364 = vpop.f32.mrf.mxu0
      %v2365 = vadd.f32 %v1751, %v2364
      %2366 = vmatmul.bf16.gmra.mxu0 %v1773
      %v2367 = vpop.f32.mrf.mxu0
      %v2368 = vadd.f32 %v1754, %v2367
      %v2369 = vpop.f32.mrf.mxu0
      %v2370 = vadd.f32 %v1756, %v2369
      %2371 = vdwg.mxu0
      %2372 = vmatpush.bf16.msra.mxu0 %v2069
      %2373 = vmatpush.bf16.msra.mxu0 %v2067
      %2374 = vmatpush.bf16.msra.mxu0 %v2065
      %2375 = vmatpush.bf16.msra.mxu0 %v2063
      %2376 = vmatpush.bf16.msra.mxu0 %v2061
      %2377 = vmatpush.bf16.msra.mxu0 %v2059
      %2378 = vmatpush.bf16.msra.mxu0 %v2057
      %2379 = vmatpush.bf16.msra.mxu0 %v2055
      %2380 = vmatmul.bf16.gmra.mxu0 %v1759
      %v2381 = vpop.f32.mrf.mxu0
      %v2382 = vadd.f32 %v2353, %v2381
      %v2383 = vpop.f32.mrf.mxu0
      %v2384 = vadd.f32 %v2355, %v2383
      %2385 = vmatmul.bf16.gmra.mxu0 %v1764
      %v2386 = vpop.f32.mrf.mxu0
      %v2387 = vadd.f32 %v2358, %v2386
      %v2388 = vpop.f32.mrf.mxu0
      %v2389 = vadd.f32 %v2360, %v2388
      %2390 = vmatmul.bf16.gmra.mxu0 %v1769
      %v2391 = vpop.f32.mrf.mxu0
      %v2392 = vadd.f32 %v2363, %v2391
      %v2393 = vpop.f32.mrf.mxu0
      %v2394 = vadd.f32 %v2365, %v2393
      %2395 = vmatmul.bf16.gmra.mxu0 %v1774
      %v2396 = vpop.f32.mrf.mxu0
      %v2397 = vadd.f32 %v2368, %v2396
      %v2398 = vpop.f32.mrf.mxu0
      %v2399 = vadd.f32 %v2370, %v2398
      %2400 = vdwg.mxu0
      %2401 = vmatpush.bf16.msra.mxu0 %v2085
      %2402 = vmatpush.bf16.msra.mxu0 %v2083
      %2403 = vmatpush.bf16.msra.mxu0 %v2081
      %2404 = vmatpush.bf16.msra.mxu0 %v2079
      %2405 = vmatpush.bf16.msra.mxu0 %v2077
      %2406 = vmatpush.bf16.msra.mxu0 %v2075
      %2407 = vmatpush.bf16.msra.mxu0 %v2073
      %2408 = vmatpush.bf16.msra.mxu0 %v2071
      %2409 = vmatmul.bf16.gmra.mxu0 %v1760
      %v2410 = vpop.f32.mrf.mxu0
      %v2411 = vadd.f32 %v2382, %v2410
      %v2412 = vpop.f32.mrf.mxu0
      %v2413 = vadd.f32 %v2384, %v2412
      %2414 = vmatmul.bf16.gmra.mxu0 %v1765
      %v2415 = vpop.f32.mrf.mxu0
      %v2416 = vadd.f32 %v2387, %v2415
      %v2417 = vpop.f32.mrf.mxu0
      %v2418 = vadd.f32 %v2389, %v2417
      %2419 = vmatmul.bf16.gmra.mxu0 %v1770
      %v2420 = vpop.f32.mrf.mxu0
      %v2421 = vadd.f32 %v2392, %v2420
      %v2422 = vpop.f32.mrf.mxu0
      %v2423 = vadd.f32 %v2394, %v2422
      %2424 = vmatmul.bf16.gmra.mxu0 %v1775
      %v2425 = vpop.f32.mrf.mxu0
      %v2426 = vadd.f32 %v2397, %v2425
      %v2427 = vpop.f32.mrf.mxu0
      %v2428 = vadd.f32 %v2399, %v2427
      %2429 = vdwg.mxu0
      %2430 = vmatpush.bf16.msra.mxu0 %v2101
      %2431 = vmatpush.bf16.msra.mxu0 %v2099
      %2432 = vmatpush.bf16.msra.mxu0 %v2097
      %2433 = vmatpush.bf16.msra.mxu0 %v2095
      %2434 = vmatpush.bf16.msra.mxu0 %v2093
      %2435 = vmatpush.bf16.msra.mxu0 %v2091
      %2436 = vmatpush.bf16.msra.mxu0 %v2089
      %2437 = vmatpush.bf16.msra.mxu0 %v2087
      %2438 = vmatmul.bf16.gmra.mxu0 %v1761
      %v2439 = vpop.f32.mrf.mxu0
      %v2440 = vadd.f32 %v2411, %v2439
      %v2441 = vpop.f32.mrf.mxu0
      %v2442 = vadd.f32 %v2413, %v2441
      %2443 = vmatmul.bf16.gmra.mxu0 %v1766
      %v2444 = vpop.f32.mrf.mxu0
      %v2445 = vadd.f32 %v2416, %v2444
      %v2446 = vpop.f32.mrf.mxu0
      %v2447 = vadd.f32 %v2418, %v2446
      %2448 = vmatmul.bf16.gmra.mxu0 %v1771
      %v2449 = vpop.f32.mrf.mxu0
      %v2450 = vadd.f32 %v2421, %v2449
      %v2451 = vpop.f32.mrf.mxu0
      %v2452 = vadd.f32 %v2423, %v2451
      %2453 = vmatmul.bf16.gmra.mxu0 %v1776
      %v2454 = vpop.f32.mrf.mxu0
      %v2455 = vadd.f32 %v2426, %v2454
      %v2456 = vpop.f32.mrf.mxu0
      %v2457 = vadd.f32 %v2428, %v2456
      %2458 = vdwg.mxu0
      %2459 = vmatpush.bf16.msra.mxu0 %v2117
      %2460 = vmatpush.bf16.msra.mxu0 %v2115
      %2461 = vmatpush.bf16.msra.mxu0 %v2113
      %2462 = vmatpush.bf16.msra.mxu0 %v2111
      %2463 = vmatpush.bf16.msra.mxu0 %v2109
      %2464 = vmatpush.bf16.msra.mxu0 %v2107
      %2465 = vmatpush.bf16.msra.mxu0 %v2105
      %2466 = vmatpush.bf16.msra.mxu0 %v2103
      %2467 = vmatmul.bf16.gmra.mxu0 %v1762
      %v2468 = vpop.f32.mrf.mxu0
      %v2469 = vadd.f32 %v2440, %v2468
      %v2470 = vpop.f32.mrf.mxu0
      %v2471 = vadd.f32 %v2442, %v2470
      %2472 = vmatmul.bf16.gmra.mxu0 %v1767
      %v2473 = vpop.f32.mrf.mxu0
      %v2474 = vadd.f32 %v2445, %v2473
      %v2475 = vpop.f32.mrf.mxu0
      %v2476 = vadd.f32 %v2447, %v2475
      %2477 = vmatmul.bf16.gmra.mxu0 %v1772
      %v2478 = vpop.f32.mrf.mxu0
      %v2479 = vadd.f32 %v2450, %v2478
      %v2480 = vpop.f32.mrf.mxu0
      %v2481 = vadd.f32 %v2452, %v2480
      %2482 = vmatmul.bf16.gmra.mxu0 %v1777
      %v2483 = vpop.f32.mrf.mxu0
      %v2484 = vadd.f32 %v2455, %v2483
      %v2485 = vpop.f32.mrf.mxu0
      %v2486 = vadd.f32 %v2457, %v2485
      %2487 = vdwg.mxu0
      %v2488 = vld [vmem:[%s6] sm:$0x3]
      %v2490 = vperm.slane %v2488, 0
      %v2491 = vperm.slane %v2488, 1
      %v2494 = vadd.f32 %v2324, %v2490
      %v2495 = vadd.f32 %v2469, %v2491
      %v2496 = vadd.f32 %v2326, %v2490
      %v2497 = vadd.f32 %v2471, %v2491
      %v2498 = vadd.f32 %v2329, %v2490
      %v2499 = vadd.f32 %v2474, %v2491
      %v2500 = vadd.f32 %v2331, %v2490
      %v2501 = vadd.f32 %v2476, %v2491
      %v2502 = vadd.f32 %v2334, %v2490
      %v2503 = vadd.f32 %v2479, %v2491
      %v2504 = vadd.f32 %v2336, %v2490
      %v2505 = vadd.f32 %v2481, %v2491
      %v2506 = vadd.f32 %v2339, %v2490
      %v2507 = vadd.f32 %v2484, %v2491
      %v2508 = vadd.f32 %v2341, %v2490
      %v2509 = vadd.f32 %v2486, %v2491
      %v2510 = vxor.u32 %v2494, 2147483648
      %v2511 = vxor.u32 %v2496, 2147483648
      %v2512 = vxor.u32 %v2498, 2147483648
      %v2513 = vxor.u32 %v2500, 2147483648
      %v2514 = vxor.u32 %v2502, 2147483648
      %v2515 = vxor.u32 %v2504, 2147483648
      %v2516 = vxor.u32 %v2506, 2147483648
      %v2517 = vxor.u32 %v2508, 2147483648
      %v2518 = vmul.f32 %v2510, 1.442695
      %v2519 = vpow.pop %v2518
      %v2520 = vmul.f32 %v2511, 1.442695
      %v2521 = vpow.pop %v2520
      %v2522 = vmul.f32 %v2512, 1.442695
      %v2523 = vpow.pop %v2522
      %v2524 = vmul.f32 %v2513, 1.442695
      %v2525 = vpow.pop %v2524
      %v2526 = vmul.f32 %v2514, 1.442695
      %v2527 = vpow.pop %v2526
      %v2528 = vmul.f32 %v2515, 1.442695
      %v2529 = vpow.pop %v2528
      %v2530 = vmul.f32 %v2516, 1.442695
      %v2531 = vpow.pop %v2530
      %v2532 = vmul.f32 %v2517, 1.442695
      %v2533 = vpow.pop %v2532
      %v2534 = vadd.f32 %v2519, 1.0
      %v2535 = vadd.f32 %v2521, 1.0
      %v2536 = vadd.f32 %v2523, 1.0
      %v2537 = vadd.f32 %v2525, 1.0
      %v2538 = vadd.f32 %v2527, 1.0
      %v2539 = vadd.f32 %v2529, 1.0
      %v2540 = vadd.f32 %v2531, 1.0
      %v2541 = vadd.f32 %v2533, 1.0
      %v2542 = vrcp.pop %v2534
      %v2543 = vmul.f32 %v2534, %v2542
      %v2544 = vsub.f32 1.0, %v2543
      %v2545 = vmul.f32 %v2542, %v2544
      %v2546 = vadd.f32 %v2542, %v2545
      %vm2547 = vweird.f32 %v2534
      %vm2548 = vweird.f32 %v2542
      %vm2549 = vmor %vm2547, %vm2548
      %v2550 = vsel %vm2549, %v2542, %v2546
      %v2551 = vand.u32 2147483647, %v2534
      %vm2552 = vcmp.eq.f32.partialorder %v2551, 8.507059e+37
      %v2553 = vand.u32 %v2534, 2147483648
      %v2554 = vor.u32 1.1754944e-38, %v2553
      %v2555 = vsel %vm2552, %v2554, %v2550
      %v2556 = vmul.f32 1.0, %v2555
      %v2557 = vrcp.pop %v2535
      %v2558 = vmul.f32 %v2535, %v2557
      %v2559 = vsub.f32 1.0, %v2558
      %v2560 = vmul.f32 %v2557, %v2559
      %v2561 = vadd.f32 %v2557, %v2560
      %vm2562 = vweird.f32 %v2535
      %vm2563 = vweird.f32 %v2557
      %vm2564 = vmor %vm2562, %vm2563
      %v2565 = vsel %vm2564, %v2557, %v2561
      %v2566 = vand.u32 2147483647, %v2535
      %vm2567 = vcmp.eq.f32.partialorder %v2566, 8.507059e+37
      %v2568 = vand.u32 %v2535, 2147483648
      %v2569 = vor.u32 1.1754944e-38, %v2568
      %v2570 = vsel %vm2567, %v2569, %v2565
      %v2571 = vmul.f32 1.0, %v2570
      %v2572 = vrcp.pop %v2536
      %v2573 = vmul.f32 %v2536, %v2572
      %v2574 = vsub.f32 1.0, %v2573
      %v2575 = vmul.f32 %v2572, %v2574
      %v2576 = vadd.f32 %v2572, %v2575
      %vm2577 = vweird.f32 %v2536
      %vm2578 = vweird.f32 %v2572
      %vm2579 = vmor %vm2577, %vm2578
      %v2580 = vsel %vm2579, %v2572, %v2576
      %v2581 = vand.u32 2147483647, %v2536
      %vm2582 = vcmp.eq.f32.partialorder %v2581, 8.507059e+37
      %v2583 = vand.u32 %v2536, 2147483648
      %v2584 = vor.u32 1.1754944e-38, %v2583
      %v2585 = vsel %vm2582, %v2584, %v2580
      %v2586 = vmul.f32 1.0, %v2585
      %v2587 = vrcp.pop %v2537
      %v2588 = vmul.f32 %v2537, %v2587
      %v2589 = vsub.f32 1.0, %v2588
      %v2590 = vmul.f32 %v2587, %v2589
      %v2591 = vadd.f32 %v2587, %v2590
      %vm2592 = vweird.f32 %v2537
      %vm2593 = vweird.f32 %v2587
      %vm2594 = vmor %vm2592, %vm2593
      %v2595 = vsel %vm2594, %v2587, %v2591
      %v2596 = vand.u32 2147483647, %v2537
      %vm2597 = vcmp.eq.f32.partialorder %v2596, 8.507059e+37
      %v2598 = vand.u32 %v2537, 2147483648
      %v2599 = vor.u32 1.1754944e-38, %v2598
      %v2600 = vsel %vm2597, %v2599, %v2595
      %v2601 = vmul.f32 1.0, %v2600
      %v2602 = vrcp.pop %v2538
      %v2603 = vmul.f32 %v2538, %v2602
      %v2604 = vsub.f32 1.0, %v2603
      %v2605 = vmul.f32 %v2602, %v2604
      %v2606 = vadd.f32 %v2602, %v2605
      %vm2607 = vweird.f32 %v2538
      %vm2608 = vweird.f32 %v2602
      %vm2609 = vmor %vm2607, %vm2608
      %v2610 = vsel %vm2609, %v2602, %v2606
      %v2611 = vand.u32 2147483647, %v2538
      %vm2612 = vcmp.eq.f32.partialorder %v2611, 8.507059e+37
      %v2613 = vand.u32 %v2538, 2147483648
      %v2614 = vor.u32 1.1754944e-38, %v2613
      %v2615 = vsel %vm2612, %v2614, %v2610
      %v2616 = vmul.f32 1.0, %v2615
      %v2617 = vrcp.pop %v2539
      %v2618 = vmul.f32 %v2539, %v2617
      %v2619 = vsub.f32 1.0, %v2618
      %v2620 = vmul.f32 %v2617, %v2619
      %v2621 = vadd.f32 %v2617, %v2620
      %vm2622 = vweird.f32 %v2539
      %vm2623 = vweird.f32 %v2617
      %vm2624 = vmor %vm2622, %vm2623
      %v2625 = vsel %vm2624, %v2617, %v2621
      %v2626 = vand.u32 2147483647, %v2539
      %vm2627 = vcmp.eq.f32.partialorder %v2626, 8.507059e+37
      %v2628 = vand.u32 %v2539, 2147483648
      %v2629 = vor.u32 1.1754944e-38, %v2628
      %v2630 = vsel %vm2627, %v2629, %v2625
      %v2631 = vmul.f32 1.0, %v2630
      %v2632 = vrcp.pop %v2540
      %v2633 = vmul.f32 %v2540, %v2632
      %v2634 = vsub.f32 1.0, %v2633
      %v2635 = vmul.f32 %v2632, %v2634
      %v2636 = vadd.f32 %v2632, %v2635
      %vm2637 = vweird.f32 %v2540
      %vm2638 = vweird.f32 %v2632
      %vm2639 = vmor %vm2637, %vm2638
      %v2640 = vsel %vm2639, %v2632, %v2636
      %v2641 = vand.u32 2147483647, %v2540
      %vm2642 = vcmp.eq.f32.partialorder %v2641, 8.507059e+37
      %v2643 = vand.u32 %v2540, 2147483648
      %v2644 = vor.u32 1.1754944e-38, %v2643
      %v2645 = vsel %vm2642, %v2644, %v2640
      %v2646 = vmul.f32 1.0, %v2645
      %v2647 = vrcp.pop %v2541
      %v2648 = vmul.f32 %v2541, %v2647
      %v2649 = vsub.f32 1.0, %v2648
      %v2650 = vmul.f32 %v2647, %v2649
      %v2651 = vadd.f32 %v2647, %v2650
      %vm2652 = vweird.f32 %v2541
      %vm2653 = vweird.f32 %v2647
      %vm2654 = vmor %vm2652, %vm2653
      %v2655 = vsel %vm2654, %v2647, %v2651
      %v2656 = vand.u32 2147483647, %v2541
      %vm2657 = vcmp.eq.f32.partialorder %v2656, 8.507059e+37
      %v2658 = vand.u32 %v2541, 2147483648
      %v2659 = vor.u32 1.1754944e-38, %v2658
      %v2660 = vsel %vm2657, %v2659, %v2655
      %v2661 = vmul.f32 1.0, %v2660
      %v2662 = vxor.u32 %v2495, 2147483648
      %v2663 = vxor.u32 %v2497, 2147483648
      %v2664 = vxor.u32 %v2499, 2147483648
      %v2665 = vxor.u32 %v2501, 2147483648
      %v2666 = vxor.u32 %v2503, 2147483648
      %v2667 = vxor.u32 %v2505, 2147483648
      %v2668 = vxor.u32 %v2507, 2147483648
      %v2669 = vxor.u32 %v2509, 2147483648
      %v2670 = vmul.f32 %v2662, 1.442695
      %v2671 = vpow.pop %v2670
      %v2672 = vmul.f32 %v2663, 1.442695
      %v2673 = vpow.pop %v2672
      %v2674 = vmul.f32 %v2664, 1.442695
      %v2675 = vpow.pop %v2674
      %v2676 = vmul.f32 %v2665, 1.442695
      %v2677 = vpow.pop %v2676
      %v2678 = vmul.f32 %v2666, 1.442695
      %v2679 = vpow.pop %v2678
      %v2680 = vmul.f32 %v2667, 1.442695
      %v2681 = vpow.pop %v2680
      %v2682 = vmul.f32 %v2668, 1.442695
      %v2683 = vpow.pop %v2682
      %v2684 = vmul.f32 %v2669, 1.442695
      %v2685 = vpow.pop %v2684
      %v2686 = vadd.f32 %v2671, 1.0
      %v2687 = vadd.f32 %v2673, 1.0
      %v2688 = vadd.f32 %v2675, 1.0
      %v2689 = vadd.f32 %v2677, 1.0
      %v2690 = vadd.f32 %v2679, 1.0
      %v2691 = vadd.f32 %v2681, 1.0
      %v2692 = vadd.f32 %v2683, 1.0
      %v2693 = vadd.f32 %v2685, 1.0
      %v2694 = vrcp.pop %v2686
      %v2695 = vmul.f32 %v2686, %v2694
      %v2696 = vsub.f32 1.0, %v2695
      %v2697 = vmul.f32 %v2694, %v2696
      %v2698 = vadd.f32 %v2694, %v2697
      %vm2699 = vweird.f32 %v2686
      %vm2700 = vweird.f32 %v2694
      %vm2701 = vmor %vm2699, %vm2700
      %v2702 = vsel %vm2701, %v2694, %v2698
      %v2703 = vand.u32 2147483647, %v2686
      %vm2704 = vcmp.eq.f32.partialorder %v2703, 8.507059e+37
      %v2705 = vand.u32 %v2686, 2147483648
      %v2706 = vor.u32 1.1754944e-38, %v2705
      %v2707 = vsel %vm2704, %v2706, %v2702
      %v2708 = vmul.f32 1.0, %v2707
      %v2709 = vrcp.pop %v2687
      %v2710 = vmul.f32 %v2687, %v2709
      %v2711 = vsub.f32 1.0, %v2710
      %v2712 = vmul.f32 %v2709, %v2711
      %v2713 = vadd.f32 %v2709, %v2712
      %vm2714 = vweird.f32 %v2687
      %vm2715 = vweird.f32 %v2709
      %vm2716 = vmor %vm2714, %vm2715
      %v2717 = vsel %vm2716, %v2709, %v2713
      %v2718 = vand.u32 2147483647, %v2687
      %vm2719 = vcmp.eq.f32.partialorder %v2718, 8.507059e+37
      %v2720 = vand.u32 %v2687, 2147483648
      %v2721 = vor.u32 1.1754944e-38, %v2720
      %v2722 = vsel %vm2719, %v2721, %v2717
      %v2723 = vmul.f32 1.0, %v2722
      %v2724 = vrcp.pop %v2688
      %v2725 = vmul.f32 %v2688, %v2724
      %v2726 = vsub.f32 1.0, %v2725
      %v2727 = vmul.f32 %v2724, %v2726
      %v2728 = vadd.f32 %v2724, %v2727
      %vm2729 = vweird.f32 %v2688
      %vm2730 = vweird.f32 %v2724
      %vm2731 = vmor %vm2729, %vm2730
      %v2732 = vsel %vm2731, %v2724, %v2728
      %v2733 = vand.u32 2147483647, %v2688
      %vm2734 = vcmp.eq.f32.partialorder %v2733, 8.507059e+37
      %v2735 = vand.u32 %v2688, 2147483648
      %v2736 = vor.u32 1.1754944e-38, %v2735
      %v2737 = vsel %vm2734, %v2736, %v2732
      %v2738 = vmul.f32 1.0, %v2737
      %v2739 = vrcp.pop %v2689
      %v2740 = vmul.f32 %v2689, %v2739
      %v2741 = vsub.f32 1.0, %v2740
      %v2742 = vmul.f32 %v2739, %v2741
      %v2743 = vadd.f32 %v2739, %v2742
      %vm2744 = vweird.f32 %v2689
      %vm2745 = vweird.f32 %v2739
      %vm2746 = vmor %vm2744, %vm2745
      %v2747 = vsel %vm2746, %v2739, %v2743
      %v2748 = vand.u32 2147483647, %v2689
      %vm2749 = vcmp.eq.f32.partialorder %v2748, 8.507059e+37
      %v2750 = vand.u32 %v2689, 2147483648
      %v2751 = vor.u32 1.1754944e-38, %v2750
      %v2752 = vsel %vm2749, %v2751, %v2747
      %v2753 = vmul.f32 1.0, %v2752
      %v2754 = vrcp.pop %v2690
      %v2755 = vmul.f32 %v2690, %v2754
      %v2756 = vsub.f32 1.0, %v2755
      %v2757 = vmul.f32 %v2754, %v2756
      %v2758 = vadd.f32 %v2754, %v2757
      %vm2759 = vweird.f32 %v2690
      %vm2760 = vweird.f32 %v2754
      %vm2761 = vmor %vm2759, %vm2760
      %v2762 = vsel %vm2761, %v2754, %v2758
      %v2763 = vand.u32 2147483647, %v2690
      %vm2764 = vcmp.eq.f32.partialorder %v2763, 8.507059e+37
      %v2765 = vand.u32 %v2690, 2147483648
      %v2766 = vor.u32 1.1754944e-38, %v2765
      %v2767 = vsel %vm2764, %v2766, %v2762
      %v2768 = vmul.f32 1.0, %v2767
      %v2769 = vrcp.pop %v2691
      %v2770 = vmul.f32 %v2691, %v2769
      %v2771 = vsub.f32 1.0, %v2770
      %v2772 = vmul.f32 %v2769, %v2771
      %v2773 = vadd.f32 %v2769, %v2772
      %vm2774 = vweird.f32 %v2691
      %vm2775 = vweird.f32 %v2769
      %vm2776 = vmor %vm2774, %vm2775
      %v2777 = vsel %vm2776, %v2769, %v2773
      %v2778 = vand.u32 2147483647, %v2691
      %vm2779 = vcmp.eq.f32.partialorder %v2778, 8.507059e+37
      %v2780 = vand.u32 %v2691, 2147483648
      %v2781 = vor.u32 1.1754944e-38, %v2780
      %v2782 = vsel %vm2779, %v2781, %v2777
      %v2783 = vmul.f32 1.0, %v2782
      %v2784 = vrcp.pop %v2692
      %v2785 = vmul.f32 %v2692, %v2784
      %v2786 = vsub.f32 1.0, %v2785
      %v2787 = vmul.f32 %v2784, %v2786
      %v2788 = vadd.f32 %v2784, %v2787
      %vm2789 = vweird.f32 %v2692
      %vm2790 = vweird.f32 %v2784
      %vm2791 = vmor %vm2789, %vm2790
      %v2792 = vsel %vm2791, %v2784, %v2788
      %v2793 = vand.u32 2147483647, %v2692
      %vm2794 = vcmp.eq.f32.partialorder %v2793, 8.507059e+37
      %v2795 = vand.u32 %v2692, 2147483648
      %v2796 = vor.u32 1.1754944e-38, %v2795
      %v2797 = vsel %vm2794, %v2796, %v2792
      %v2798 = vmul.f32 1.0, %v2797
      %v2799 = vrcp.pop %v2693
      %v2800 = vmul.f32 %v2693, %v2799
      %v2801 = vsub.f32 1.0, %v2800
      %v2802 = vmul.f32 %v2799, %v2801
      %v2803 = vadd.f32 %v2799, %v2802
      %vm2804 = vweird.f32 %v2693
      %vm2805 = vweird.f32 %v2799
      %vm2806 = vmor %vm2804, %vm2805
      %v2807 = vsel %vm2806, %v2799, %v2803
      %v2808 = vand.u32 2147483647, %v2693
      %vm2809 = vcmp.eq.f32.partialorder %v2808, 8.507059e+37
      %v2810 = vand.u32 %v2693, 2147483648
      %v2811 = vor.u32 1.1754944e-38, %v2810
      %v2812 = vsel %vm2809, %v2811, %v2807
      %v2813 = vmul.f32 1.0, %v2812
      %v2814 = vmul.f32 %v2708, %v332
      %v2815 = vmul.f32 %v2723, %v333
      %v2816 = vmul.f32 %v2738, %v334
      %v2817 = vmul.f32 %v2753, %v335
      %v2818 = vmul.f32 %v2768, %v336
      %v2819 = vmul.f32 %v2783, %v337
      %v2820 = vmul.f32 %v2798, %v338
      %v2821 = vmul.f32 %v2813, %v339
      %v2822 = vpack.c.bf16 %v2814, %v2814
      %v2823 = vpack.c.bf16 %v2815, %v2815
      %v2824 = vpack.c.bf16 %v2816, %v2816
      %v2825 = vpack.c.bf16 %v2817, %v2817
      %v2826 = vpack.c.bf16 %v2818, %v2818
      %v2827 = vpack.c.bf16 %v2819, %v2819
      %v2828 = vpack.c.bf16 %v2820, %v2820
      %v2829 = vpack.c.bf16 %v2821, %v2821
      %v2838 = vrot.slane %v2822, 7
      %v2839 = vrot.slane %v2838, 4
      %v2840 = vrot.slane %v2823, 7
      %v2841 = vrot.slane %v2840, 4
      %v2842 = vrot.slane %v2824, 7
      %v2843 = vrot.slane %v2842, 4
      %v2844 = vrot.slane %v2825, 7
      %v2845 = vrot.slane %v2844, 4
      %v2846 = vrot.slane %v2826, 7
      %v2847 = vrot.slane %v2846, 4
      %v2848 = vrot.slane %v2827, 7
      %v2849 = vrot.slane %v2848, 4
      %v2850 = vrot.slane %v2828, 7
      %v2851 = vrot.slane %v2850, 4
      %v2852 = vrot.slane %v2829, 7
      %v2853 = vrot.slane %v2852, 4
      %2870 = vst [vmem:[#allocation2] sm:$0xe] %v2838
      %2871 = vst [vmem:[#allocation2 + $0x4] sm:$0x1] %v2839
      %2872 = vst [vmem:[#allocation2 + $0x8] sm:$0xe] %v2840
      %2873 = vst [vmem:[#allocation2 + $0xc] sm:$0x1] %v2841
      %2874 = vst [vmem:[#allocation2 + $0x10] sm:$0xe] %v2842
      %2875 = vst [vmem:[#allocation2 + $0x14] sm:$0x1] %v2843
      %2876 = vst [vmem:[#allocation2 + $0x18] sm:$0xe] %v2844
      %2877 = vst [vmem:[#allocation2 + $0x1c] sm:$0x1] %v2845
      %2878 = vst [vmem:[#allocation2 + $0x20] sm:$0xe] %v2846
      %2879 = vst [vmem:[#allocation2 + $0x24] sm:$0x1] %v2847
      %2880 = vst [vmem:[#allocation2 + $0x28] sm:$0xe] %v2848
      %2881 = vst [vmem:[#allocation2 + $0x2c] sm:$0x1] %v2849
      %2882 = vst [vmem:[#allocation2 + $0x30] sm:$0xe] %v2850
      %2883 = vst [vmem:[#allocation2 + $0x34] sm:$0x1] %v2851
      %2884 = vst [vmem:[#allocation2 + $0x38] sm:$0xe] %v2852
      %2885 = vst [vmem:[#allocation2 + $0x3c] sm:$0x1] %v2853
      %v2886 = vld [vmem:[#allocation2] sm:$0xf]
      %v2887 = vld [vmem:[#allocation2 + $0x4] sm:$0x3]
      %v2888 = vld [vmem:[#allocation2 + $0x8] sm:$0xf]
      %v2889 = vld [vmem:[#allocation2 + $0xc] sm:$0x3]
      %v2890 = vld [vmem:[#allocation2 + $0x10] sm:$0xf]
      %v2891 = vld [vmem:[#allocation2 + $0x14] sm:$0x3]
      %v2892 = vld [vmem:[#allocation2 + $0x18] sm:$0xf]
      %v2893 = vld [vmem:[#allocation2 + $0x1c] sm:$0x3]
      %v2894 = vld [vmem:[#allocation2 + $0x20] sm:$0xf]
      %v2895 = vld [vmem:[#allocation2 + $0x24] sm:$0x3]
      %v2896 = vld [vmem:[#allocation2 + $0x28] sm:$0xf]
      %v2897 = vld [vmem:[#allocation2 + $0x2c] sm:$0x3]
      %v2898 = vld [vmem:[#allocation2 + $0x30] sm:$0xf]
      %v2899 = vld [vmem:[#allocation2 + $0x34] sm:$0x3]
      %v2900 = vld [vmem:[#allocation2 + $0x38] sm:$0xf]
      %v2901 = vld [vmem:[#allocation2 + $0x3c] sm:$0x3]
      %v2918 = vunpack.c.l.b16 %v2886
      %v2919 = vunpack.c.l.b16 %v2887
      %v2920 = vunpack.c.l.b16 %v2888
      %v2921 = vunpack.c.l.b16 %v2889
      %v2922 = vunpack.c.l.b16 %v2890
      %v2923 = vunpack.c.l.b16 %v2891
      %v2924 = vunpack.c.l.b16 %v2892
      %v2925 = vunpack.c.l.b16 %v2893
      %v2926 = vunpack.c.l.b16 %v2894
      %v2927 = vunpack.c.l.b16 %v2895
      %v2928 = vunpack.c.l.b16 %v2896
      %v2929 = vunpack.c.l.b16 %v2897
      %v2930 = vunpack.c.l.b16 %v2898
      %v2931 = vunpack.c.l.b16 %v2899
      %v2932 = vunpack.c.l.b16 %v2900
      %v2933 = vunpack.c.l.b16 %v2901
      %v2934 = vpack.c.b16 %v2919, %v2918
      %v2935 = vpack.c.b16 %v2921, %v2920
      %v2936 = vpack.c.b16 %v2923, %v2922
      %v2937 = vpack.c.b16 %v2925, %v2924
      %v2938 = vpack.c.b16 %v2927, %v2926
      %v2939 = vpack.c.b16 %v2929, %v2928
      %v2940 = vpack.c.b16 %v2931, %v2930
      %v2941 = vpack.c.b16 %v2933, %v2932
      %v2943 = vshrl.u32 %v2934, 16
      %v2945 = vshll.u32 %v2934, 16
      %v2947 = vrot.slane %v2945, 1
      %v2948 = vor.u32 %v2943, %v2947
      %v2950 = vshrl.u32 %v2935, 16
      %v2952 = vshll.u32 %v2935, 16
      %v2954 = vrot.slane %v2952, 1
      %v2955 = vor.u32 %v2950, %v2954
      %v2957 = vshrl.u32 %v2936, 16
      %v2959 = vshll.u32 %v2936, 16
      %v2961 = vrot.slane %v2959, 1
      %v2962 = vor.u32 %v2957, %v2961
      %v2964 = vshrl.u32 %v2937, 16
      %v2966 = vshll.u32 %v2937, 16
      %v2968 = vrot.slane %v2966, 1
      %v2969 = vor.u32 %v2964, %v2968
      %v2971 = vshrl.u32 %v2938, 16
      %v2973 = vshll.u32 %v2938, 16
      %v2975 = vrot.slane %v2973, 1
      %v2976 = vor.u32 %v2971, %v2975
      %v2978 = vshrl.u32 %v2939, 16
      %v2980 = vshll.u32 %v2939, 16
      %v2982 = vrot.slane %v2980, 1
      %v2983 = vor.u32 %v2978, %v2982
      %v2985 = vshrl.u32 %v2940, 16
      %v2987 = vshll.u32 %v2940, 16
      %v2989 = vrot.slane %v2987, 1
      %v2990 = vor.u32 %v2985, %v2989
      %v2992 = vshrl.u32 %v2941, 16
      %v2994 = vshll.u32 %v2941, 16
      %v2996 = vrot.slane %v2994, 1
      %v2997 = vor.u32 %v2992, %v2996
      %v2998 = vrot.slane %v2934, 1
      %v2999 = vrot.slane %v2935, 1
      %v3000 = vrot.slane %v2936, 1
      %v3001 = vrot.slane %v2937, 1
      %v3002 = vrot.slane %v2938, 1
      %v3003 = vrot.slane %v2939, 1
      %v3004 = vrot.slane %v2940, 1
      %v3005 = vrot.slane %v2941, 1
      %v3006 = vrot.slane %v2943, 1
      %v3007 = vrot.slane %v2945, 2
      %v3008 = vor.u32 %v3006, %v3007
      %v3009 = vrot.slane %v2950, 1
      %v3010 = vrot.slane %v2952, 2
      %v3011 = vor.u32 %v3009, %v3010
      %v3012 = vrot.slane %v2957, 1
      %v3013 = vrot.slane %v2959, 2
      %v3014 = vor.u32 %v3012, %v3013
      %v3015 = vrot.slane %v2964, 1
      %v3016 = vrot.slane %v2966, 2
      %v3017 = vor.u32 %v3015, %v3016
      %v3018 = vrot.slane %v2971, 1
      %v3019 = vrot.slane %v2973, 2
      %v3020 = vor.u32 %v3018, %v3019
      %v3021 = vrot.slane %v2978, 1
      %v3022 = vrot.slane %v2980, 2
      %v3023 = vor.u32 %v3021, %v3022
      %v3024 = vrot.slane %v2985, 1
      %v3025 = vrot.slane %v2987, 2
      %v3026 = vor.u32 %v3024, %v3025
      %v3027 = vrot.slane %v2992, 1
      %v3028 = vrot.slane %v2994, 2
      %v3029 = vor.u32 %v3027, %v3028
      %v3030 = vrot.slane %v2934, 2
      %v3031 = vrot.slane %v2935, 2
      %v3032 = vrot.slane %v2936, 2
      %v3033 = vrot.slane %v2937, 2
      %v3034 = vrot.slane %v2938, 2
      %v3035 = vrot.slane %v2939, 2
      %v3036 = vrot.slane %v2940, 2
      %v3037 = vrot.slane %v2941, 2
      %v3038 = vunpack.c.l.b16 %v2948
      %v3039 = vunpack.c.l.b16 %v2998
      %v3040 = vunpack.c.l.b16 %v3008
      %v3041 = vunpack.c.l.b16 %v3030
      %v3042 = vunpack.c.l.b16 %v2955
      %v3043 = vunpack.c.l.b16 %v2999
      %v3044 = vunpack.c.l.b16 %v3011
      %v3045 = vunpack.c.l.b16 %v3031
      %v3046 = vunpack.c.l.b16 %v2962
      %v3047 = vunpack.c.l.b16 %v3000
      %v3048 = vunpack.c.l.b16 %v3014
      %v3049 = vunpack.c.l.b16 %v3032
      %v3050 = vunpack.c.l.b16 %v2969
      %v3051 = vunpack.c.l.b16 %v3001
      %v3052 = vunpack.c.l.b16 %v3017
      %v3053 = vunpack.c.l.b16 %v3033
      %v3054 = vunpack.c.l.b16 %v2976
      %v3055 = vunpack.c.l.b16 %v3002
      %v3056 = vunpack.c.l.b16 %v3020
      %v3057 = vunpack.c.l.b16 %v3034
      %v3058 = vunpack.c.l.b16 %v2983
      %v3059 = vunpack.c.l.b16 %v3003
      %v3060 = vunpack.c.l.b16 %v3023
      %v3061 = vunpack.c.l.b16 %v3035
      %v3062 = vunpack.c.l.b16 %v2990
      %v3063 = vunpack.c.l.b16 %v3004
      %v3064 = vunpack.c.l.b16 %v3026
      %v3065 = vunpack.c.l.b16 %v3036
      %v3066 = vunpack.c.l.b16 %v2997
      %v3067 = vunpack.c.l.b16 %v3005
      %v3068 = vunpack.c.l.b16 %v3029
      %v3069 = vunpack.c.l.b16 %v3037
      %v3070 = vld [vmem:[%s4] sm:$0xf]
      %v3071 = vld [vmem:[%s4 + $0x4] sm:$0xf]
      %v3072 = vld [vmem:[%s4 + $0x8] sm:$0xf]
      %v3073 = vld [vmem:[%s4 + $0xc] sm:$0xf]
      %v3074 = vld [vmem:[%s4 + $0x10] sm:$0xf]
      %v3075 = vld [vmem:[%s4 + $0x14] sm:$0xf]
      %v3076 = vld [vmem:[%s4 + $0x18] sm:$0xf]
      %v3077 = vld [vmem:[%s4 + $0x1c] sm:$0xf]
      %v3078 = vld [vmem:[%s4 + $0x20] sm:$0xf]
      %v3079 = vld [vmem:[%s4 + $0x24] sm:$0xf]
      %v3080 = vld [vmem:[%s4 + $0x28] sm:$0xf]
      %v3081 = vld [vmem:[%s4 + $0x2c] sm:$0xf]
      %v3082 = vld [vmem:[%s4 + $0x30] sm:$0xf]
      %v3083 = vld [vmem:[%s4 + $0x34] sm:$0xf]
      %v3084 = vld [vmem:[%s4 + $0x38] sm:$0xf]
      %v3085 = vld [vmem:[%s4 + $0x3c] sm:$0xf]
      %v3086 = vld [vmem:[%s4 + $0x40] sm:$0xf]
      %v3087 = vld [vmem:[%s4 + $0x44] sm:$0xf]
      %v3088 = vld [vmem:[%s4 + $0x48] sm:$0xf]
      %v3089 = vld [vmem:[%s4 + $0x4c] sm:$0xf]
      %v3090 = vld [vmem:[%s4 + $0x50] sm:$0xf]
      %v3091 = vld [vmem:[%s4 + $0x54] sm:$0xf]
      %v3092 = vld [vmem:[%s4 + $0x58] sm:$0xf]
      %v3093 = vld [vmem:[%s4 + $0x5c] sm:$0xf]
      %v3094 = vld [vmem:[%s4 + $0x60] sm:$0xf]
      %v3095 = vld [vmem:[%s4 + $0x64] sm:$0xf]
      %v3096 = vld [vmem:[%s4 + $0x68] sm:$0xf]
      %v3097 = vld [vmem:[%s4 + $0x6c] sm:$0xf]
      %v3098 = vld [vmem:[%s4 + $0x70] sm:$0xf]
      %v3099 = vld [vmem:[%s4 + $0x74] sm:$0xf]
      %v3100 = vld [vmem:[%s4 + $0x78] sm:$0xf]
      %v3101 = vld [vmem:[%s4 + $0x7c] sm:$0xf]
      %v3102 = vld [vmem:[%s4 + $0x80] sm:$0xf]
      %v3103 = vld [vmem:[%s4 + $0x84] sm:$0xf]
      %v3104 = vld [vmem:[%s4 + $0x88] sm:$0xf]
      %v3105 = vld [vmem:[%s4 + $0x8c] sm:$0xf]
      %v3106 = vld [vmem:[%s4 + $0x90] sm:$0xf]
      %v3107 = vld [vmem:[%s4 + $0x94] sm:$0xf]
      %v3108 = vld [vmem:[%s4 + $0x98] sm:$0xf]
      %v3109 = vld [vmem:[%s4 + $0x9c] sm:$0xf]
      %v3110 = vld [vmem:[%s4 + $0xa0] sm:$0xf]
      %v3111 = vld [vmem:[%s4 + $0xa4] sm:$0xf]
      %v3112 = vld [vmem:[%s4 + $0xa8] sm:$0xf]
      %v3113 = vld [vmem:[%s4 + $0xac] sm:$0xf]
      %v3114 = vld [vmem:[%s4 + $0xb0] sm:$0xf]
      %v3115 = vld [vmem:[%s4 + $0xb4] sm:$0xf]
      %v3116 = vld [vmem:[%s4 + $0xb8] sm:$0xf]
      %v3117 = vld [vmem:[%s4 + $0xbc] sm:$0xf]
      %v3118 = vld [vmem:[%s4 + $0xc0] sm:$0xf]
      %v3119 = vld [vmem:[%s4 + $0xc4] sm:$0xf]
      %v3120 = vld [vmem:[%s4 + $0xc8] sm:$0xf]
      %v3121 = vld [vmem:[%s4 + $0xcc] sm:$0xf]
      %v3122 = vld [vmem:[%s4 + $0xd0] sm:$0xf]
      %v3123 = vld [vmem:[%s4 + $0xd4] sm:$0xf]
      %v3124 = vld [vmem:[%s4 + $0xd8] sm:$0xf]
      %v3125 = vld [vmem:[%s4 + $0xdc] sm:$0xf]
      %v3126 = vld [vmem:[%s4 + $0xe0] sm:$0xf]
      %v3127 = vld [vmem:[%s4 + $0xe4] sm:$0xf]
      %v3128 = vld [vmem:[%s4 + $0xe8] sm:$0xf]
      %v3129 = vld [vmem:[%s4 + $0xec] sm:$0xf]
      %v3130 = vld [vmem:[%s4 + $0xf0] sm:$0xf]
      %v3131 = vld [vmem:[%s4 + $0xf4] sm:$0xf]
      %v3132 = vld [vmem:[%s4 + $0xf8] sm:$0xf]
      %v3133 = vld [vmem:[%s4 + $0xfc] sm:$0xf]
      %v3134 = vld [vmem:[%s4 + $0x100] sm:$0xf]
      %v3135 = vld [vmem:[%s4 + $0x104] sm:$0xf]
      %v3136 = vld [vmem:[%s4 + $0x108] sm:$0xf]
      %v3137 = vld [vmem:[%s4 + $0x10c] sm:$0xf]
      %v3138 = vld [vmem:[%s4 + $0x110] sm:$0xf]
      %v3139 = vld [vmem:[%s4 + $0x114] sm:$0xf]
      %v3140 = vld [vmem:[%s4 + $0x118] sm:$0xf]
      %v3141 = vld [vmem:[%s4 + $0x11c] sm:$0xf]
      %v3142 = vld [vmem:[%s4 + $0x120] sm:$0xf]
      %v3143 = vld [vmem:[%s4 + $0x124] sm:$0xf]
      %v3144 = vld [vmem:[%s4 + $0x128] sm:$0xf]
      %v3145 = vld [vmem:[%s4 + $0x12c] sm:$0xf]
      %v3146 = vld [vmem:[%s4 + $0x130] sm:$0xf]
      %v3147 = vld [vmem:[%s4 + $0x134] sm:$0xf]
      %v3148 = vld [vmem:[%s4 + $0x138] sm:$0xf]
      %v3149 = vld [vmem:[%s4 + $0x13c] sm:$0xf]
      %v3150 = vld [vmem:[%s5] sm:$0xf]
      %v3151 = vld [vmem:[%s5 + $0x4] sm:$0xf]
      %v3152 = vld [vmem:[%s5 + $0x8] sm:$0xf]
      %v3153 = vld [vmem:[%s5 + $0xc] sm:$0xf]
      %v3154 = vld [vmem:[%s5 + $0x10] sm:$0xf]
      %v3155 = vld [vmem:[%s5 + $0x14] sm:$0xf]
      %v3156 = vld [vmem:[%s5 + $0x18] sm:$0xf]
      %v3157 = vld [vmem:[%s5 + $0x1c] sm:$0xf]
      %v3158 = vld [vmem:[%s5 + $0x20] sm:$0xf]
      %v3159 = vld [vmem:[%s5 + $0x24] sm:$0xf]
      %v3160 = vld [vmem:[%s5 + $0x28] sm:$0xf]
      %v3161 = vld [vmem:[%s5 + $0x2c] sm:$0xf]
      %v3162 = vld [vmem:[%s5 + $0x30] sm:$0xf]
      %v3163 = vld [vmem:[%s5 + $0x34] sm:$0xf]
      %v3164 = vld [vmem:[%s5 + $0x38] sm:$0xf]
      %v3165 = vld [vmem:[%s5 + $0x3c] sm:$0xf]
      %v3166 = vld [vmem:[%s5 + $0x40] sm:$0xf]
      %v3167 = vld [vmem:[%s5 + $0x44] sm:$0xf]
      %v3168 = vld [vmem:[%s5 + $0x48] sm:$0xf]
      %v3169 = vld [vmem:[%s5 + $0x4c] sm:$0xf]
      %v3170 = vld [vmem:[%s5 + $0x50] sm:$0xf]
      %v3171 = vld [vmem:[%s5 + $0x54] sm:$0xf]
      %v3172 = vld [vmem:[%s5 + $0x58] sm:$0xf]
      %v3173 = vld [vmem:[%s5 + $0x5c] sm:$0xf]
      %v3174 = vld [vmem:[%s5 + $0x60] sm:$0xf]
      %v3175 = vld [vmem:[%s5 + $0x64] sm:$0xf]
      %v3176 = vld [vmem:[%s5 + $0x68] sm:$0xf]
      %v3177 = vld [vmem:[%s5 + $0x6c] sm:$0xf]
      %v3178 = vld [vmem:[%s5 + $0x70] sm:$0xf]
      %v3179 = vld [vmem:[%s5 + $0x74] sm:$0xf]
      %v3180 = vld [vmem:[%s5 + $0x78] sm:$0xf]
      %v3181 = vld [vmem:[%s5 + $0x7c] sm:$0xf]
      %v3182 = vld [vmem:[%s5 + $0x80] sm:$0xf]
      %v3183 = vld [vmem:[%s5 + $0x84] sm:$0xf]
      %v3184 = vld [vmem:[%s5 + $0x88] sm:$0xf]
      %v3185 = vld [vmem:[%s5 + $0x8c] sm:$0xf]
      %v3186 = vld [vmem:[%s5 + $0x90] sm:$0xf]
      %v3187 = vld [vmem:[%s5 + $0x94] sm:$0xf]
      %v3188 = vld [vmem:[%s5 + $0x98] sm:$0xf]
      %v3189 = vld [vmem:[%s5 + $0x9c] sm:$0xf]
      %v3190 = vld [vmem:[%s5 + $0xa0] sm:$0xf]
      %v3191 = vld [vmem:[%s5 + $0xa4] sm:$0xf]
      %v3192 = vld [vmem:[%s5 + $0xa8] sm:$0xf]
      %v3193 = vld [vmem:[%s5 + $0xac] sm:$0xf]
      %v3194 = vld [vmem:[%s5 + $0xb0] sm:$0xf]
      %v3195 = vld [vmem:[%s5 + $0xb4] sm:$0xf]
      %v3196 = vld [vmem:[%s5 + $0xb8] sm:$0xf]
      %v3197 = vld [vmem:[%s5 + $0xbc] sm:$0xf]
      %v3198 = vld [vmem:[%s5 + $0xc0] sm:$0xf]
      %v3199 = vld [vmem:[%s5 + $0xc4] sm:$0xf]
      %v3200 = vld [vmem:[%s5 + $0xc8] sm:$0xf]
      %v3201 = vld [vmem:[%s5 + $0xcc] sm:$0xf]
      %v3202 = vld [vmem:[%s5 + $0xd0] sm:$0xf]
      %v3203 = vld [vmem:[%s5 + $0xd4] sm:$0xf]
      %v3204 = vld [vmem:[%s5 + $0xd8] sm:$0xf]
      %v3205 = vld [vmem:[%s5 + $0xdc] sm:$0xf]
      %v3206 = vld [vmem:[%s5 + $0xe0] sm:$0xf]
      %v3207 = vld [vmem:[%s5 + $0xe4] sm:$0xf]
      %v3208 = vld [vmem:[%s5 + $0xe8] sm:$0xf]
      %v3209 = vld [vmem:[%s5 + $0xec] sm:$0xf]
      %v3210 = vld [vmem:[%s5 + $0xf0] sm:$0xf]
      %v3211 = vld [vmem:[%s5 + $0xf4] sm:$0xf]
      %v3212 = vld [vmem:[%s5 + $0xf8] sm:$0xf]
      %v3213 = vld [vmem:[%s5 + $0xfc] sm:$0xf]
      %v3214 = vld [vmem:[%s5 + $0x100] sm:$0xf]
      %v3215 = vld [vmem:[%s5 + $0x104] sm:$0xf]
      %v3216 = vld [vmem:[%s5 + $0x108] sm:$0xf]
      %v3217 = vld [vmem:[%s5 + $0x10c] sm:$0xf]
      %v3218 = vld [vmem:[%s5 + $0x110] sm:$0xf]
      %v3219 = vld [vmem:[%s5 + $0x114] sm:$0xf]
      %v3220 = vld [vmem:[%s5 + $0x118] sm:$0xf]
      %v3221 = vld [vmem:[%s5 + $0x11c] sm:$0xf]
      %v3222 = vld [vmem:[%s5 + $0x120] sm:$0xf]
      %v3223 = vld [vmem:[%s5 + $0x124] sm:$0xf]
      %v3224 = vld [vmem:[%s5 + $0x128] sm:$0xf]
      %v3225 = vld [vmem:[%s5 + $0x12c] sm:$0xf]
      %v3226 = vld [vmem:[%s5 + $0x130] sm:$0xf]
      %v3227 = vld [vmem:[%s5 + $0x134] sm:$0xf]
      %v3228 = vld [vmem:[%s5 + $0x138] sm:$0xf]
      %v3229 = vld [vmem:[%s5 + $0x13c] sm:$0xf]
      %v3310 = vunpack.c.l.b16 %v3150
      %v3311 = vunpack.c.l.b16 %v3151
      %v3312 = vunpack.c.l.b16 %v3152
      %v3313 = vunpack.c.l.b16 %v3153
      %v3314 = vunpack.c.l.b16 %v3154
      %v3315 = vunpack.c.l.b16 %v3155
      %v3316 = vunpack.c.l.b16 %v3156
      %v3317 = vunpack.c.l.b16 %v3157
      %v3318 = vunpack.c.l.b16 %v3158
      %v3319 = vunpack.c.l.b16 %v3159
      %v3320 = vunpack.c.l.b16 %v3160
      %v3321 = vunpack.c.l.b16 %v3161
      %v3322 = vunpack.c.l.b16 %v3162
      %v3323 = vunpack.c.l.b16 %v3163
      %v3324 = vunpack.c.l.b16 %v3164
      %v3325 = vunpack.c.l.b16 %v3165
      %v3326 = vunpack.c.l.b16 %v3166
      %v3327 = vunpack.c.l.b16 %v3167
      %v3328 = vunpack.c.l.b16 %v3168
      %v3329 = vunpack.c.l.b16 %v3169
      %v3330 = vunpack.c.l.b16 %v3170
      %v3331 = vunpack.c.l.b16 %v3171
      %v3332 = vunpack.c.l.b16 %v3172
      %v3333 = vunpack.c.l.b16 %v3173
      %v3334 = vunpack.c.l.b16 %v3174
      %v3335 = vunpack.c.l.b16 %v3175
      %v3336 = vunpack.c.l.b16 %v3176
      %v3337 = vunpack.c.l.b16 %v3177
      %v3338 = vunpack.c.l.b16 %v3178
      %v3339 = vunpack.c.l.b16 %v3179
      %v3340 = vunpack.c.l.b16 %v3180
      %v3341 = vunpack.c.l.b16 %v3181
      %v3342 = vunpack.c.l.b16 %v3182
      %v3343 = vunpack.c.l.b16 %v3183
      %v3344 = vunpack.c.l.b16 %v3184
      %v3345 = vunpack.c.l.b16 %v3185
      %v3346 = vunpack.c.l.b16 %v3186
      %v3347 = vunpack.c.l.b16 %v3187
      %v3348 = vunpack.c.l.b16 %v3188
      %v3349 = vunpack.c.l.b16 %v3189
      %v3350 = vunpack.c.l.b16 %v3190
      %v3351 = vunpack.c.l.b16 %v3191
      %v3352 = vunpack.c.l.b16 %v3192
      %v3353 = vunpack.c.l.b16 %v3193
      %v3354 = vunpack.c.l.b16 %v3194
      %v3355 = vunpack.c.l.b16 %v3195
      %v3356 = vunpack.c.l.b16 %v3196
      %v3357 = vunpack.c.l.b16 %v3197
      %v3358 = vunpack.c.l.b16 %v3198
      %v3359 = vunpack.c.l.b16 %v3199
      %v3360 = vunpack.c.l.b16 %v3200
      %v3361 = vunpack.c.l.b16 %v3201
      %v3362 = vunpack.c.l.b16 %v3202
      %v3363 = vunpack.c.l.b16 %v3203
      %v3364 = vunpack.c.l.b16 %v3204
      %v3365 = vunpack.c.l.b16 %v3205
      %v3366 = vunpack.c.l.b16 %v3206
      %v3367 = vunpack.c.l.b16 %v3207
      %v3368 = vunpack.c.l.b16 %v3208
      %v3369 = vunpack.c.l.b16 %v3209
      %v3370 = vunpack.c.l.b16 %v3210
      %v3371 = vunpack.c.l.b16 %v3211
      %v3372 = vunpack.c.l.b16 %v3212
      %v3373 = vunpack.c.l.b16 %v3213
      %v3374 = vunpack.c.l.b16 %v3214
      %v3375 = vunpack.c.l.b16 %v3215
      %v3376 = vunpack.c.l.b16 %v3216
      %v3377 = vunpack.c.l.b16 %v3217
      %v3378 = vunpack.c.l.b16 %v3218
      %v3379 = vunpack.c.l.b16 %v3219
      %v3380 = vunpack.c.l.b16 %v3220
      %v3381 = vunpack.c.l.b16 %v3221
      %v3382 = vunpack.c.l.b16 %v3222
      %v3383 = vunpack.c.l.b16 %v3223
      %v3384 = vunpack.c.l.b16 %v3224
      %v3385 = vunpack.c.l.b16 %v3225
      %v3386 = vunpack.c.l.b16 %v3226
      %v3387 = vunpack.c.l.b16 %v3227
      %v3388 = vunpack.c.l.b16 %v3228
      %v3389 = vunpack.c.l.b16 %v3229
      %v3390 = vpack.c.b16 %v3311, %v3310
      %v3391 = vpack.c.b16 %v3313, %v3312
      %v3392 = vpack.c.b16 %v3315, %v3314
      %v3393 = vpack.c.b16 %v3317, %v3316
      %v3394 = vpack.c.b16 %v3319, %v3318
      %v3395 = vpack.c.b16 %v3321, %v3320
      %v3396 = vpack.c.b16 %v3323, %v3322
      %v3397 = vpack.c.b16 %v3325, %v3324
      %v3398 = vpack.c.b16 %v3327, %v3326
      %v3399 = vpack.c.b16 %v3329, %v3328
      %v3400 = vpack.c.b16 %v3331, %v3330
      %v3401 = vpack.c.b16 %v3333, %v3332
      %v3402 = vpack.c.b16 %v3335, %v3334
      %v3403 = vpack.c.b16 %v3337, %v3336
      %v3404 = vpack.c.b16 %v3339, %v3338
      %v3405 = vpack.c.b16 %v3341, %v3340
      %v3406 = vpack.c.b16 %v3343, %v3342
      %v3407 = vpack.c.b16 %v3345, %v3344
      %v3408 = vpack.c.b16 %v3347, %v3346
      %v3409 = vpack.c.b16 %v3349, %v3348
      %v3410 = vpack.c.b16 %v3351, %v3350
      %v3411 = vpack.c.b16 %v3353, %v3352
      %v3412 = vpack.c.b16 %v3355, %v3354
      %v3413 = vpack.c.b16 %v3357, %v3356
      %v3414 = vpack.c.b16 %v3359, %v3358
      %v3415 = vpack.c.b16 %v3361, %v3360
      %v3416 = vpack.c.b16 %v3363, %v3362
      %v3417 = vpack.c.b16 %v3365, %v3364
      %v3418 = vpack.c.b16 %v3367, %v3366
      %v3419 = vpack.c.b16 %v3369, %v3368
      %v3420 = vpack.c.b16 %v3371, %v3370
      %v3421 = vpack.c.b16 %v3373, %v3372
      %v3422 = vpack.c.b16 %v3375, %v3374
      %v3423 = vpack.c.b16 %v3377, %v3376
      %v3424 = vpack.c.b16 %v3379, %v3378
      %v3425 = vpack.c.b16 %v3381, %v3380
      %v3426 = vpack.c.b16 %v3383, %v3382
      %v3427 = vpack.c.b16 %v3385, %v3384
      %v3428 = vpack.c.b16 %v3387, %v3386
      %v3429 = vpack.c.b16 %v3389, %v3388
      %3470 = vmatpush.bf16.msra.mxu0 %v3397
      %3471 = vmatpush.bf16.msra.mxu0 %v3396
      %3472 = vmatpush.bf16.msra.mxu0 %v3395
      %3473 = vmatpush.bf16.msra.mxu0 %v3394
      %3474 = vmatpush.bf16.msra.mxu0 %v3393
      %3475 = vmatpush.bf16.msra.mxu0 %v3392
      %3476 = vmatpush.bf16.msra.mxu0 %v3391
      %3477 = vmatpush.bf16.msra.mxu0 %v3390
      %3478 = vmatmul.bf16.gmra.mxu0 %v1028
      %v3479 = vpop.f32.mrf.mxu0
      %v3480 = vadd.f32 0.0, %v3479
      %v3481 = vpop.f32.mrf.mxu0
      %v3482 = vadd.f32 0.0, %v3481
      %3483 = vmatmul.bf16.gmra.mxu0 %v1033
      %v3484 = vpop.f32.mrf.mxu0
      %v3485 = vadd.f32 0.0, %v3484
      %v3486 = vpop.f32.mrf.mxu0
      %v3487 = vadd.f32 0.0, %v3486
      %3488 = vmatmul.bf16.gmra.mxu0 %v1038
      %v3489 = vpop.f32.mrf.mxu0
      %v3490 = vadd.f32 0.0, %v3489
      %v3491 = vpop.f32.mrf.mxu0
      %v3492 = vadd.f32 0.0, %v3491
      %3493 = vmatmul.bf16.gmra.mxu0 %v1043
      %v3494 = vpop.f32.mrf.mxu0
      %v3495 = vadd.f32 0.0, %v3494
      %v3496 = vpop.f32.mrf.mxu0
      %v3497 = vadd.f32 0.0, %v3496
      %3498 = vdwg.mxu0
      %3499 = vmatpush.bf16.msra.mxu0 %v3405
      %3500 = vmatpush.bf16.msra.mxu0 %v3404
      %3501 = vmatpush.bf16.msra.mxu0 %v3403
      %3502 = vmatpush.bf16.msra.mxu0 %v3402
      %3503 = vmatpush.bf16.msra.mxu0 %v3401
      %3504 = vmatpush.bf16.msra.mxu0 %v3400
      %3505 = vmatpush.bf16.msra.mxu0 %v3399
      %3506 = vmatpush.bf16.msra.mxu0 %v3398
      %3507 = vmatmul.bf16.gmra.mxu0 %v1029
      %v3508 = vpop.f32.mrf.mxu0
      %v3509 = vadd.f32 %v3480, %v3508
      %v3510 = vpop.f32.mrf.mxu0
      %v3511 = vadd.f32 %v3482, %v3510
      %3512 = vmatmul.bf16.gmra.mxu0 %v1034
      %v3513 = vpop.f32.mrf.mxu0
      %v3514 = vadd.f32 %v3485, %v3513
      %v3515 = vpop.f32.mrf.mxu0
      %v3516 = vadd.f32 %v3487, %v3515
      %3517 = vmatmul.bf16.gmra.mxu0 %v1039
      %v3518 = vpop.f32.mrf.mxu0
      %v3519 = vadd.f32 %v3490, %v3518
      %v3520 = vpop.f32.mrf.mxu0
      %v3521 = vadd.f32 %v3492, %v3520
      %3522 = vmatmul.bf16.gmra.mxu0 %v1044
      %v3523 = vpop.f32.mrf.mxu0
      %v3524 = vadd.f32 %v3495, %v3523
      %v3525 = vpop.f32.mrf.mxu0
      %v3526 = vadd.f32 %v3497, %v3525
      %3527 = vdwg.mxu0
      %3528 = vmatpush.bf16.msra.mxu0 %v3413
      %3529 = vmatpush.bf16.msra.mxu0 %v3412
      %3530 = vmatpush.bf16.msra.mxu0 %v3411
      %3531 = vmatpush.bf16.msra.mxu0 %v3410
      %3532 = vmatpush.bf16.msra.mxu0 %v3409
      %3533 = vmatpush.bf16.msra.mxu0 %v3408
      %3534 = vmatpush.bf16.msra.mxu0 %v3407
      %3535 = vmatpush.bf16.msra.mxu0 %v3406
      %3536 = vmatmul.bf16.gmra.mxu0 %v1030
      %v3537 = vpop.f32.mrf.mxu0
      %v3538 = vadd.f32 %v3509, %v3537
      %v3539 = vpop.f32.mrf.mxu0
      %v3540 = vadd.f32 %v3511, %v3539
      %3541 = vmatmul.bf16.gmra.mxu0 %v1035
      %v3542 = vpop.f32.mrf.mxu0
      %v3543 = vadd.f32 %v3514, %v3542
      %v3544 = vpop.f32.mrf.mxu0
      %v3545 = vadd.f32 %v3516, %v3544
      %3546 = vmatmul.bf16.gmra.mxu0 %v1040
      %v3547 = vpop.f32.mrf.mxu0
      %v3548 = vadd.f32 %v3519, %v3547
      %v3549 = vpop.f32.mrf.mxu0
      %v3550 = vadd.f32 %v3521, %v3549
      %3551 = vmatmul.bf16.gmra.mxu0 %v1045
      %v3552 = vpop.f32.mrf.mxu0
      %v3553 = vadd.f32 %v3524, %v3552
      %v3554 = vpop.f32.mrf.mxu0
      %v3555 = vadd.f32 %v3526, %v3554
      %3556 = vdwg.mxu0
      %3557 = vmatpush.bf16.msra.mxu0 %v3421
      %3558 = vmatpush.bf16.msra.mxu0 %v3420
      %3559 = vmatpush.bf16.msra.mxu0 %v3419
      %3560 = vmatpush.bf16.msra.mxu0 %v3418
      %3561 = vmatpush.bf16.msra.mxu0 %v3417
      %3562 = vmatpush.bf16.msra.mxu0 %v3416
      %3563 = vmatpush.bf16.msra.mxu0 %v3415
      %3564 = vmatpush.bf16.msra.mxu0 %v3414
      %3565 = vmatmul.bf16.gmra.mxu0 %v1031
      %v3566 = vpop.f32.mrf.mxu0
      %v3567 = vadd.f32 %v3538, %v3566
      %v3568 = vpop.f32.mrf.mxu0
      %v3569 = vadd.f32 %v3540, %v3568
      %3570 = vmatmul.bf16.gmra.mxu0 %v1036
      %v3571 = vpop.f32.mrf.mxu0
      %v3572 = vadd.f32 %v3543, %v3571
      %v3573 = vpop.f32.mrf.mxu0
      %v3574 = vadd.f32 %v3545, %v3573
      %3575 = vmatmul.bf16.gmra.mxu0 %v1041
      %v3576 = vpop.f32.mrf.mxu0
      %v3577 = vadd.f32 %v3548, %v3576
      %v3578 = vpop.f32.mrf.mxu0
      %v3579 = vadd.f32 %v3550, %v3578
      %3580 = vmatmul.bf16.gmra.mxu0 %v1046
      %v3581 = vpop.f32.mrf.mxu0
      %v3582 = vadd.f32 %v3553, %v3581
      %v3583 = vpop.f32.mrf.mxu0
      %v3584 = vadd.f32 %v3555, %v3583
      %3585 = vdwg.mxu0
      %3586 = vmatpush.bf16.msra.mxu0 %v3429
      %3587 = vmatpush.bf16.msra.mxu0 %v3428
      %3588 = vmatpush.bf16.msra.mxu0 %v3427
      %3589 = vmatpush.bf16.msra.mxu0 %v3426
      %3590 = vmatpush.bf16.msra.mxu0 %v3425
      %3591 = vmatpush.bf16.msra.mxu0 %v3424
      %3592 = vmatpush.bf16.msra.mxu0 %v3423
      %3593 = vmatpush.bf16.msra.mxu0 %v3422
      %3594 = vmatmul.bf16.gmra.mxu0 %v1032
      %v3595 = vpop.f32.mrf.mxu0
      %v3596 = vadd.f32 %v3567, %v3595
      %v3597 = vpop.f32.mrf.mxu0
      %v3598 = vadd.f32 %v3569, %v3597
      %3599 = vmatmul.bf16.gmra.mxu0 %v1037
      %v3600 = vpop.f32.mrf.mxu0
      %v3601 = vadd.f32 %v3572, %v3600
      %v3602 = vpop.f32.mrf.mxu0
      %v3603 = vadd.f32 %v3574, %v3602
      %3604 = vmatmul.bf16.gmra.mxu0 %v1042
      %v3605 = vpop.f32.mrf.mxu0
      %v3606 = vadd.f32 %v3577, %v3605
      %v3607 = vpop.f32.mrf.mxu0
      %v3608 = vadd.f32 %v3579, %v3607
      %3609 = vmatmul.bf16.gmra.mxu0 %v1047
      %v3610 = vpop.f32.mrf.mxu0
      %v3611 = vadd.f32 %v3582, %v3610
      %v3612 = vpop.f32.mrf.mxu0
      %v3613 = vadd.f32 %v3584, %v3612
      %3614 = vdwg.mxu0
      %v3615 = vpack.c.b16 %v2920, %v2918
      %v3616 = vpack.c.b16 %v3042, %v3038
      %v3617 = vpack.c.b16 %v3043, %v3039
      %v3618 = vpack.c.b16 %v3044, %v3040
      %v3619 = vpack.c.b16 %v3045, %v3041
      %v3620 = vpack.c.b16 %v2924, %v2922
      %v3621 = vpack.c.b16 %v3050, %v3046
      %v3622 = vpack.c.b16 %v3051, %v3047
      %v3623 = vpack.c.b16 %v3052, %v3048
      %v3624 = vpack.c.b16 %v3053, %v3049
      %v3625 = vpack.c.b16 %v2928, %v2926
      %v3626 = vpack.c.b16 %v3058, %v3054
      %v3627 = vpack.c.b16 %v3059, %v3055
      %v3628 = vpack.c.b16 %v3060, %v3056
      %v3629 = vpack.c.b16 %v3061, %v3057
      %v3630 = vpack.c.b16 %v2932, %v2930
      %v3631 = vpack.c.b16 %v3066, %v3062
      %v3632 = vpack.c.b16 %v3067, %v3063
      %v3633 = vpack.c.b16 %v3068, %v3064
      %v3634 = vpack.c.b16 %v3069, %v3065
      %v3735 = vunpack.c.l.b16 %v3070
      %v3736 = vunpack.c.l.b16 %v3071
      %v3737 = vunpack.c.l.b16 %v3072
      %v3738 = vunpack.c.l.b16 %v3073
      %v3739 = vunpack.c.l.b16 %v3074
      %v3740 = vunpack.c.l.b16 %v3075
      %v3741 = vunpack.c.l.b16 %v3076
      %v3742 = vunpack.c.l.b16 %v3077
      %v3743 = vunpack.c.l.b16 %v3078
      %v3744 = vunpack.c.l.b16 %v3079
      %v3745 = vunpack.c.l.b16 %v3080
      %v3746 = vunpack.c.l.b16 %v3081
      %v3747 = vunpack.c.l.b16 %v3082
      %v3748 = vunpack.c.l.b16 %v3083
      %v3749 = vunpack.c.l.b16 %v3084
      %v3750 = vunpack.c.l.b16 %v3085
      %v3751 = vunpack.c.l.b16 %v3086
      %v3752 = vunpack.c.l.b16 %v3087
      %v3753 = vunpack.c.l.b16 %v3088
      %v3754 = vunpack.c.l.b16 %v3089
      %v3755 = vunpack.c.l.b16 %v3090
      %v3756 = vunpack.c.l.b16 %v3091
      %v3757 = vunpack.c.l.b16 %v3092
      %v3758 = vunpack.c.l.b16 %v3093
      %v3759 = vunpack.c.l.b16 %v3094
      %v3760 = vunpack.c.l.b16 %v3095
      %v3761 = vunpack.c.l.b16 %v3096
      %v3762 = vunpack.c.l.b16 %v3097
      %v3763 = vunpack.c.l.b16 %v3098
      %v3764 = vunpack.c.l.b16 %v3099
      %v3765 = vunpack.c.l.b16 %v3100
      %v3766 = vunpack.c.l.b16 %v3101
      %v3767 = vunpack.c.l.b16 %v3102
      %v3768 = vunpack.c.l.b16 %v3103
      %v3769 = vunpack.c.l.b16 %v3104
      %v3770 = vunpack.c.l.b16 %v3105
      %v3771 = vunpack.c.l.b16 %v3106
      %v3772 = vunpack.c.l.b16 %v3107
      %v3773 = vunpack.c.l.b16 %v3108
      %v3774 = vunpack.c.l.b16 %v3109
      %v3775 = vunpack.c.l.b16 %v3110
      %v3776 = vunpack.c.l.b16 %v3111
      %v3777 = vunpack.c.l.b16 %v3112
      %v3778 = vunpack.c.l.b16 %v3113
      %v3779 = vunpack.c.l.b16 %v3114
      %v3780 = vunpack.c.l.b16 %v3115
      %v3781 = vunpack.c.l.b16 %v3116
      %v3782 = vunpack.c.l.b16 %v3117
      %v3783 = vunpack.c.l.b16 %v3118
      %v3784 = vunpack.c.l.b16 %v3119
      %v3785 = vunpack.c.l.b16 %v3120
      %v3786 = vunpack.c.l.b16 %v3121
      %v3787 = vunpack.c.l.b16 %v3122
      %v3788 = vunpack.c.l.b16 %v3123
      %v3789 = vunpack.c.l.b16 %v3124
      %v3790 = vunpack.c.l.b16 %v3125
      %v3791 = vunpack.c.l.b16 %v3126
      %v3792 = vunpack.c.l.b16 %v3127
      %v3793 = vunpack.c.l.b16 %v3128
      %v3794 = vunpack.c.l.b16 %v3129
      %v3795 = vunpack.c.l.b16 %v3130
      %v3796 = vunpack.c.l.b16 %v3131
      %v3797 = vunpack.c.l.b16 %v3132
      %v3798 = vunpack.c.l.b16 %v3133
      %v3799 = vunpack.c.l.b16 %v3134
      %v3800 = vunpack.c.l.b16 %v3135
      %v3801 = vunpack.c.l.b16 %v3136
      %v3802 = vunpack.c.l.b16 %v3137
      %v3803 = vunpack.c.l.b16 %v3138
      %v3804 = vunpack.c.l.b16 %v3139
      %v3805 = vunpack.c.l.b16 %v3140
      %v3806 = vunpack.c.l.b16 %v3141
      %v3807 = vunpack.c.l.b16 %v3142
      %v3808 = vunpack.c.l.b16 %v3143
      %v3809 = vunpack.c.l.b16 %v3144
      %v3810 = vunpack.c.l.b16 %v3145
      %v3811 = vunpack.c.l.b16 %v3146
      %v3812 = vunpack.c.l.b16 %v3147
      %v3813 = vunpack.c.l.b16 %v3148
      %v3814 = vunpack.c.l.b16 %v3149
      %v3815 = vpack.c.b16 %v3736, %v3735
      %v3816 = vpack.c.b16 %v3738, %v3737
      %v3817 = vpack.c.b16 %v3740, %v3739
      %v3818 = vpack.c.b16 %v3742, %v3741
      %v3819 = vpack.c.b16 %v3744, %v3743
      %v3820 = vpack.c.b16 %v3746, %v3745
      %v3821 = vpack.c.b16 %v3748, %v3747
      %v3822 = vpack.c.b16 %v3750, %v3749
      %v3823 = vpack.c.b16 %v3752, %v3751
      %v3824 = vpack.c.b16 %v3754, %v3753
      %v3825 = vpack.c.b16 %v3756, %v3755
      %v3826 = vpack.c.b16 %v3758, %v3757
      %v3827 = vpack.c.b16 %v3760, %v3759
      %v3828 = vpack.c.b16 %v3762, %v3761
      %v3829 = vpack.c.b16 %v3764, %v3763
      %v3830 = vpack.c.b16 %v3766, %v3765
      %v3831 = vpack.c.b16 %v3768, %v3767
      %v3832 = vpack.c.b16 %v3770, %v3769
      %v3833 = vpack.c.b16 %v3772, %v3771
      %v3834 = vpack.c.b16 %v3774, %v3773
      %v3835 = vpack.c.b16 %v3776, %v3775
      %v3836 = vpack.c.b16 %v3778, %v3777
      %v3837 = vpack.c.b16 %v3780, %v3779
      %v3838 = vpack.c.b16 %v3782, %v3781
      %v3839 = vpack.c.b16 %v3784, %v3783
      %v3840 = vpack.c.b16 %v3786, %v3785
      %v3841 = vpack.c.b16 %v3788, %v3787
      %v3842 = vpack.c.b16 %v3790, %v3789
      %v3843 = vpack.c.b16 %v3792, %v3791
      %v3844 = vpack.c.b16 %v3794, %v3793
      %v3845 = vpack.c.b16 %v3796, %v3795
      %v3846 = vpack.c.b16 %v3798, %v3797
      %v3847 = vpack.c.b16 %v3800, %v3799
      %v3848 = vpack.c.b16 %v3802, %v3801
      %v3849 = vpack.c.b16 %v3804, %v3803
      %v3850 = vpack.c.b16 %v3806, %v3805
      %v3851 = vpack.c.b16 %v3808, %v3807
      %v3852 = vpack.c.b16 %v3810, %v3809
      %v3853 = vpack.c.b16 %v3812, %v3811
      %v3854 = vpack.c.b16 %v3814, %v3813
      %3895 = vmatpush.bf16.msra.mxu0 %v3822
      %3896 = vmatpush.bf16.msra.mxu0 %v3821
      %3897 = vmatpush.bf16.msra.mxu0 %v3820
      %3898 = vmatpush.bf16.msra.mxu0 %v3819
      %3899 = vmatpush.bf16.msra.mxu0 %v3818
      %3900 = vmatpush.bf16.msra.mxu0 %v3817
      %3901 = vmatpush.bf16.msra.mxu0 %v3816
      %3902 = vmatpush.bf16.msra.mxu0 %v3815
      %3903 = vmatmul.bf16.gmra.mxu0 %v3615
      %v3904 = vpop.f32.mrf.mxu0
      %v3905 = vadd.f32 %v3596, %v3904
      %v3906 = vpop.f32.mrf.mxu0
      %v3907 = vadd.f32 %v3598, %v3906
      %3908 = vmatmul.bf16.gmra.mxu0 %v3620
      %v3909 = vpop.f32.mrf.mxu0
      %v3910 = vadd.f32 %v3601, %v3909
      %v3911 = vpop.f32.mrf.mxu0
      %v3912 = vadd.f32 %v3603, %v3911
      %3913 = vmatmul.bf16.gmra.mxu0 %v3625
      %v3914 = vpop.f32.mrf.mxu0
      %v3915 = vadd.f32 %v3606, %v3914
      %v3916 = vpop.f32.mrf.mxu0
      %v3917 = vadd.f32 %v3608, %v3916
      %3918 = vmatmul.bf16.gmra.mxu0 %v3630
      %v3919 = vpop.f32.mrf.mxu0
      %v3920 = vadd.f32 %v3611, %v3919
      %v3921 = vpop.f32.mrf.mxu0
      %v3922 = vadd.f32 %v3613, %v3921
      %3923 = vdwg.mxu0
      %3924 = vmatpush.bf16.msra.mxu0 %v3830
      %3925 = vmatpush.bf16.msra.mxu0 %v3829
      %3926 = vmatpush.bf16.msra.mxu0 %v3828
      %3927 = vmatpush.bf16.msra.mxu0 %v3827
      %3928 = vmatpush.bf16.msra.mxu0 %v3826
      %3929 = vmatpush.bf16.msra.mxu0 %v3825
      %3930 = vmatpush.bf16.msra.mxu0 %v3824
      %3931 = vmatpush.bf16.msra.mxu0 %v3823
      %3932 = vmatmul.bf16.gmra.mxu0 %v3616
      %v3933 = vpop.f32.mrf.mxu0
      %v3934 = vadd.f32 %v3905, %v3933
      %v3935 = vpop.f32.mrf.mxu0
      %v3936 = vadd.f32 %v3907, %v3935
      %3937 = vmatmul.bf16.gmra.mxu0 %v3621
      %v3938 = vpop.f32.mrf.mxu0
      %v3939 = vadd.f32 %v3910, %v3938
      %v3940 = vpop.f32.mrf.mxu0
      %v3941 = vadd.f32 %v3912, %v3940
      %3942 = vmatmul.bf16.gmra.mxu0 %v3626
      %v3943 = vpop.f32.mrf.mxu0
      %v3944 = vadd.f32 %v3915, %v3943
      %v3945 = vpop.f32.mrf.mxu0
      %v3946 = vadd.f32 %v3917, %v3945
      %3947 = vmatmul.bf16.gmra.mxu0 %v3631
      %v3948 = vpop.f32.mrf.mxu0
      %v3949 = vadd.f32 %v3920, %v3948
      %v3950 = vpop.f32.mrf.mxu0
      %v3951 = vadd.f32 %v3922, %v3950
      %3952 = vdwg.mxu0
      %3953 = vmatpush.bf16.msra.mxu0 %v3838
      %3954 = vmatpush.bf16.msra.mxu0 %v3837
      %3955 = vmatpush.bf16.msra.mxu0 %v3836
      %3956 = vmatpush.bf16.msra.mxu0 %v3835
      %3957 = vmatpush.bf16.msra.mxu0 %v3834
      %3958 = vmatpush.bf16.msra.mxu0 %v3833
      %3959 = vmatpush.bf16.msra.mxu0 %v3832
      %3960 = vmatpush.bf16.msra.mxu0 %v3831
      %3961 = vmatmul.bf16.gmra.mxu0 %v3617
      %v3962 = vpop.f32.mrf.mxu0
      %v3963 = vadd.f32 %v3934, %v3962
      %v3964 = vpop.f32.mrf.mxu0
      %v3965 = vadd.f32 %v3936, %v3964
      %3966 = vmatmul.bf16.gmra.mxu0 %v3622
      %v3967 = vpop.f32.mrf.mxu0
      %v3968 = vadd.f32 %v3939, %v3967
      %v3969 = vpop.f32.mrf.mxu0
      %v3970 = vadd.f32 %v3941, %v3969
      %3971 = vmatmul.bf16.gmra.mxu0 %v3627
      %v3972 = vpop.f32.mrf.mxu0
      %v3973 = vadd.f32 %v3944, %v3972
      %v3974 = vpop.f32.mrf.mxu0
      %v3975 = vadd.f32 %v3946, %v3974
      %3976 = vmatmul.bf16.gmra.mxu0 %v3632
      %v3977 = vpop.f32.mrf.mxu0
      %v3978 = vadd.f32 %v3949, %v3977
      %v3979 = vpop.f32.mrf.mxu0
      %v3980 = vadd.f32 %v3951, %v3979
      %3981 = vdwg.mxu0
      %3982 = vmatpush.bf16.msra.mxu0 %v3846
      %3983 = vmatpush.bf16.msra.mxu0 %v3845
      %3984 = vmatpush.bf16.msra.mxu0 %v3844
      %3985 = vmatpush.bf16.msra.mxu0 %v3843
      %3986 = vmatpush.bf16.msra.mxu0 %v3842
      %3987 = vmatpush.bf16.msra.mxu0 %v3841
      %3988 = vmatpush.bf16.msra.mxu0 %v3840
      %3989 = vmatpush.bf16.msra.mxu0 %v3839
      %3990 = vmatmul.bf16.gmra.mxu0 %v3618
      %v3991 = vpop.f32.mrf.mxu0
      %v3992 = vadd.f32 %v3963, %v3991
      %v3993 = vpop.f32.mrf.mxu0
      %v3994 = vadd.f32 %v3965, %v3993
      %3995 = vmatmul.bf16.gmra.mxu0 %v3623
      %v3996 = vpop.f32.mrf.mxu0
      %v3997 = vadd.f32 %v3968, %v3996
      %v3998 = vpop.f32.mrf.mxu0
      %v3999 = vadd.f32 %v3970, %v3998
      %4000 = vmatmul.bf16.gmra.mxu0 %v3628
      %v4001 = vpop.f32.mrf.mxu0
      %v4002 = vadd.f32 %v3973, %v4001
      %v4003 = vpop.f32.mrf.mxu0
      %v4004 = vadd.f32 %v3975, %v4003
      %4005 = vmatmul.bf16.gmra.mxu0 %v3633
      %v4006 = vpop.f32.mrf.mxu0
      %v4007 = vadd.f32 %v3978, %v4006
      %v4008 = vpop.f32.mrf.mxu0
      %v4009 = vadd.f32 %v3980, %v4008
      %4010 = vdwg.mxu0
      %4011 = vmatpush.bf16.msra.mxu0 %v3854
      %4012 = vmatpush.bf16.msra.mxu0 %v3853
      %4013 = vmatpush.bf16.msra.mxu0 %v3852
      %4014 = vmatpush.bf16.msra.mxu0 %v3851
      %4015 = vmatpush.bf16.msra.mxu0 %v3850
      %4016 = vmatpush.bf16.msra.mxu0 %v3849
      %4017 = vmatpush.bf16.msra.mxu0 %v3848
      %4018 = vmatpush.bf16.msra.mxu0 %v3847
      %4019 = vmatmul.bf16.gmra.mxu0 %v3619
      %v4020 = vpop.f32.mrf.mxu0
      %v4021 = vadd.f32 %v3992, %v4020
      %v4022 = vpop.f32.mrf.mxu0
      %v4023 = vadd.f32 %v3994, %v4022
      %4024 = vmatmul.bf16.gmra.mxu0 %v3624
      %v4025 = vpop.f32.mrf.mxu0
      %v4026 = vadd.f32 %v3997, %v4025
      %v4027 = vpop.f32.mrf.mxu0
      %v4028 = vadd.f32 %v3999, %v4027
      %4029 = vmatmul.bf16.gmra.mxu0 %v3629
      %v4030 = vpop.f32.mrf.mxu0
      %v4031 = vadd.f32 %v4002, %v4030
      %v4032 = vpop.f32.mrf.mxu0
      %v4033 = vadd.f32 %v4004, %v4032
      %4034 = vmatmul.bf16.gmra.mxu0 %v3634
      %v4035 = vpop.f32.mrf.mxu0
      %v4036 = vadd.f32 %v4007, %v4035
      %v4037 = vpop.f32.mrf.mxu0
      %v4038 = vadd.f32 %v4009, %v4037
      %4039 = vdwg.mxu0
      %v4040 = vld [vmem:[%s7] sm:$0x1]
      %v4042 = vperm.slane %v4040, 0
      %v4044 = vadd.f32 %v4021, %v4042
      %v4045 = vadd.f32 %v4023, %v4042
      %v4046 = vadd.f32 %v4026, %v4042
      %v4047 = vadd.f32 %v4028, %v4042
      %v4048 = vadd.f32 %v4031, %v4042
      %v4049 = vadd.f32 %v4033, %v4042
      %v4050 = vadd.f32 %v4036, %v4042
      %v4051 = vadd.f32 %v4038, %v4042
      %v4052 = vtanh.pop %v4044
      %v4053 = vtanh.pop %v4045
      %v4054 = vtanh.pop %v4046
      %v4055 = vtanh.pop %v4047
      %v4056 = vtanh.pop %v4048
      %v4057 = vtanh.pop %v4049
      %v4058 = vtanh.pop %v4050
      %v4059 = vtanh.pop %v4051
      %v4060 = vsub.f32 1.0, %v2556
      %v4061 = vsub.f32 1.0, %v2571
      %v4062 = vsub.f32 1.0, %v2586
      %v4063 = vsub.f32 1.0, %v2601
      %v4064 = vsub.f32 1.0, %v2616
      %v4065 = vsub.f32 1.0, %v2631
      %v4066 = vsub.f32 1.0, %v2646
      %v4067 = vsub.f32 1.0, %v2661
      %v4068 = vmul.f32 %v4060, %v332
      %v4069 = vmul.f32 %v4061, %v333
      %v4070 = vmul.f32 %v4062, %v334
      %v4071 = vmul.f32 %v4063, %v335
      %v4072 = vmul.f32 %v4064, %v336
      %v4073 = vmul.f32 %v4065, %v337
      %v4074 = vmul.f32 %v4066, %v338
      %v4075 = vmul.f32 %v4067, %v339
      %v4076 = vmul.f32 %v2556, %v4052
      %v4077 = vmul.f32 %v2571, %v4053
      %v4078 = vmul.f32 %v2586, %v4054
      %v4079 = vmul.f32 %v2601, %v4055
      %v4080 = vmul.f32 %v2616, %v4056
      %v4081 = vmul.f32 %v2631, %v4057
      %v4082 = vmul.f32 %v2646, %v4058
      %v4083 = vmul.f32 %v2661, %v4059
      %v4084 = vadd.f32 %v4068, %v4076
      %v4085 = vadd.f32 %v4069, %v4077
      %v4086 = vadd.f32 %v4070, %v4078
      %v4087 = vadd.f32 %v4071, %v4079
      %v4088 = vadd.f32 %v4072, %v4080
      %v4089 = vadd.f32 %v4073, %v4081
      %v4090 = vadd.f32 %v4074, %v4082
      %v4091 = vadd.f32 %v4075, %v4083
      %4092 = vst [vmem:[%s329] sm:$0xff] %v4084
      %4093 = vst [vmem:[%s329 + $0x8] sm:$0xff] %v4085
      %4094 = vst [vmem:[%s329 + $0x10] sm:$0xff] %v4086
      %4095 = vst [vmem:[%s329 + $0x18] sm:$0xff] %v4087
      %4096 = vst [vmem:[%s329 + $0x20] sm:$0xff] %v4088
      %4097 = vst [vmem:[%s329 + $0x28] sm:$0xff] %v4089
      %4098 = vst [vmem:[%s329 + $0x30] sm:$0xff] %v4090
      %4099 = vst [vmem:[%s329 + $0x38] sm:$0xff] %v4091
      %s4100 = smul.u32 8, %s19
      %p4101 = scmp.lt.s32.totalorder %s4100, 15
      %s4102 = scalar_select %p4101, %s4100, 15
      %s4103 = smul.addr %s4102, 8
      %s4104 = scalar_lea.vmem %s8, %s4103
      // Predicated region
      $region53: #{sep_conv_gru.2} parent=51 // pred_check
        %p4105 = pneg %p215
      $region54: #{sep_conv_gru.2} parent=51 // pred_check_branch
        %4107 = sbr.rel (%p4105) target = $region56
      $region55: #{sep_conv_gru.2} parent=51 // pred_region
        %s4108 = smul.u32 8, %s19
      $region56: #{sep_conv_gru.2} parent=51 // pred_fallthru
        _
    $region52: #{sep_conv_gru.2} parent=5 // pred_fallthru
      _
    %p4109 = scmp.le.s32.totalorder 2, %s14
    // Predicated region
    $region57: #{sep_conv_gru.2} parent=5 // pred_check
      %p4110 = pneg %p4109
    $region58: #{sep_conv_gru.2} parent=5 // pred_check_branch
      %4112 = sbr.rel (%p4110) target = $region60
    $region59: #{sep_conv_gru.2} parent=5 // pred_region
      %s4113 = ssub.s32 %s14, 2
      // Predicated region
      $region61: #{sep_conv_gru.2} parent=59 // pred_check
        %p4114 = pneg %p221
      $region62: #{sep_conv_gru.2} parent=59 // pred_check_branch
        %4116 = sbr.rel (%p4114) target = $region64
      $region63: #{sep_conv_gru.2} parent=59 // pred_region
        %s4117 = smul.u32 8, %s20
        %p4118 = scmp.lt.s32.totalorder %s4117, 15
        %s4119 = scalar_select %p4118, %s4117, 15
        %s4120 = smul.addr %s4119, 8
        %s4121 = scalar_lea.vmem %s8, %s4120
      $region64: #{sep_conv_gru.2} parent=59 // pred_fallthru
        _
    $region60: #{sep_conv_gru.2} parent=5 // pred_fallthru
      _
  $region6: #{sep_conv_gru.2} parent=0 // loop_footer
    %s18 = sadd.s32 1, %s14
  $region7: #{sep_conv_gru.2} parent=0 // loop_footer_branch
    %13 = sbr.rel target = $region3
  $region8: #{sep_conv_gru.2} parent=0 // loop_exit
    _

</llo_original>
